<compile_context>
chip_gen: v7x
topology: tpu7x:2x2x1
jax: 0.10.0
libtpu: 0.0.40
codegen_flags: <defaults>
</compile_context>

<pallas_src>
import functools
import math

import jax
import jax.numpy as jnp
import numpy as np
from jax.experimental import pallas as pl
from jax.experimental.pallas import tpu as pltpu

_EPS = 1e-5


def _full_spec(shape):
    # single grid step, whole array as one VMEM block
    n = len(shape)
    return pl.BlockSpec(shape, lambda i, _n=n: (0,) * _n)


# ----------------------------------------------------------------------------- fused kernel
def _fused_kernel(xpad_ref, svact_ref, w1b_ref, w2b_ref, wstack_ref, smalls_ref,
                  o_ref,
                  hm1_ref, pad2_ref, hm2_ref, y2_ref,
                  *, B, H, W, CIN, C1, C2, HID, VEC_SD, NACT, VD):
    f32 = jnp.float32
    HO, WO = H // 2, W // 2            # spatial size after pool1
    HQ, WQ = HO // 2, WO // 2          # spatial size after pool2
    HP1, HP2 = H + 2, HO + 2           # height-padded rows per image
    K1, K2 = W * CIN, WO * C1          # contraction widths of the banded conv matmuls
    W1COL = WO * C1                    # width of one parity half (conv1 output slab)
    W2COL = WQ * C2                    # width of one parity half (conv2 output slab)
    FW = WQ * C2                       # per-height feature width into cnn_tail

    def dot(a, b):
        # default precision: bf16 inputs, f32 accumulate, single MXU pass
        return jnp.dot(a, b, preferred_element_type=f32)

    def dotx(a, b):
        # tiny BN-statistic folds only: keep f32-exact (cost is negligible)
        return jnp.dot(a, b, preferred_element_type=f32,
                       precision=jax.lax.Precision.HIGHEST)

    def fold_mat(width, c):            # (width, c) 0/1: sums width blocks per channel
        r = jax.lax.broadcasted_iota(jnp.int32, (width, c), 0)
        k = jax.lax.broadcasted_iota(jnp.int32, (width, c), 1)
        return ((r & (c - 1)) == k).astype(f32)        # c is a power of two

    def tile_mat(c, width):            # (c, width) 0/1: tiles per-channel row over width
        r = jax.lax.broadcasted_iota(jnp.int32, (c, width), 0)
        k = jax.lax.broadcasted_iota(jnp.int32, (c, width), 1)
        return ((k & (c - 1)) == r).astype(f32)

    def batch_stats(p, width, c, n, gamma, beta):
        # single-pass training-mode BN stats: sum / sum-of-squares, var = E[x^2]-mean^2
        srow = jnp.sum(p, axis=0, keepdims=True)                       # (1, width)
        qrow = jnp.sum(p * p, axis=0, keepdims=True)                   # (1, width)
        folded = dotx(jnp.concatenate([srow, qrow], axis=0),
                      fold_mat(width, c))                              # (2, c)
        mean = folded[0:1, :] * (1.0 / n)
        var = jnp.maximum(folded[1:2, :] * (1.0 / n) - mean * mean, 0.0)
        scale = gamma * jax.lax.rsqrt(var + _EPS)
        shift = beta - mean * scale
        ss = dotx(jnp.concatenate([scale, shift], axis=0),
                  tile_mat(c, width))                                  # (2, width)
        return ss[0:1, :], ss[1:2, :]

    # ---- packed parameter views (static slices of the two packed slabs) ------
    b1t = smalls_ref[0:1, 0:W1COL]
    b2t = smalls_ref[1:2, 0:W2COL]
    g1 = smalls_ref[2:3, 0:C1]
    be1 = smalls_ref[2:3, C1:2 * C1]
    g2 = smalls_ref[2:3, 2 * C1:2 * C1 + C2]
    be2 = smalls_ref[2:3, 2 * C1 + C2:2 * C1 + 2 * C2]
    tb = smalls_ref[3:4, 0:HID]
    bm = smalls_ref[3:4, HID:2 * HID]
    qb1 = smalls_ref[3:4, 2 * HID:3 * HID]
    qb2 = smalls_ref[3:4, 3 * HID:4 * HID]
    qb3 = smalls_ref[4:5, 0:HID]
    qb4 = smalls_ref[4:5, HID:2 * HID]

    o_wt = 0                           # row offsets inside the packed weight stack
    o_wm = o_wt + HQ * FW
    o_w2 = o_wm + VEC_SD
    o_w3 = o_w2 + HID
    o_w4 = o_w3 + HID
    o_w1 = o_w4 + HID

    # ---- stage 1: conv1 (banded, even||odd columns) over the full padded slab
    n1r = B * HP1
    s = (dot(xpad_ref[0:n1r - 2, :], w1b_ref[0 * K1:1 * K1, :])
         + dot(xpad_ref[1:n1r - 1, :], w1b_ref[1 * K1:2 * K1, :])
         + dot(xpad_ref[2:n1r, :],     w1b_ref[2 * K1:3 * K1, :]))     # (n1r-2, 2*W1COL)
    for b in range(B):                 # VPU-only per-image work (matmul count is B-free)
        blk = s[b * HP1:b * HP1 + H, :]
        hm1_ref[b * H:(b + 1) * H, :] = jnp.maximum(blk[:, :W1COL], blk[:, W1COL:])
    # vertical half of MaxPool2d(2): strided sublane reads + VPU max (off-MXU)
    pm = jnp.maximum(hm1_ref[pl.ds(0, B * HO, 2), :],
                     hm1_ref[pl.ds(1, B * HO, 2), :])                  # (B*HO, W1COL)
    p1 = jnp.maximum(pm + b1t, 0.0)                                    # +bias, ReLU

    scale1_t, shift1_t = batch_stats(p1, W1COL, C1, float(B * HO * WO), g1, be1)
    y1 = p1 * scale1_t + shift1_t                                      # BN1 output

    # ---- stage 2: conv2 over the BN1 output (height-padded slab in VMEM) -----
    pad2_ref[...] = jnp.zeros(pad2_ref.shape, f32)
    for b in range(B):                 # all interiors written before any conv2 matmul
        pad2_ref[b * HP2 + 1:b * HP2 + 1 + HO, :] = y1[b * HO:(b + 1) * HO, :]
    n2r = B * HP2
    s2 = (dot(pad2_ref[0:n2r - 2, :], w2b_ref[0 * K2:1 * K2, :])
          + dot(pad2_ref[1:n2r - 1, :], w2b_ref[1 * K2:2 * K2, :])
          + dot(pad2_ref[2:n2r, :],     w2b_ref[2 * K2:3 * K2, :]))    # (n2r-2, 2*W2COL)
    for b in range(B):
        blk = s2[b * HP2:b * HP2 + HO, :]
        hm2_ref[b * HO:(b + 1) * HO, :] = jnp.maximum(blk[:, :W2COL], blk[:, W2COL:])
    pm2 = jnp.maximum(hm2_ref[pl.ds(0, B * HQ, 2), :],
                      hm2_ref[pl.ds(1, B * HQ, 2), :])                 # (B*HQ, W2COL)
    p2 = jnp.maximum(pm2 + b2t, 0.0)

    scale2_t, shift2_t = batch_stats(p2, W2COL, C2, float(B * HQ * WQ), g2, be2)
    y2_ref[...] = p2 * scale2_t + shift2_t                             # BN2 output

    # ---- cnn_tail: HQ batched (M=B) dots against the (h,w,c)-permuted weight -
    imgf = dot(y2_ref[pl.ds(0, B, HQ), :], wstack_ref[o_wt:o_wt + FW, :])
    for h in range(1, HQ):
        imgf = imgf + dot(y2_ref[pl.ds(h, B, HQ), :],
                          wstack_ref[o_wt + h * FW:o_wt + (h + 1) * FW, :])
    imgf = imgf + tb                                                   # (B, HID)

    # ---- vector-state MLP + fused Q head --------------------------------------
    sv = svact_ref[:, 0:VEC_SD]
    act = svact_ref[:, VEC_SD:VEC_SD + NACT]
    vecf = jnp.maximum(dot(sv, wstack_ref[o_wm:o_wm + VEC_SD, :]) + bm, 0.0)
    qin = jnp.concatenate([vecf, imgf, act], axis=-1)                  # (B, 2*HID+NACT)
    h1 = jnp.maximum(dot(qin, wstack_ref[o_w1:o_w1 + 2 * HID + NACT, :]) + qb1, 0.0)
    h2 = jnp.maximum(dot(h1, wstack_ref[o_w2:o_w2 + HID, :]) + qb2, 0.0)
    h3 = jnp.maximum(dot(h2, wstack_ref[o_w3:o_w3 + HID, :]) + qb3, 0.0)
    out = dot(h3, wstack_ref[o_w4:o_w4 + HID, :]) + qb4                # (B, HID), cols>=VD are 0
    o_ref[...] = out[:, 0:VD].astype(o_ref.dtype)


# ----------------------------------------------------------------------------- parameter prep
def prepare_params(p):
    """One-time re-layout of PyTorch-style parameters into 4 packed, kernel-ready slabs."""
    conv1_w = np.asarray(p["conv1_w"], np.float32)
    conv2_w = np.asarray(p["conv2_w"], np.float32)
    c1, c2 = conv1_w.shape[0], conv2_w.shape[0]
    hid = int(np.asarray(p["l2_w"]).shape[0])
    vd = int(np.asarray(p["l4_w"]).shape[0])
    hq = int(round(math.sqrt(np.asarray(p["tail_w"]).shape[1] / c2)))
    wq = hq
    ho, wo = 2 * hq, 2 * wq
    h, w = 2 * ho, 2 * wo

    def banded(conv_w, w_in, parity):
        # (Cout, Cin, 3, 3) -> (3*w_in*Cin, (w_in/2)*Cout): width taps + 'same' width
        # padding folded in; only output columns of the given parity kept (= one half
        # of the horizontal 2x2 max-pool window).
        wgt = np.asarray(conv_w, np.float32)
        cout, cin, khn, kwn = wgt.shape
        half = w_in // 2
        band = np.zeros((khn, w_in * cin, half * cout), np.float32)
        for kh in range(khn):
            for oj in range(half):
                wout = 2 * oj + parity
                for kw in range(kwn):
                    wi = wout + kw - 1
                    if 0 <= wi < w_in:
                        band[kh, wi * cin:(wi + 1) * cin,
                             oj * cout:(oj + 1) * cout] = wgt[:, :, kh, kw].T
        return band.reshape(khn * w_in * cin, half * cout)

    # even||odd concatenated -> one 256-wide dot per tap (fills the 2x256^2 MXU)
    w1b = np.concatenate([banded(conv1_w, w, 0), banded(conv1_w, w, 1)], axis=1)
    w2b = np.concatenate([banded(conv2_w, wo, 0), banded(conv2_w, wo, 1)], axis=1)

    # cnn_tail weight rows permuted from PyTorch NCHW-flatten (c,h,w) to our (h,w,c)
    wt_t = np.asarray(p["tail_w"], np.float32).T               # (C2*HQ*WQ, hid)
    wt = wt_t.reshape(c2, hq, wq, hid).transpose(1, 2, 0, 3).reshape(hq * wq * c2, hid)

    wm = np.ascontiguousarray(np.asarray(p["mlp_w"], np.float32).T)
    w1 = np.ascontiguousarray(np.asarray(p["l1_w"], np.float32).T)
    w2 = np.ascontiguousarray(np.asarray(p["l2_w"], np.float32).T)
    w3 = np.ascontiguousarray(np.asarray(p["l3_w"], np.float32).T)
    w4 = np.zeros((hid, hid), np.float32)
    w4[:, :vd] = np.asarray(p["l4_w"], np.float32).T
    # single weight slab: [wt | wm | w2 | w3 | w4pad | w1]  (one DMA instead of six)
    wstack = np.concatenate([wt, wm, w2, w3, w4, w1], axis=0)

    # "smalls" slab: all bias / gamma / beta rows in one (5, >=128) array
    smw = max(wo * c1, wq * c2, 4 * hid, 2 * (c1 + c2))
    smalls = np.zeros((5, smw), np.float32)
    smalls[0, :wo * c1] = np.tile(np.asarray(p["conv1_b"], np.float32), wo)
    smalls[1, :wq * c2] = np.tile(np.asarray(p["conv2_b"], np.float32), wq)
    smalls[2, 0:c1] = np.asarray(p["bn1_g"], np.float32)
    smalls[2, c1:2 * c1] = np.asarray(p["bn1_b"], np.float32)
    smalls[2, 2 * c1:2 * c1 + c2] = np.asarray(p["bn2_g"], np.float32)
    smalls[2, 2 * c1 + c2:2 * c1 + 2 * c2] = np.asarray(p["bn2_b"], np.float32)
    smalls[3, 0:hid] = np.asarray(p["tail_b"], np.float32)
    smalls[3, hid:2 * hid] = np.asarray(p["mlp_b"], np.float32)
    smalls[3, 2 * hid:3 * hid] = np.asarray(p["l1_b"], np.float32)
    smalls[3, 3 * hid:4 * hid] = np.asarray(p["l2_b"], np.float32)
    smalls[4, 0:hid] = np.asarray(p["l3_b"], np.float32)
    smalls[4, hid:hid + vd] = np.asarray(p["l4_b"], np.float32)

    return {"w1b": jnp.asarray(w1b), "w2b": jnp.asarray(w2b),
            "wstack": jnp.asarray(wstack), "smalls": jnp.asarray(smalls)}


# ----------------------------------------------------------------------------- forward
@functools.partial(jax.jit, static_argnames=("vec_dim",))
def vec_q_network_forward(prep, state_vec, state_img_nchw, action, *, vec_dim):
    B, CIN, H, W = state_img_nchw.shape
    HO, WO = H // 2, W // 2
    HQ, WQ = HO // 2, WO // 2
    C1 = prep["w1b"].shape[1] // W          # 2*WO == W
    C2 = prep["w2b"].shape[1] // WO         # 2*WQ == WO
    HID = prep["wstack"].shape[1]
    VEC_SD = state_vec.shape[1]
    NACT = action.shape[1]
    assert C1 & (C1 - 1) == 0 and C2 & (C2 - 1) == 0  # in-kernel fold matrices use &

    # only per-call data prep left in XLA: NCHW -> NHWC, height pad, lane-dense slab
    x = jnp.transpose(state_img_nchw, (0, 2, 3, 1)).astype(jnp.float32)
    x = jnp.pad(x, ((0, 0), (1, 1), (0, 0), (0, 0)))
    xpad = x.reshape(B * (H + 2), W * CIN)
    svact = jnp.concatenate([state_vec.astype(jnp.float32),
                             action.astype(jnp.float32)], axis=1)

    args = [xpad, svact, prep["w1b"], prep["w2b"], prep["wstack"], prep["smalls"]]
    kernel = functools.partial(
        _fused_kernel, B=B, H=H, W=W, CIN=CIN, C1=C1, C2=C2, HID=HID,
        VEC_SD=VEC_SD, NACT=NACT, VD=vec_dim)

    return pl.pallas_call(
        kernel,
        grid=(1,),
        out_shape=jax.ShapeDtypeStruct((B, vec_dim), jnp.float32),
        in_specs=[_full_spec(a.shape) for a in args],
        out_specs=_full_spec((B, vec_dim)),
        scratch_shapes=[
            pltpu.VMEM((B * H, WO * C1), jnp.float32),         # hm1: conv1 horizontal max
            pltpu.VMEM((B * (HO + 2), WO * C1), jnp.float32),  # pad2: BN1 out, height-padded
            pltpu.VMEM((B * HO, WQ * C2), jnp.float32),        # hm2: conv2 horizontal max
            pltpu.VMEM((B * HQ, WQ * C2), jnp.float32),        # y2 : BN2 out (tail input)
        ],
        compiler_params=pltpu.CompilerParams(dimension_semantics=("arbitrary",)),
    )(*args)


# ----------------------------------------------------------------------------- init + reference
def init_params(key, vec_state_dim, img_size, num_actions, hidden_size, vec_dim, init_w=0.003):
    ks = jax.random.split(key, 8)

    def lin(k, fin, fout, bound=None):
        bnd = (1.0 / math.sqrt(fin)) if bound is None else bound
        kw, kb = jax.random.split(k)
        return (jax.random.uniform(kw, (fout, fin), jnp.float32, -bnd, bnd),
                jax.random.uniform(kb, (fout,), jnp.float32, -bnd, bnd))

    def conv(k, cin, cout):
        bnd = 1.0 / math.sqrt(cin * 9)
        kw, kb = jax.random.split(k)
        return (jax.random.uniform(kw, (cout, cin, 3, 3), jnp.float32, -bnd, bnd),
                jax.random.uniform(kb, (cout,), jnp.float32, -bnd, bnd))

    p = {}
    p["mlp_w"], p["mlp_b"] = lin(ks[0], vec_state_dim, hidden_size)
    p["conv1_w"], p["conv1_b"] = conv(ks[1], 3, 16)
    p["bn1_g"], p["bn1_b"] = jnp.ones((16,), jnp.float32), jnp.zeros((16,), jnp.float32)
    p["conv2_w"], p["conv2_b"] = conv(ks[2], 16, 32)
    p["bn2_g"], p["bn2_b"] = jnp.ones((32,), jnp.float32), jnp.zeros((32,), jnp.float32)
    after_conv = 32 * (img_size // 4) ** 2
    p["tail_w"], p["tail_b"] = lin(ks[3], after_conv, hidden_size)
    sum_hidden = hidden_size * 2
    p["l1_w"], p["l1_b"] = lin(ks[4], sum_hidden + num_actions, hidden_size)
    p["l2_w"], p["l2_b"] = lin(ks[5], hidden_size, hidden_size)
    p["l3_w"], p["l3_b"] = lin(ks[6], hidden_size, hidden_size)
    p["l4_w"], p["l4_b"] = lin(ks[7], hidden_size, vec_dim, bound=init_w)
    return p


def _reference_forward(p, state_vec, state_img_nchw, action):
    """Plain-JAX replica of the PyTorch module (training-mode BN)."""
    def conv(x, w, b):
        y = jax.lax.conv_general_dilated(x, w, (1, 1), ((1, 1), (1, 1)),
                                         dimension_numbers=("NCHW", "OIHW", "NCHW"))
        return y + b[None, :, None, None]

    def pool_relu_bn(x, g, bt):
        x = jax.lax.reduce_window(x, -jnp.inf, jax.lax.max, (1, 1, 2, 2), (1, 1, 2, 2), "VALID")
        x = jnp.maximum(x, 0.0)
        mean = jnp.mean(x, axis=(0, 2, 3), keepdims=True)
        var = jnp.mean(jnp.square(x - mean), axis=(0, 2, 3), keepdims=True)
        y = (x - mean) * jax.lax.rsqrt(var + _EPS)
        return y * g[None, :, None, None] + bt[None, :, None, None]

    vec = jnp.maximum(state_vec @ p["mlp_w"].T + p["mlp_b"], 0.0)
    z = conv(state_img_nchw, p["conv1_w"], p["conv1_b"])
    z = pool_relu_bn(z, p["bn1_g"], p["bn1_b"])
    z = conv(z, p["conv2_w"], p["conv2_b"])
    z = pool_relu_bn(z, p["bn2_g"], p["bn2_b"])
    img = z.reshape(z.shape[0], -1) @ p["tail_w"].T + p["tail_b"]
    h = jnp.concatenate([vec, img, action], axis=1)
    h = jnp.maximum(h @ p["l1_w"].T + p["l1_b"], 0.0)
    h = jnp.maximum(h @ p["l2_w"].T + p["l2_b"], 0.0)
    h = jnp.maximum(h @ p["l3_w"].T + p["l3_b"], 0.0)
    return h @ p["l4_w"].T + p["l4_b"]


if __name__ == "__main__":
    B, VEC_STATE_DIM, IMG, HID, NUM_ACT, VEC_DIM = 2, 8, 16, 32, 4, 3
    key = jax.random.PRNGKey(0)
    kp, kv, ki, ka = jax.random.split(key, 4)

    params = init_params(kp, VEC_STATE_DIM, IMG, NUM_ACT, HID, VEC_DIM)
    prep = prepare_params(params)                                   # one-time weight re-layout

    state_vec = jax.random.normal(kv, (B, VEC_STATE_DIM), jnp.float32)
    state_img = jax.random.normal(ki, (B, 3, IMG, IMG), jnp.float32)  # NCHW, as PyTorch expects
    action = jax.random.normal(ka, (B, NUM_ACT), jnp.float32)

    out = vec_q_network_forward(prep, state_vec, state_img, action, vec_dim=VEC_DIM)
    out = jax.block_until_ready(out)
    assert out.shape == (B, VEC_DIM) and out.dtype == jnp.float32

    ref = _reference_forward(params, state_vec, state_img, action)
    # tolerance sized for default (bf16-input / f32-accumulate) matmul precision
    np.testing.assert_allclose(np.asarray(out), np.asarray(ref), rtol=2e-2, atol=5e-3)

    print("KERNEL_OK")
</pallas_src>

<mosaic_0001>
module attributes {stable_mosaic.version = 11 : i64} {
  func.func @_fused_kernel(%arg0: i32, %arg1: memref<36x48xf32, #tpu.memory_space<vmem>>, %arg2: memref<2x12xf32, #tpu.memory_space<vmem>>, %arg3: memref<144x256xf32, #tpu.memory_space<vmem>>, %arg4: memref<384x256xf32, #tpu.memory_space<vmem>>, %arg5: memref<684x32xf32, #tpu.memory_space<vmem>>, %arg6: memref<5x128xf32, #tpu.memory_space<vmem>>, %arg7: memref<2x3xf32, #tpu.memory_space<vmem>>, %arg8: memref<32x128xf32, #tpu.memory_space<vmem>>, %arg9: memref<20x128xf32, #tpu.memory_space<vmem>>, %arg10: memref<16x128xf32, #tpu.memory_space<vmem>>, %arg11: memref<8x128xf32, #tpu.memory_space<vmem>>) attributes {dimension_semantics = [#tpu.dimension_semantics<arbitrary>], iteration_bounds = array<i64: 1>, scalar_prefetch = 0 : i64, scratch_operands = 4 : i64, tpu.core_type = #tpu.core_type<tc>, window_params = [{pipeline_mode = #tpu.pipeline_mode<synchronous>, transform_indices = @transform_0, window_bounds = array<i64: 36, 48>}, {pipeline_mode = #tpu.pipeline_mode<synchronous>, transform_indices = @transform_1, window_bounds = array<i64: 2, 12>}, {pipeline_mode = #tpu.pipeline_mode<synchronous>, transform_indices = @transform_2, window_bounds = array<i64: 144, 256>}, {pipeline_mode = #tpu.pipeline_mode<synchronous>, transform_indices = @transform_3, window_bounds = array<i64: 384, 256>}, {pipeline_mode = #tpu.pipeline_mode<synchronous>, transform_indices = @transform_4, window_bounds = array<i64: 684, 32>}, {pipeline_mode = #tpu.pipeline_mode<synchronous>, transform_indices = @transform_5, window_bounds = array<i64: 5, 128>}, {pipeline_mode = #tpu.pipeline_mode<synchronous>, transform_indices = @transform_6, window_bounds = array<i64: 2, 3>}]} {
    %c0 = arith.constant 0 : index
    %c0_0 = arith.constant 0 : index
    %0 = vector.load %arg6[%c0, %c0_0] : memref<5x128xf32, #tpu.memory_space<vmem>>, vector<1x128xf32>
    %c1 = arith.constant 1 : index
    %c0_1 = arith.constant 0 : index
    %1 = vector.load %arg6[%c1, %c0_1] : memref<5x128xf32, #tpu.memory_space<vmem>>, vector<1x128xf32>
    %c2 = arith.constant 2 : index
    %c0_2 = arith.constant 0 : index
    %2 = vector.load %arg6[%c2, %c0_2] : memref<5x128xf32, #tpu.memory_space<vmem>>, vector<1x16xf32>
    %c2_3 = arith.constant 2 : index
    %c16 = arith.constant 16 : index
    %3 = vector.load %arg6[%c2_3, %c16] : memref<5x128xf32, #tpu.memory_space<vmem>>, vector<1x16xf32>
    %c2_4 = arith.constant 2 : index
    %c32 = arith.constant 32 : index
    %4 = vector.load %arg6[%c2_4, %c32] : memref<5x128xf32, #tpu.memory_space<vmem>>, vector<1x32xf32>
    %c2_5 = arith.constant 2 : index
    %c64 = arith.constant 64 : index
    %5 = vector.load %arg6[%c2_5, %c64] : memref<5x128xf32, #tpu.memory_space<vmem>>, vector<1x32xf32>
    %c3 = arith.constant 3 : index
    %c0_6 = arith.constant 0 : index
    %6 = vector.load %arg6[%c3, %c0_6] : memref<5x128xf32, #tpu.memory_space<vmem>>, vector<1x32xf32>
    %c3_7 = arith.constant 3 : index
    %c32_8 = arith.constant 32 : index
    %7 = vector.load %arg6[%c3_7, %c32_8] : memref<5x128xf32, #tpu.memory_space<vmem>>, vector<1x32xf32>
    %c3_9 = arith.constant 3 : index
    %c64_10 = arith.constant 64 : index
    %8 = vector.load %arg6[%c3_9, %c64_10] : memref<5x128xf32, #tpu.memory_space<vmem>>, vector<1x32xf32>
    %c3_11 = arith.constant 3 : index
    %c96 = arith.constant 96 : index
    %9 = vector.load %arg6[%c3_11, %c96] : memref<5x128xf32, #tpu.memory_space<vmem>>, vector<1x32xf32>
    %c4 = arith.constant 4 : index
    %c0_12 = arith.constant 0 : index
    %10 = vector.load %arg6[%c4, %c0_12] : memref<5x128xf32, #tpu.memory_space<vmem>>, vector<1x32xf32>
    %c4_13 = arith.constant 4 : index
    %c32_14 = arith.constant 32 : index
    %11 = vector.load %arg6[%c4_13, %c32_14] : memref<5x128xf32, #tpu.memory_space<vmem>>, vector<1x32xf32>
    %c0_15 = arith.constant 0 : index
    %c0_16 = arith.constant 0 : index
    %12 = vector.load %arg1[%c0_15, %c0_16] : memref<36x48xf32, #tpu.memory_space<vmem>>, vector<34x48xf32>
    %c0_17 = arith.constant 0 : index
    %c0_18 = arith.constant 0 : index
    %13 = vector.load %arg3[%c0_17, %c0_18] : memref<144x256xf32, #tpu.memory_space<vmem>>, vector<48x256xf32>
    %cst = arith.constant dense<0.000000e+00> : vector<34x256xf32>
    %14 = tpu.matmul %12, %13, %cst {dimension_numbers = #tpu.dot_dimension_numbers<[1], [0], [0], [1], [0, 0, 1, 1], [], []>} : vector<34x48xf32>, vector<48x256xf32>, vector<34x256xf32> -> vector<34x256xf32>
    %c1_19 = arith.constant 1 : index
    %c0_20 = arith.constant 0 : index
    %15 = vector.load %arg1[%c1_19, %c0_20] : memref<36x48xf32, #tpu.memory_space<vmem>>, vector<34x48xf32>
    %c48 = arith.constant 48 : index
    %c0_21 = arith.constant 0 : index
    %16 = vector.load %arg3[%c48, %c0_21] : memref<144x256xf32, #tpu.memory_space<vmem>>, vector<48x256xf32>
    %cst_22 = arith.constant dense<0.000000e+00> : vector<34x256xf32>
    %17 = tpu.matmul %15, %16, %cst_22 {dimension_numbers = #tpu.dot_dimension_numbers<[1], [0], [0], [1], [0, 0, 1, 1], [], []>} : vector<34x48xf32>, vector<48x256xf32>, vector<34x256xf32> -> vector<34x256xf32>
    %18 = arith.addf %14, %17 : vector<34x256xf32>
    %c2_23 = arith.constant 2 : index
    %c0_24 = arith.constant 0 : index
    %19 = vector.load %arg1[%c2_23, %c0_24] : memref<36x48xf32, #tpu.memory_space<vmem>>, vector<34x48xf32>
    %c96_25 = arith.constant 96 : index
    %c0_26 = arith.constant 0 : index
    %20 = vector.load %arg3[%c96_25, %c0_26] : memref<144x256xf32, #tpu.memory_space<vmem>>, vector<48x256xf32>
    %cst_27 = arith.constant dense<0.000000e+00> : vector<34x256xf32>
    %21 = tpu.matmul %19, %20, %cst_27 {dimension_numbers = #tpu.dot_dimension_numbers<[1], [0], [0], [1], [0, 0, 1, 1], [], []>} : vector<34x48xf32>, vector<48x256xf32>, vector<34x256xf32> -> vector<34x256xf32>
    %22 = arith.addf %18, %21 : vector<34x256xf32>
    %23 = vector.extract_strided_slice %22 {offsets = [0, 0], sizes = [16, 256], strides = [1, 1]} : vector<34x256xf32> to vector<16x256xf32>
    %24 = vector.extract_strided_slice %23 {offsets = [0, 0], sizes = [16, 128], strides = [1, 1]} : vector<16x256xf32> to vector<16x128xf32>
    %25 = vector.extract_strided_slice %23 {offsets = [0, 128], sizes = [16, 128], strides = [1, 1]} : vector<16x256xf32> to vector<16x128xf32>
    %26 = arith.maximumf %24, %25 : vector<16x128xf32>
    %c0_28 = arith.constant 0 : index
    %c0_29 = arith.constant 0 : index
    %27 = vector.load %arg8[%c0_28, %c0_29] : memref<32x128xf32, #tpu.memory_space<vmem>>, vector<16x128xf32>
    tpu.vector_store %arg8[%c0_28, %c0_29], %26 {strides = array<i32>} : memref<32x128xf32, #tpu.memory_space<vmem>>, vector<16x128xf32>,
    %28 = vector.extract_strided_slice %22 {offsets = [18, 0], sizes = [16, 256], strides = [1, 1]} : vector<34x256xf32> to vector<16x256xf32>
    %29 = vector.extract_strided_slice %28 {offsets = [0, 0], sizes = [16, 128], strides = [1, 1]} : vector<16x256xf32> to vector<16x128xf32>
    %30 = vector.extract_strided_slice %28 {offsets = [0, 128], sizes = [16, 128], strides = [1, 1]} : vector<16x256xf32> to vector<16x128xf32>
    %31 = arith.maximumf %29, %30 : vector<16x128xf32>
    %c16_30 = arith.constant 16 : index
    %c0_31 = arith.constant 0 : index
    %32 = vector.load %arg8[%c16_30, %c0_31] : memref<32x128xf32, #tpu.memory_space<vmem>>, vector<16x128xf32>
    tpu.vector_store %arg8[%c16_30, %c0_31], %31 {strides = array<i32>} : memref<32x128xf32, #tpu.memory_space<vmem>>, vector<16x128xf32>,
    %c0_32 = arith.constant 0 : index
    %c0_33 = arith.constant 0 : index
    %33 = tpu.strided_load %arg8[%c0_32, %c0_33] {strides = array<i32: 2, 1>} : memref<32x128xf32, #tpu.memory_space<vmem>>, vector<16x128xf32>
    %c1_34 = arith.constant 1 : index
    %c0_35 = arith.constant 0 : index
    %34 = tpu.strided_load %arg8[%c1_34, %c0_35] {strides = array<i32: 2, 1>} : memref<32x128xf32, #tpu.memory_space<vmem>>, vector<16x128xf32>
    %35 = arith.maximumf %33, %34 : vector<16x128xf32>
    %36 = vector.broadcast %0 : vector<1x128xf32> to vector<16x128xf32>
    %37 = arith.addf %35, %36 : vector<16x128xf32>
    %cst_36 = arith.constant 0.000000e+00 : f32
    %38 = vector.broadcast %cst_36 : f32 to vector<16x128xf32>
    %39 = arith.maximumf %37, %38 : vector<16x128xf32>
    %cst_37 = arith.constant dense<0.000000e+00> : vector<128xf32>
    %40 = vector.multi_reduction <add>, %39, %cst_37 [0] : vector<16x128xf32> to vector<128xf32>
    %41 = vector.shape_cast %40 : vector<128xf32> to vector<1x128xf32>
    %42 = arith.mulf %39, %39 : vector<16x128xf32>
    %cst_38 = arith.constant dense<0.000000e+00> : vector<128xf32>
    %43 = vector.multi_reduction <add>, %42, %cst_38 [0] : vector<16x128xf32> to vector<128xf32>
    %44 = vector.shape_cast %43 : vector<128xf32> to vector<1x128xf32>
    %45 = tpu.concatenate %41, %44 in 0 : vector<1x128xf32>, vector<1x128xf32> -> vector<2x128xf32>
    %46 = tpu.iota {dimensions = array<i32: 0>} : vector<128x16xi32>
    %47 = tpu.iota {dimensions = array<i32: 1>} : vector<128x16xi32>
    %c15_i32 = arith.constant 15 : i32
    %48 = vector.broadcast %c15_i32 : i32 to vector<128x16xi32>
    %49 = arith.andi %46, %48 : vector<128x16xi32>
    %50 = arith.cmpi eq, %49, %47 : vector<128x16xi32>
    %51 = arith.extui %50 : vector<128x16xi1> to vector<128x16xi32>
    %52 = arith.sitofp %51 : vector<128x16xi32> to vector<128x16xf32>
    %cst_39 = arith.constant dense<0.000000e+00> : vector<2x16xf32>
    %53 = tpu.matmul %45, %52, %cst_39 {dimension_numbers = #tpu.dot_dimension_numbers<[1], [0], [0], [1], [0, 0, 1, 1], [], []>, precision = #tpu.contract_precision<fp32>} : vector<2x128xf32>, vector<128x16xf32>, vector<2x16xf32> -> vector<2x16xf32>
    %54 = vector.extract_strided_slice %53 {offsets = [0, 0], sizes = [1, 16], strides = [1, 1]} : vector<2x16xf32> to vector<1x16xf32>
    %cst_40 = arith.constant 7.812500e-03 : f32
    %55 = vector.broadcast %cst_40 : f32 to vector<1x16xf32>
    %56 = arith.mulf %54, %55 : vector<1x16xf32>
    %57 = vector.extract_strided_slice %53 {offsets = [1, 0], sizes = [1, 16], strides = [1, 1]} : vector<2x16xf32> to vector<1x16xf32>
    %cst_41 = arith.constant 7.812500e-03 : f32
    %58 = vector.broadcast %cst_41 : f32 to vector<1x16xf32>
    %59 = arith.mulf %57, %58 : vector<1x16xf32>
    %60 = arith.mulf %56, %56 : vector<1x16xf32>
    %61 = arith.subf %59, %60 : vector<1x16xf32>
    %cst_42 = arith.constant 0.000000e+00 : f32
    %62 = vector.broadcast %cst_42 : f32 to vector<1x16xf32>
    %63 = arith.maximumf %61, %62 : vector<1x16xf32>
    %cst_43 = arith.constant 9.99999974E-6 : f32
    %64 = vector.broadcast %cst_43 : f32 to vector<1x16xf32>
    %65 = arith.addf %63, %64 : vector<1x16xf32>
    %66 = math.rsqrt %65 : vector<1x16xf32>
    %67 = arith.mulf %2, %66 : vector<1x16xf32>
    %68 = arith.mulf %56, %67 : vector<1x16xf32>
    %69 = arith.subf %3, %68 : vector<1x16xf32>
    %70 = tpu.concatenate %67, %69 in 0 : vector<1x16xf32>, vector<1x16xf32> -> vector<2x16xf32>
    %71 = tpu.iota {dimensions = array<i32: 0>} : vector<16x128xi32>
    %72 = tpu.iota {dimensions = array<i32: 1>} : vector<16x128xi32>
    %c15_i32_44 = arith.constant 15 : i32
    %73 = vector.broadcast %c15_i32_44 : i32 to vector<16x128xi32>
    %74 = arith.andi %72, %73 : vector<16x128xi32>
    %75 = arith.cmpi eq, %74, %71 : vector<16x128xi32>
    %76 = arith.extui %75 : vector<16x128xi1> to vector<16x128xi32>
    %77 = arith.sitofp %76 : vector<16x128xi32> to vector<16x128xf32>
    %cst_45 = arith.constant dense<0.000000e+00> : vector<2x128xf32>
    %78 = tpu.matmul %70, %77, %cst_45 {dimension_numbers = #tpu.dot_dimension_numbers<[1], [0], [0], [1], [0, 0, 1, 1], [], []>, precision = #tpu.contract_precision<fp32>} : vector<2x16xf32>, vector<16x128xf32>, vector<2x128xf32> -> vector<2x128xf32>
    %79 = vector.extract_strided_slice %78 {offsets = [0, 0], sizes = [1, 128], strides = [1, 1]} : vector<2x128xf32> to vector<1x128xf32>
    %80 = vector.extract_strided_slice %78 {offsets = [1, 0], sizes = [1, 128], strides = [1, 1]} : vector<2x128xf32> to vector<1x128xf32>
    %81 = vector.broadcast %79 : vector<1x128xf32> to vector<16x128xf32>
    %82 = arith.mulf %39, %81 : vector<16x128xf32>
    %83 = vector.broadcast %80 : vector<1x128xf32> to vector<16x128xf32>
    %84 = arith.addf %82, %83 : vector<16x128xf32>
    %cst_46 = arith.constant 0.000000e+00 : f32
    %85 = vector.broadcast %cst_46 : f32 to vector<20x128xf32>
    %c0_47 = arith.constant 0 : index
    %c0_48 = arith.constant 0 : index
    %86 = vector.load %arg9[%c0_47, %c0_48] : memref<20x128xf32, #tpu.memory_space<vmem>>, vector<20x128xf32>
    tpu.vector_store %arg9[%c0_47, %c0_48], %85 {strides = array<i32>} : memref<20x128xf32, #tpu.memory_space<vmem>>, vector<20x128xf32>,
    %87 = vector.extract_strided_slice %84 {offsets = [0, 0], sizes = [8, 128], strides = [1, 1]} : vector<16x128xf32> to vector<8x128xf32>
    %c1_49 = arith.constant 1 : index
    %c0_50 = arith.constant 0 : index
    %88 = vector.load %arg9[%c1_49, %c0_50] : memref<20x128xf32, #tpu.memory_space<vmem>>, vector<8x128xf32>
    tpu.vector_store %arg9[%c1_49, %c0_50], %87 {strides = array<i32>} : memref<20x128xf32, #tpu.memory_space<vmem>>, vector<8x128xf32>,
    %89 = vector.extract_strided_slice %84 {offsets = [8, 0], sizes = [8, 128], strides = [1, 1]} : vector<16x128xf32> to vector<8x128xf32>
    %c11 = arith.constant 11 : index
    %c0_51 = arith.constant 0 : index
    %90 = vector.load %arg9[%c11, %c0_51] : memref<20x128xf32, #tpu.memory_space<vmem>>, vector<8x128xf32>
    tpu.vector_store %arg9[%c11, %c0_51], %89 {strides = array<i32>} : memref<20x128xf32, #tpu.memory_space<vmem>>, vector<8x128xf32>,
    %c0_52 = arith.constant 0 : index
    %c0_53 = arith.constant 0 : index
    %91 = vector.load %arg9[%c0_52, %c0_53] : memref<20x128xf32, #tpu.memory_space<vmem>>, vector<18x128xf32>
    %c0_54 = arith.constant 0 : index
    %c0_55 = arith.constant 0 : index
    %92 = vector.load %arg4[%c0_54, %c0_55] : memref<384x256xf32, #tpu.memory_space<vmem>>, vector<128x256xf32>
    %cst_56 = arith.constant dense<0.000000e+00> : vector<18x256xf32>
    %93 = tpu.matmul %91, %92, %cst_56 {dimension_numbers = #tpu.dot_dimension_numbers<[1], [0], [0], [1], [0, 0, 1, 1], [], []>} : vector<18x128xf32>, vector<128x256xf32>, vector<18x256xf32> -> vector<18x256xf32>
    %c1_57 = arith.constant 1 : index
    %c0_58 = arith.constant 0 : index
    %94 = vector.load %arg9[%c1_57, %c0_58] : memref<20x128xf32, #tpu.memory_space<vmem>>, vector<18x128xf32>
    %c128 = arith.constant 128 : index
    %c0_59 = arith.constant 0 : index
    %95 = vector.load %arg4[%c128, %c0_59] : memref<384x256xf32, #tpu.memory_space<vmem>>, vector<128x256xf32>
    %cst_60 = arith.constant dense<0.000000e+00> : vector<18x256xf32>
    %96 = tpu.matmul %94, %95, %cst_60 {dimension_numbers = #tpu.dot_dimension_numbers<[1], [0], [0], [1], [0, 0, 1, 1], [], []>} : vector<18x128xf32>, vector<128x256xf32>, vector<18x256xf32> -> vector<18x256xf32>
    %97 = arith.addf %93, %96 : vector<18x256xf32>
    %c2_61 = arith.constant 2 : index
    %c0_62 = arith.constant 0 : index
    %98 = vector.load %arg9[%c2_61, %c0_62] : memref<20x128xf32, #tpu.memory_space<vmem>>, vector<18x128xf32>
    %c256 = arith.constant 256 : index
    %c0_63 = arith.constant 0 : index
    %99 = vector.load %arg4[%c256, %c0_63] : memref<384x256xf32, #tpu.memory_space<vmem>>, vector<128x256xf32>
    %cst_64 = arith.constant dense<0.000000e+00> : vector<18x256xf32>
    %100 = tpu.matmul %98, %99, %cst_64 {dimension_numbers = #tpu.dot_dimension_numbers<[1], [0], [0], [1], [0, 0, 1, 1], [], []>} : vector<18x128xf32>, vector<128x256xf32>, vector<18x256xf32> -> vector<18x256xf32>
    %101 = arith.addf %97, %100 : vector<18x256xf32>
    %102 = vector.extract_strided_slice %101 {offsets = [0, 0], sizes = [8, 256], strides = [1, 1]} : vector<18x256xf32> to vector<8x256xf32>
    %103 = vector.extract_strided_slice %102 {offsets = [0, 0], sizes = [8, 128], strides = [1, 1]} : vector<8x256xf32> to vector<8x128xf32>
    %104 = vector.extract_strided_slice %102 {offsets = [0, 128], sizes = [8, 128], strides = [1, 1]} : vector<8x256xf32> to vector<8x128xf32>
    %105 = arith.maximumf %103, %104 : vector<8x128xf32>
    %c0_65 = arith.constant 0 : index
    %c0_66 = arith.constant 0 : index
    %106 = vector.load %arg10[%c0_65, %c0_66] : memref<16x128xf32, #tpu.memory_space<vmem>>, vector<8x128xf32>
    tpu.vector_store %arg10[%c0_65, %c0_66], %105 {strides = array<i32>} : memref<16x128xf32, #tpu.memory_space<vmem>>, vector<8x128xf32>,
    %107 = vector.extract_strided_slice %101 {offsets = [10, 0], sizes = [8, 256], strides = [1, 1]} : vector<18x256xf32> to vector<8x256xf32>
    %108 = vector.extract_strided_slice %107 {offsets = [0, 0], sizes = [8, 128], strides = [1, 1]} : vector<8x256xf32> to vector<8x128xf32>
    %109 = vector.extract_strided_slice %107 {offsets = [0, 128], sizes = [8, 128], strides = [1, 1]} : vector<8x256xf32> to vector<8x128xf32>
    %110 = arith.maximumf %108, %109 : vector<8x128xf32>
    %c8 = arith.constant 8 : index
    %c0_67 = arith.constant 0 : index
    %111 = vector.load %arg10[%c8, %c0_67] : memref<16x128xf32, #tpu.memory_space<vmem>>, vector<8x128xf32>
    tpu.vector_store %arg10[%c8, %c0_67], %110 {strides = array<i32>} : memref<16x128xf32, #tpu.memory_space<vmem>>, vector<8x128xf32>,
    %c0_68 = arith.constant 0 : index
    %c0_69 = arith.constant 0 : index
    %112 = tpu.strided_load %arg10[%c0_68, %c0_69] {strides = array<i32: 2, 1>} : memref<16x128xf32, #tpu.memory_space<vmem>>, vector<8x128xf32>
    %c1_70 = arith.constant 1 : index
    %c0_71 = arith.constant 0 : index
    %113 = tpu.strided_load %arg10[%c1_70, %c0_71] {strides = array<i32: 2, 1>} : memref<16x128xf32, #tpu.memory_space<vmem>>, vector<8x128xf32>
    %114 = arith.maximumf %112, %113 : vector<8x128xf32>
    %115 = vector.broadcast %1 : vector<1x128xf32> to vector<8x128xf32>
    %116 = arith.addf %114, %115 : vector<8x128xf32>
    %cst_72 = arith.constant 0.000000e+00 : f32
    %117 = vector.broadcast %cst_72 : f32 to vector<8x128xf32>
    %118 = arith.maximumf %116, %117 : vector<8x128xf32>
    %cst_73 = arith.constant dense<0.000000e+00> : vector<128xf32>
    %119 = vector.multi_reduction <add>, %118, %cst_73 [0] : vector<8x128xf32> to vector<128xf32>
    %120 = vector.shape_cast %119 : vector<128xf32> to vector<1x128xf32>
    %121 = arith.mulf %118, %118 : vector<8x128xf32>
    %cst_74 = arith.constant dense<0.000000e+00> : vector<128xf32>
    %122 = vector.multi_reduction <add>, %121, %cst_74 [0] : vector<8x128xf32> to vector<128xf32>
    %123 = vector.shape_cast %122 : vector<128xf32> to vector<1x128xf32>
    %124 = tpu.concatenate %120, %123 in 0 : vector<1x128xf32>, vector<1x128xf32> -> vector<2x128xf32>
    %125 = tpu.iota {dimensions = array<i32: 0>} : vector<128x32xi32>
    %126 = tpu.iota {dimensions = array<i32: 1>} : vector<128x32xi32>
    %c31_i32 = arith.constant 31 : i32
    %127 = vector.broadcast %c31_i32 : i32 to vector<128x32xi32>
    %128 = arith.andi %125, %127 : vector<128x32xi32>
    %129 = arith.cmpi eq, %128, %126 : vector<128x32xi32>
    %130 = arith.extui %129 : vector<128x32xi1> to vector<128x32xi32>
    %131 = arith.sitofp %130 : vector<128x32xi32> to vector<128x32xf32>
    %cst_75 = arith.constant dense<0.000000e+00> : vector<2x32xf32>
    %132 = tpu.matmul %124, %131, %cst_75 {dimension_numbers = #tpu.dot_dimension_numbers<[1], [0], [0], [1], [0, 0, 1, 1], [], []>, precision = #tpu.contract_precision<fp32>} : vector<2x128xf32>, vector<128x32xf32>, vector<2x32xf32> -> vector<2x32xf32>
    %133 = vector.extract_strided_slice %132 {offsets = [0, 0], sizes = [1, 32], strides = [1, 1]} : vector<2x32xf32> to vector<1x32xf32>
    %cst_76 = arith.constant 3.125000e-02 : f32
    %134 = vector.broadcast %cst_76 : f32 to vector<1x32xf32>
    %135 = arith.mulf %133, %134 : vector<1x32xf32>
    %136 = vector.extract_strided_slice %132 {offsets = [1, 0], sizes = [1, 32], strides = [1, 1]} : vector<2x32xf32> to vector<1x32xf32>
    %cst_77 = arith.constant 3.125000e-02 : f32
    %137 = vector.broadcast %cst_77 : f32 to vector<1x32xf32>
    %138 = arith.mulf %136, %137 : vector<1x32xf32>
    %139 = arith.mulf %135, %135 : vector<1x32xf32>
    %140 = arith.subf %138, %139 : vector<1x32xf32>
    %cst_78 = arith.constant 0.000000e+00 : f32
    %141 = vector.broadcast %cst_78 : f32 to vector<1x32xf32>
    %142 = arith.maximumf %140, %141 : vector<1x32xf32>
    %cst_79 = arith.constant 9.99999974E-6 : f32
    %143 = vector.broadcast %cst_79 : f32 to vector<1x32xf32>
    %144 = arith.addf %142, %143 : vector<1x32xf32>
    %145 = math.rsqrt %144 : vector<1x32xf32>
    %146 = arith.mulf %4, %145 : vector<1x32xf32>
    %147 = arith.mulf %135, %146 : vector<1x32xf32>
    %148 = arith.subf %5, %147 : vector<1x32xf32>
    %149 = tpu.concatenate %146, %148 in 0 : vector<1x32xf32>, vector<1x32xf32> -> vector<2x32xf32>
    %150 = tpu.iota {dimensions = array<i32: 0>} : vector<32x128xi32>
    %151 = tpu.iota {dimensions = array<i32: 1>} : vector<32x128xi32>
    %c31_i32_80 = arith.constant 31 : i32
    %152 = vector.broadcast %c31_i32_80 : i32 to vector<32x128xi32>
    %153 = arith.andi %151, %152 : vector<32x128xi32>
    %154 = arith.cmpi eq, %153, %150 : vector<32x128xi32>
    %155 = arith.extui %154 : vector<32x128xi1> to vector<32x128xi32>
    %156 = arith.sitofp %155 : vector<32x128xi32> to vector<32x128xf32>
    %cst_81 = arith.constant dense<0.000000e+00> : vector<2x128xf32>
    %157 = tpu.matmul %149, %156, %cst_81 {dimension_numbers = #tpu.dot_dimension_numbers<[1], [0], [0], [1], [0, 0, 1, 1], [], []>, precision = #tpu.contract_precision<fp32>} : vector<2x32xf32>, vector<32x128xf32>, vector<2x128xf32> -> vector<2x128xf32>
    %158 = vector.extract_strided_slice %157 {offsets = [0, 0], sizes = [1, 128], strides = [1, 1]} : vector<2x128xf32> to vector<1x128xf32>
    %159 = vector.extract_strided_slice %157 {offsets = [1, 0], sizes = [1, 128], strides = [1, 1]} : vector<2x128xf32> to vector<1x128xf32>
    %160 = vector.broadcast %158 : vector<1x128xf32> to vector<8x128xf32>
    %161 = arith.mulf %118, %160 : vector<8x128xf32>
    %162 = vector.broadcast %159 : vector<1x128xf32> to vector<8x128xf32>
    %163 = arith.addf %161, %162 : vector<8x128xf32>
    %c0_82 = arith.constant 0 : index
    %c0_83 = arith.constant 0 : index
    %164 = vector.load %arg11[%c0_82, %c0_83] : memref<8x128xf32, #tpu.memory_space<vmem>>, vector<8x128xf32>
    tpu.vector_store %arg11[%c0_82, %c0_83], %163 {strides = array<i32>} : memref<8x128xf32, #tpu.memory_space<vmem>>, vector<8x128xf32>,
    %c0_84 = arith.constant 0 : index
    %c0_85 = arith.constant 0 : index
    %165 = tpu.strided_load %arg11[%c0_84, %c0_85] {strides = array<i32: 4, 1>} : memref<8x128xf32, #tpu.memory_space<vmem>>, vector<2x128xf32>
    %c0_86 = arith.constant 0 : index
    %c0_87 = arith.constant 0 : index
    %166 = vector.load %arg5[%c0_86, %c0_87] : memref<684x32xf32, #tpu.memory_space<vmem>>, vector<128x32xf32>
    %cst_88 = arith.constant dense<0.000000e+00> : vector<2x32xf32>
    %167 = tpu.matmul %165, %166, %cst_88 {dimension_numbers = #tpu.dot_dimension_numbers<[1], [0], [0], [1], [0, 0, 1, 1], [], []>} : vector<2x128xf32>, vector<128x32xf32>, vector<2x32xf32> -> vector<2x32xf32>
    %c1_89 = arith.constant 1 : index
    %c0_90 = arith.constant 0 : index
    %168 = tpu.strided_load %arg11[%c1_89, %c0_90] {strides = array<i32: 4, 1>} : memref<8x128xf32, #tpu.memory_space<vmem>>, vector<2x128xf32>
    %c128_91 = arith.constant 128 : index
    %c0_92 = arith.constant 0 : index
    %169 = vector.load %arg5[%c128_91, %c0_92] : memref<684x32xf32, #tpu.memory_space<vmem>>, vector<128x32xf32>
    %cst_93 = arith.constant dense<0.000000e+00> : vector<2x32xf32>
    %170 = tpu.matmul %168, %169, %cst_93 {dimension_numbers = #tpu.dot_dimension_numbers<[1], [0], [0], [1], [0, 0, 1, 1], [], []>} : vector<2x128xf32>, vector<128x32xf32>, vector<2x32xf32> -> vector<2x32xf32>
    %171 = arith.addf %167, %170 : vector<2x32xf32>
    %c2_94 = arith.constant 2 : index
    %c0_95 = arith.constant 0 : index
    %172 = tpu.strided_load %arg11[%c2_94, %c0_95] {strides = array<i32: 4, 1>} : memref<8x128xf32, #tpu.memory_space<vmem>>, vector<2x128xf32>
    %c256_96 = arith.constant 256 : index
    %c0_97 = arith.constant 0 : index
    %173 = vector.load %arg5[%c256_96, %c0_97] : memref<684x32xf32, #tpu.memory_space<vmem>>, vector<128x32xf32>
    %cst_98 = arith.constant dense<0.000000e+00> : vector<2x32xf32>
    %174 = tpu.matmul %172, %173, %cst_98 {dimension_numbers = #tpu.dot_dimension_numbers<[1], [0], [0], [1], [0, 0, 1, 1], [], []>} : vector<2x128xf32>, vector<128x32xf32>, vector<2x32xf32> -> vector<2x32xf32>
    %175 = arith.addf %171, %174 : vector<2x32xf32>
    %c3_99 = arith.constant 3 : index
    %c0_100 = arith.constant 0 : index
    %176 = tpu.strided_load %arg11[%c3_99, %c0_100] {strides = array<i32: 4, 1>} : memref<8x128xf32, #tpu.memory_space<vmem>>, vector<2x128xf32>
    %c384 = arith.constant 384 : index
    %c0_101 = arith.constant 0 : index
    %177 = vector.load %arg5[%c384, %c0_101] : memref<684x32xf32, #tpu.memory_space<vmem>>, vector<128x32xf32>
    %cst_102 = arith.constant dense<0.000000e+00> : vector<2x32xf32>
    %178 = tpu.matmul %176, %177, %cst_102 {dimension_numbers = #tpu.dot_dimension_numbers<[1], [0], [0], [1], [0, 0, 1, 1], [], []>} : vector<2x128xf32>, vector<128x32xf32>, vector<2x32xf32> -> vector<2x32xf32>
    %179 = arith.addf %175, %178 : vector<2x32xf32>
    %180 = vector.broadcast %6 : vector<1x32xf32> to vector<2x32xf32>
    %181 = arith.addf %179, %180 : vector<2x32xf32>
    %c0_103 = arith.constant 0 : index
    %c0_104 = arith.constant 0 : index
    %182 = vector.load %arg2[%c0_103, %c0_104] : memref<2x12xf32, #tpu.memory_space<vmem>>, vector<2x8xf32>
    %c0_105 = arith.constant 0 : index
    %c8_106 = arith.constant 8 : index
    %183 = vector.load %arg2[%c0_105, %c8_106] : memref<2x12xf32, #tpu.memory_space<vmem>>, vector<2x4xf32>
    %c512 = arith.constant 512 : index
    %c0_107 = arith.constant 0 : index
    %184 = vector.load %arg5[%c512, %c0_107] : memref<684x32xf32, #tpu.memory_space<vmem>>, vector<8x32xf32>
    %cst_108 = arith.constant dense<0.000000e+00> : vector<2x32xf32>
    %185 = tpu.matmul %182, %184, %cst_108 {dimension_numbers = #tpu.dot_dimension_numbers<[1], [0], [0], [1], [0, 0, 1, 1], [], []>} : vector<2x8xf32>, vector<8x32xf32>, vector<2x32xf32> -> vector<2x32xf32>
    %186 = vector.broadcast %7 : vector<1x32xf32> to vector<2x32xf32>
    %187 = arith.addf %185, %186 : vector<2x32xf32>
    %cst_109 = arith.constant 0.000000e+00 : f32
    %188 = vector.broadcast %cst_109 : f32 to vector<2x32xf32>
    %189 = arith.maximumf %187, %188 : vector<2x32xf32>
    %190 = tpu.concatenate %189, %181, %183 in 1 : vector<2x32xf32>, vector<2x32xf32>, vector<2x4xf32> -> vector<2x68xf32>
    %c616 = arith.constant 616 : index
    %c0_110 = arith.constant 0 : index
    %191 = vector.load %arg5[%c616, %c0_110] : memref<684x32xf32, #tpu.memory_space<vmem>>, vector<68x32xf32>
    %cst_111 = arith.constant dense<0.000000e+00> : vector<2x32xf32>
    %192 = tpu.matmul %190, %191, %cst_111 {dimension_numbers = #tpu.dot_dimension_numbers<[1], [0], [0], [1], [0, 0, 1, 1], [], []>} : vector<2x68xf32>, vector<68x32xf32>, vector<2x32xf32> -> vector<2x32xf32>
    %193 = vector.broadcast %8 : vector<1x32xf32> to vector<2x32xf32>
    %194 = arith.addf %192, %193 : vector<2x32xf32>
    %cst_112 = arith.constant 0.000000e+00 : f32
    %195 = vector.broadcast %cst_112 : f32 to vector<2x32xf32>
    %196 = arith.maximumf %194, %195 : vector<2x32xf32>
    %c520 = arith.constant 520 : index
    %c0_113 = arith.constant 0 : index
    %197 = vector.load %arg5[%c520, %c0_113] : memref<684x32xf32, #tpu.memory_space<vmem>>, vector<32x32xf32>
    %cst_114 = arith.constant dense<0.000000e+00> : vector<2x32xf32>
    %198 = tpu.matmul %196, %197, %cst_114 {dimension_numbers = #tpu.dot_dimension_numbers<[1], [0], [0], [1], [0, 0, 1, 1], [], []>} : vector<2x32xf32>, vector<32x32xf32>, vector<2x32xf32> -> vector<2x32xf32>
    %199 = vector.broadcast %9 : vector<1x32xf32> to vector<2x32xf32>
    %200 = arith.addf %198, %199 : vector<2x32xf32>
    %cst_115 = arith.constant 0.000000e+00 : f32
    %201 = vector.broadcast %cst_115 : f32 to vector<2x32xf32>
    %202 = arith.maximumf %200, %201 : vector<2x32xf32>
    %c552 = arith.constant 552 : index
    %c0_116 = arith.constant 0 : index
    %203 = vector.load %arg5[%c552, %c0_116] : memref<684x32xf32, #tpu.memory_space<vmem>>, vector<32x32xf32>
    %cst_117 = arith.constant dense<0.000000e+00> : vector<2x32xf32>
    %204 = tpu.matmul %202, %203, %cst_117 {dimension_numbers = #tpu.dot_dimension_numbers<[1], [0], [0], [1], [0, 0, 1, 1], [], []>} : vector<2x32xf32>, vector<32x32xf32>, vector<2x32xf32> -> vector<2x32xf32>
    %205 = vector.broadcast %10 : vector<1x32xf32> to vector<2x32xf32>
    %206 = arith.addf %204, %205 : vector<2x32xf32>
    %cst_118 = arith.constant 0.000000e+00 : f32
    %207 = vector.broadcast %cst_118 : f32 to vector<2x32xf32>
    %208 = arith.maximumf %206, %207 : vector<2x32xf32>
    %c584 = arith.constant 584 : index
    %c0_119 = arith.constant 0 : index
    %209 = vector.load %arg5[%c584, %c0_119] : memref<684x32xf32, #tpu.memory_space<vmem>>, vector<32x32xf32>
    %cst_120 = arith.constant dense<0.000000e+00> : vector<2x32xf32>
    %210 = tpu.matmul %208, %209, %cst_120 {dimension_numbers = #tpu.dot_dimension_numbers<[1], [0], [0], [1], [0, 0, 1, 1], [], []>} : vector<2x32xf32>, vector<32x32xf32>, vector<2x32xf32> -> vector<2x32xf32>
    %211 = vector.broadcast %11 : vector<1x32xf32> to vector<2x32xf32>
    %212 = arith.addf %210, %211 : vector<2x32xf32>
    %213 = vector.extract_strided_slice %212 {offsets = [0, 0], sizes = [2, 3], strides = [1, 1]} : vector<2x32xf32> to vector<2x3xf32>
    %c0_121 = arith.constant 0 : index
    %c0_122 = arith.constant 0 : index
    %214 = vector.load %arg7[%c0_121, %c0_122] : memref<2x3xf32, #tpu.memory_space<vmem>>, vector<2x3xf32>
    tpu.vector_store %arg7[%c0_121, %c0_122], %213 {strides = array<i32>} : memref<2x3xf32, #tpu.memory_space<vmem>>, vector<2x3xf32>,
    return
  }
  func.func @transform_0(%arg0: i32) -> (i32, i32) {
    %c0_i32 = arith.constant 0 : i32
    %c0_i32_0 = arith.constant 0 : i32
    %c0_i32_1 = arith.constant 0 : i32
    return %c0_i32, %c0_i32_0 : i32, i32
  }
  func.func @transform_1(%arg0: i32) -> (i32, i32) {
    %c0_i32 = arith.constant 0 : i32
    %c0_i32_0 = arith.constant 0 : i32
    %c0_i32_1 = arith.constant 0 : i32
    return %c0_i32, %c0_i32_0 : i32, i32
  }
  func.func @transform_2(%arg0: i32) -> (i32, i32) {
    %c0_i32 = arith.constant 0 : i32
    %c0_i32_0 = arith.constant 0 : i32
    %c0_i32_1 = arith.constant 0 : i32
    return %c0_i32, %c0_i32_0 : i32, i32
  }
  func.func @transform_3(%arg0: i32) -> (i32, i32) {
    %c0_i32 = arith.constant 0 : i32
    %c0_i32_0 = arith.constant 0 : i32
    %c0_i32_1 = arith.constant 0 : i32
    return %c0_i32, %c0_i32_0 : i32, i32
  }
  func.func @transform_4(%arg0: i32) -> (i32, i32) {
    %c0_i32 = arith.constant 0 : i32
    %c0_i32_0 = arith.constant 0 : i32
    %c0_i32_1 = arith.constant 0 : i32
    return %c0_i32, %c0_i32_0 : i32, i32
  }
  func.func @transform_5(%arg0: i32) -> (i32, i32) {
    %c0_i32 = arith.constant 0 : i32
    %c0_i32_0 = arith.constant 0 : i32
    %c0_i32_1 = arith.constant 0 : i32
    return %c0_i32, %c0_i32_0 : i32, i32
  }
  func.func @transform_6(%arg0: i32) -> (i32, i32) {
    %c0_i32 = arith.constant 0 : i32
    %c0_i32_0 = arith.constant 0 : i32
    %c0_i32_1 = arith.constant 0 : i32
    return %c0_i32, %c0_i32_0 : i32, i32
  }
}

</mosaic_0001>

<llo_original>
// kernel: vec_q_network_forward.1
$region0: #{vec_q_network_forward.1}
  #allocation0 [shape = 'u32[]', space=smem, size = 0x4, offset = 0x4, fixed_abs, tag = 'smem constant byte address 0x4 - core index']
  #allocation1 [shape = 'u32[144,128]{1,0:T(1,128)}', space=vmem, size = 0x12000, scoped, tag = 'internal scratch']
  #allocation2 [shape = 'f32[32,128]{1,0:T(8,128)}', space=vmem, size = 0x4000, scoped, tag = 'scratch operand']
  #allocation3 [shape = 'f32[20,128]{1,0:T(8,128)}', space=vmem, size = 0x3000, scoped, tag = 'scratch operand']
  #allocation4 [shape = 'f32[16,128]{1,0:T(8,128)}', space=vmem, size = 0x2000, scoped, tag = 'scratch operand']
  #allocation5 [shape = 'f32[8,128]{1,0:T(8,128)}', space=vmem, size = 0x1000, scoped, tag = 'scratch operand']
  %s0 = inlined_call_operand.vmem [shape: f32[36,48], index: 0, kind: input, shape index: {}]
  %s1 = inlined_call_operand.vmem [shape: f32[2,12], index: 1, kind: input, shape index: {}]
  %s2 = inlined_call_operand.vmem [shape: f32[144,256], index: 2, kind: input, shape index: {}]
  %s3 = inlined_call_operand.vmem [shape: f32[384,256], index: 3, kind: input, shape index: {}]
  %s4 = inlined_call_operand.vmem [shape: f32[684,32], index: 4, kind: input, shape index: {}]
  %s5 = inlined_call_operand.vmem [shape: f32[5,128], index: 5, kind: input, shape index: {}]
  %s6 = inlined_call_operand.hbm [shape: f32[2,3], index: 6, kind: output, shape index: {}]
  %s7 = sld [smem:[#allocation0]]
  $region34: #{vec_q_network_forward.1} parent=0
    _
  %s9 = ssub.s32 1, %s7
  %s10 = scalar_select 0, %s9, %s7
  $region1: #{vec_q_network_forward.1} parent=0
    #allocation6 [shape = 'u8[1024]{0}', space=vmem, size = 0x400, scoped, tag = 'output window, operand 0, single buffered']
    #allocation7 [shape = 's32[1]{0}', space=sflag, size = 0x4, scoped, tag = 'scoped memory for vec_q_network_forward.1']
    %11 = vsyncpa [#allocation7], 0
    // Predicated region
    $region2: #{vec_q_network_forward.1} parent=1 // pred_check
      _
    $region3: #{vec_q_network_forward.1} parent=1 // pred_check_branch
      %13 = sbr.rel (0) target = $region5
    $region4: #{vec_q_network_forward.1} parent=1 // pred_region
      _
    $region5: #{vec_q_network_forward.1} parent=1 // pred_fallthru
      _
    // Predicated region
    $region6: #{vec_q_network_forward.1} parent=1 // pred_check
      _
    $region7: #{vec_q_network_forward.1} parent=1 // pred_check_branch
      %15 = sbr.rel (0) target = $region9
    $region8: #{vec_q_network_forward.1} parent=1 // pred_region
      _
    $region9: #{vec_q_network_forward.1} parent=1 // pred_fallthru
      _
    // Predicated region
    $region10: #{vec_q_network_forward.1} parent=1 // pred_check
      _
    $region11: #{vec_q_network_forward.1} parent=1 // pred_check_branch
      %17 = sbr.rel (0) target = $region13
    $region12: #{vec_q_network_forward.1} parent=1 // pred_region
      _
    $region13: #{vec_q_network_forward.1} parent=1 // pred_fallthru
      _
    // Predicated region
    $region14: #{vec_q_network_forward.1} parent=1 // pred_check
      _
    $region15: #{vec_q_network_forward.1} parent=1 // pred_check_branch
      %19 = sbr.rel (0) target = $region17
    $region16: #{vec_q_network_forward.1} parent=1 // pred_region
      _
    $region17: #{vec_q_network_forward.1} parent=1 // pred_fallthru
      _
    // Predicated region
    $region18: #{vec_q_network_forward.1} parent=1 // pred_check
      _
    $region19: #{vec_q_network_forward.1} parent=1 // pred_check_branch
      %21 = sbr.rel (0) target = $region21
    $region20: #{vec_q_network_forward.1} parent=1 // pred_region
      _
    $region21: #{vec_q_network_forward.1} parent=1 // pred_fallthru
      _
    // Predicated region
    $region22: #{vec_q_network_forward.1} parent=1 // pred_check
      _
    $region23: #{vec_q_network_forward.1} parent=1 // pred_check_branch
      %23 = sbr.rel (0) target = $region25
    $region24: #{vec_q_network_forward.1} parent=1 // pred_region
      _
    $region25: #{vec_q_network_forward.1} parent=1 // pred_fallthru
      _
    %v24 = vld [vmem:[%s5] sm:$0x1]
    %v25 = vld [vmem:[%s5 + $0x1] sm:$0x1]
    %v26 = vld [vmem:[%s5 + $0x2] sm:$0x1]
    %v27 = vld [vmem:[%s5 + $0x3] sm:$0x1]
    %v28 = vld [vmem:[%s5 + $0x4] sm:$0x1]
    %v29 = vld [vmem:[%s0] sm:$0xff]
    %v30 = vld [vmem:[%s0 + $0x8] sm:$0xff]
    %v31 = vld [vmem:[%s0 + $0x10] sm:$0xff]
    %v32 = vld [vmem:[%s0 + $0x18] sm:$0xff]
    %v33 = vld [vmem:[%s0 + $0x20] sm:$0x3]
    %v34 = vld [vmem:[%s2] sm:$0xff]
    %v35 = vld [vmem:[%s2 + $0x8] sm:$0xff]
    %v36 = vld [vmem:[%s2 + $0x10] sm:$0xff]
    %v37 = vld [vmem:[%s2 + $0x18] sm:$0xff]
    %v38 = vld [vmem:[%s2 + $0x20] sm:$0xff]
    %v39 = vld [vmem:[%s2 + $0x28] sm:$0xff]
    %v40 = vld [vmem:[%s2 + $0x30] sm:$0xff]
    %v41 = vld [vmem:[%s2 + $0x38] sm:$0xff]
    %v42 = vld [vmem:[%s2 + $0x40] sm:$0xff]
    %v43 = vld [vmem:[%s2 + $0x48] sm:$0xff]
    %v44 = vld [vmem:[%s2 + $0x50] sm:$0xff]
    %v45 = vld [vmem:[%s2 + $0x58] sm:$0xff]
    %v46 = vld [vmem:[%s0 + $0x1] sm:$0xff]
    %v47 = vld [vmem:[%s0 + $0x9] sm:$0xff]
    %v48 = vld [vmem:[%s0 + $0x11] sm:$0xff]
    %v49 = vld [vmem:[%s0 + $0x19] sm:$0xff]
    %v50 = vld [vmem:[%s0 + $0x21] sm:$0x3]
    %v51 = vld [vmem:[%s2 + $0x60] sm:$0xff]
    %v52 = vld [vmem:[%s2 + $0x68] sm:$0xff]
    %v53 = vld [vmem:[%s2 + $0x70] sm:$0xff]
    %v54 = vld [vmem:[%s2 + $0x78] sm:$0xff]
    %v55 = vld [vmem:[%s2 + $0x80] sm:$0xff]
    %v56 = vld [vmem:[%s2 + $0x88] sm:$0xff]
    %v57 = vld [vmem:[%s2 + $0x90] sm:$0xff]
    %v58 = vld [vmem:[%s2 + $0x98] sm:$0xff]
    %v59 = vld [vmem:[%s2 + $0xa0] sm:$0xff]
    %v60 = vld [vmem:[%s2 + $0xa8] sm:$0xff]
    %v61 = vld [vmem:[%s2 + $0xb0] sm:$0xff]
    %v62 = vld [vmem:[%s2 + $0xb8] sm:$0xff]
    %vm63 = vcmask 392192
    %v65 = vsel %vm63, %v46, 0
    %v68 = vsel %vm63, %v47, 0
    %v71 = vsel %vm63, %v48, 0
    %v74 = vsel %vm63, %v49, 0
    %v77 = vsel %vm63, %v50, 0
    %79 = vmatprep.subr.mxu0 %v52
    %80 = vmatpush1.msra.mxu0 %v51
    %81 = vmatprep.subr.mxu0 %v54
    %82 = vmatpush1.msra.mxu0 %v53
    %83 = vmatprep.subr.mxu0 %v56
    %84 = vmatpush1.msra.mxu0 %v55
    %85 = vmatprep.subr.mxu0 %v58
    %86 = vmatpush1.msra.mxu0 %v57
    %87 = vmatprep.subr.mxu0 %v60
    %88 = vmatpush1.msra.mxu0 %v59
    %89 = vmatprep.subr.mxu0 %v62
    %90 = vmatpush1.msra.mxu0 %v61
    %91 = vmatprep.subr.mxu0 0.0
    %92 = vmatpush1.msra.mxu0 0.0
    %93 = vmatprep.subr.mxu0 0.0
    %94 = vmatpush1.msra.mxu0 0.0
    %95 = vmatprep.subr.mxu0 0.0
    %96 = vmatpush1.msra.mxu0 0.0
    %97 = vmatprep.subr.mxu0 0.0
    %98 = vmatpush1.msra.mxu0 0.0
    %99 = vmatprep.subr.mxu0 0.0
    %100 = vmatpush1.msra.mxu0 0.0
    %101 = vmatprep.subr.mxu0 0.0
    %102 = vmatpush1.msra.mxu0 0.0
    %103 = vmatprep.subr.mxu0 0.0
    %104 = vmatpush1.msra.mxu0 0.0
    %105 = vmatprep.subr.mxu0 0.0
    %106 = vmatpush1.msra.mxu0 0.0
    %107 = vmatprep.subr.mxu0 0.0
    %108 = vmatpush1.msra.mxu0 0.0
    %109 = vmatprep.subr.mxu0 0.0
    %110 = vmatpush1.msra.mxu0 0.0
    %111 = vmatprep.subr.mxu0 0.0
    %112 = vmatpush1.msra.mxu0 0.0
    %113 = vmatprep.subr.mxu0 0.0
    %114 = vmatpush1.msra.mxu0 0.0
    %115 = vmatprep.subr.mxu0 0.0
    %116 = vmatpush1.msra.mxu0 0.0
    %117 = vmatprep.subr.mxu0 0.0
    %118 = vmatpush1.msra.mxu0 0.0
    %119 = vmatprep.subr.mxu0 0.0
    %120 = vmatpush1.msra.mxu0 0.0
    %121 = vmatprep.subr.mxu0 0.0
    %122 = vmatpush1.msra.mxu0 0.0
    %123 = vmatprep.subr.mxu0 0.0
    %124 = vmatpush1.msra.mxu0 0.0
    %125 = vmatprep.subr.mxu0 0.0
    %126 = vmatpush1.msra.mxu0 0.0
    %127 = vmatprep.subr.mxu0 0.0
    %128 = vmatpush1.msra.mxu0 0.0
    %129 = vmatprep.subr.mxu0 0.0
    %130 = vmatpush1.msra.mxu0 0.0
    %131 = vmatprep.subr.mxu0 0.0
    %132 = vmatpush1.msra.mxu0 0.0
    %133 = vmatprep.subr.mxu0 0.0
    %134 = vmatpush1.msra.mxu0 0.0
    %135 = vmatprep.subr.mxu0 0.0
    %136 = vmatpush1.msra.mxu0 0.0
    %137 = vmatprep.subr.mxu0 0.0
    %138 = vmatpush1.msra.mxu0 0.0
    %139 = vmatprep.subr.mxu0 0.0
    %140 = vmatpush1.msra.mxu0 0.0
    %141 = vmatprep.subr.mxu0 0.0
    %142 = vmatpush1.msra.mxu0 0.0
    %143 = vmatprep.mubr.f32.mxu0 0.0
    %144 = vmatmul.mubr.f32.gmra.mrb[0].mxu0 %v65
    %v145 = vpop.f32.mrb[0].mxu0
    %v146 = vadd.f32 0.0, %v145
    %v147 = vpop.f32.mrb[0].mxu0
    %v148 = vadd.f32 0.0, %v147
    %149 = vmatprep.mubr.f32.mxu0 0.0
    %150 = vmatmul.mubr.f32.gmra.mrb[0].mxu0 %v68
    %v151 = vpop.f32.mrb[0].mxu0
    %v152 = vadd.f32 0.0, %v151
    %v153 = vpop.f32.mrb[0].mxu0
    %v154 = vadd.f32 0.0, %v153
    %155 = vmatprep.mubr.f32.mxu0 0.0
    %156 = vmatmul.mubr.f32.gmra.mrb[0].mxu0 %v71
    %v157 = vpop.f32.mrb[0].mxu0
    %v158 = vadd.f32 0.0, %v157
    %v159 = vpop.f32.mrb[0].mxu0
    %v160 = vadd.f32 0.0, %v159
    %161 = vmatprep.mubr.f32.mxu0 0.0
    %162 = vmatmul.mubr.f32.gmra.mrb[0].mxu0 %v74
    %v163 = vpop.f32.mrb[0].mxu0
    %v164 = vadd.f32 0.0, %v163
    %v165 = vpop.f32.mrb[0].mxu0
    %v166 = vadd.f32 0.0, %v165
    %167 = vmatprep.mubr.f32.mxu0 0.0
    %168 = vmatmul.mubr.f32.gmra.mrb[0].mxu0 %v77
    %v169 = vpop.f32.mrb[0].mxu0
    %v170 = vadd.f32 0.0, %v169
    %v171 = vpop.f32.mrb[0].mxu0
    %v172 = vadd.f32 0.0, %v171
    %173 = vdwg.mxu0
    %v175 = vsel %vm63, %v29, 0
    %v178 = vsel %vm63, %v30, 0
    %v181 = vsel %vm63, %v31, 0
    %v184 = vsel %vm63, %v32, 0
    %v187 = vsel %vm63, %v33, 0
    %189 = vmatprep.subr.mxu0 %v35
    %190 = vmatpush1.msra.mxu0 %v34
    %191 = vmatprep.subr.mxu0 %v37
    %192 = vmatpush1.msra.mxu0 %v36
    %193 = vmatprep.subr.mxu0 %v39
    %194 = vmatpush1.msra.mxu0 %v38
    %195 = vmatprep.subr.mxu0 %v41
    %196 = vmatpush1.msra.mxu0 %v40
    %197 = vmatprep.subr.mxu0 %v43
    %198 = vmatpush1.msra.mxu0 %v42
    %199 = vmatprep.subr.mxu0 %v45
    %200 = vmatpush1.msra.mxu0 %v44
    %201 = vmatprep.subr.mxu0 0.0
    %202 = vmatpush1.msra.mxu0 0.0
    %203 = vmatprep.subr.mxu0 0.0
    %204 = vmatpush1.msra.mxu0 0.0
    %205 = vmatprep.subr.mxu0 0.0
    %206 = vmatpush1.msra.mxu0 0.0
    %207 = vmatprep.subr.mxu0 0.0
    %208 = vmatpush1.msra.mxu0 0.0
    %209 = vmatprep.subr.mxu0 0.0
    %210 = vmatpush1.msra.mxu0 0.0
    %211 = vmatprep.subr.mxu0 0.0
    %212 = vmatpush1.msra.mxu0 0.0
    %213 = vmatprep.subr.mxu0 0.0
    %214 = vmatpush1.msra.mxu0 0.0
    %215 = vmatprep.subr.mxu0 0.0
    %216 = vmatpush1.msra.mxu0 0.0
    %217 = vmatprep.subr.mxu0 0.0
    %218 = vmatpush1.msra.mxu0 0.0
    %219 = vmatprep.subr.mxu0 0.0
    %220 = vmatpush1.msra.mxu0 0.0
    %221 = vmatprep.subr.mxu0 0.0
    %222 = vmatpush1.msra.mxu0 0.0
    %223 = vmatprep.subr.mxu0 0.0
    %224 = vmatpush1.msra.mxu0 0.0
    %225 = vmatprep.subr.mxu0 0.0
    %226 = vmatpush1.msra.mxu0 0.0
    %227 = vmatprep.subr.mxu0 0.0
    %228 = vmatpush1.msra.mxu0 0.0
    %229 = vmatprep.subr.mxu0 0.0
    %230 = vmatpush1.msra.mxu0 0.0
    %231 = vmatprep.subr.mxu0 0.0
    %232 = vmatpush1.msra.mxu0 0.0
    %233 = vmatprep.subr.mxu0 0.0
    %234 = vmatpush1.msra.mxu0 0.0
    %235 = vmatprep.subr.mxu0 0.0
    %236 = vmatpush1.msra.mxu0 0.0
    %237 = vmatprep.subr.mxu0 0.0
    %238 = vmatpush1.msra.mxu0 0.0
    %239 = vmatprep.subr.mxu0 0.0
    %240 = vmatpush1.msra.mxu0 0.0
    %241 = vmatprep.subr.mxu0 0.0
    %242 = vmatpush1.msra.mxu0 0.0
    %243 = vmatprep.subr.mxu0 0.0
    %244 = vmatpush1.msra.mxu0 0.0
    %245 = vmatprep.subr.mxu0 0.0
    %246 = vmatpush1.msra.mxu0 0.0
    %247 = vmatprep.subr.mxu0 0.0
    %248 = vmatpush1.msra.mxu0 0.0
    %249 = vmatprep.subr.mxu0 0.0
    %250 = vmatpush1.msra.mxu0 0.0
    %251 = vmatprep.subr.mxu0 0.0
    %252 = vmatpush1.msra.mxu0 0.0
    %253 = vmatprep.mubr.f32.mxu0 0.0
    %254 = vmatmul.mubr.f32.gmra.mrb[0].mxu0 %v175
    %v255 = vpop.f32.mrb[0].mxu0
    %v256 = vadd.f32 %v146, %v255
    %v257 = vpop.f32.mrb[0].mxu0
    %v258 = vadd.f32 %v148, %v257
    %259 = vmatprep.mubr.f32.mxu0 0.0
    %260 = vmatmul.mubr.f32.gmra.mrb[0].mxu0 %v178
    %v261 = vpop.f32.mrb[0].mxu0
    %v262 = vadd.f32 %v152, %v261
    %v263 = vpop.f32.mrb[0].mxu0
    %v264 = vadd.f32 %v154, %v263
    %265 = vmatprep.mubr.f32.mxu0 0.0
    %266 = vmatmul.mubr.f32.gmra.mrb[0].mxu0 %v181
    %v267 = vpop.f32.mrb[0].mxu0
    %v268 = vadd.f32 %v158, %v267
    %v269 = vpop.f32.mrb[0].mxu0
    %v270 = vadd.f32 %v160, %v269
    %271 = vmatprep.mubr.f32.mxu0 0.0
    %272 = vmatmul.mubr.f32.gmra.mrb[0].mxu0 %v184
    %v273 = vpop.f32.mrb[0].mxu0
    %v274 = vadd.f32 %v164, %v273
    %v275 = vpop.f32.mrb[0].mxu0
    %v276 = vadd.f32 %v166, %v275
    %277 = vmatprep.mubr.f32.mxu0 0.0
    %278 = vmatmul.mubr.f32.gmra.mrb[0].mxu0 %v187
    %v279 = vpop.f32.mrb[0].mxu0
    %v280 = vadd.f32 %v170, %v279
    %v281 = vpop.f32.mrb[0].mxu0
    %v282 = vadd.f32 %v172, %v281
    %283 = vdwg.mxu0
    %v284 = vld [vmem:[%s0 + $0x2] sm:$0xff]
    %v285 = vld [vmem:[%s0 + $0xa] sm:$0xff]
    %v286 = vld [vmem:[%s0 + $0x12] sm:$0xff]
    %v287 = vld [vmem:[%s0 + $0x1a] sm:$0xff]
    %v288 = vld [vmem:[%s0 + $0x22] sm:$0x3]
    %v289 = vld [vmem:[%s2 + $0xc0] sm:$0xff]
    %v290 = vld [vmem:[%s2 + $0xc8] sm:$0xff]
    %v291 = vld [vmem:[%s2 + $0xd0] sm:$0xff]
    %v292 = vld [vmem:[%s2 + $0xd8] sm:$0xff]
    %v293 = vld [vmem:[%s2 + $0xe0] sm:$0xff]
    %v294 = vld [vmem:[%s2 + $0xe8] sm:$0xff]
    %v295 = vld [vmem:[%s2 + $0xf0] sm:$0xff]
    %v296 = vld [vmem:[%s2 + $0xf8] sm:$0xff]
    %v297 = vld [vmem:[%s2 + $0x100] sm:$0xff]
    %v298 = vld [vmem:[%s2 + $0x108] sm:$0xff]
    %v299 = vld [vmem:[%s2 + $0x110] sm:$0xff]
    %v300 = vld [vmem:[%s2 + $0x118] sm:$0xff]
    %v302 = vsel %vm63, %v284, 0
    %v305 = vsel %vm63, %v285, 0
    %v308 = vsel %vm63, %v286, 0
    %v311 = vsel %vm63, %v287, 0
    %v314 = vsel %vm63, %v288, 0
    %316 = vmatprep.subr.mxu0 %v290
    %317 = vmatpush1.msra.mxu0 %v289
    %318 = vmatprep.subr.mxu0 %v292
    %319 = vmatpush1.msra.mxu0 %v291
    %320 = vmatprep.subr.mxu0 %v294
    %321 = vmatpush1.msra.mxu0 %v293
    %322 = vmatprep.subr.mxu0 %v296
    %323 = vmatpush1.msra.mxu0 %v295
    %324 = vmatprep.subr.mxu0 %v298
    %325 = vmatpush1.msra.mxu0 %v297
    %326 = vmatprep.subr.mxu0 %v300
    %327 = vmatpush1.msra.mxu0 %v299
    %328 = vmatprep.subr.mxu0 0.0
    %329 = vmatpush1.msra.mxu0 0.0
    %330 = vmatprep.subr.mxu0 0.0
    %331 = vmatpush1.msra.mxu0 0.0
    %332 = vmatprep.subr.mxu0 0.0
    %333 = vmatpush1.msra.mxu0 0.0
    %334 = vmatprep.subr.mxu0 0.0
    %335 = vmatpush1.msra.mxu0 0.0
    %336 = vmatprep.subr.mxu0 0.0
    %337 = vmatpush1.msra.mxu0 0.0
    %338 = vmatprep.subr.mxu0 0.0
    %339 = vmatpush1.msra.mxu0 0.0
    %340 = vmatprep.subr.mxu0 0.0
    %341 = vmatpush1.msra.mxu0 0.0
    %342 = vmatprep.subr.mxu0 0.0
    %343 = vmatpush1.msra.mxu0 0.0
    %344 = vmatprep.subr.mxu0 0.0
    %345 = vmatpush1.msra.mxu0 0.0
    %346 = vmatprep.subr.mxu0 0.0
    %347 = vmatpush1.msra.mxu0 0.0
    %348 = vmatprep.subr.mxu0 0.0
    %349 = vmatpush1.msra.mxu0 0.0
    %350 = vmatprep.subr.mxu0 0.0
    %351 = vmatpush1.msra.mxu0 0.0
    %352 = vmatprep.subr.mxu0 0.0
    %353 = vmatpush1.msra.mxu0 0.0
    %354 = vmatprep.subr.mxu0 0.0
    %355 = vmatpush1.msra.mxu0 0.0
    %356 = vmatprep.subr.mxu0 0.0
    %357 = vmatpush1.msra.mxu0 0.0
    %358 = vmatprep.subr.mxu0 0.0
    %359 = vmatpush1.msra.mxu0 0.0
    %360 = vmatprep.subr.mxu0 0.0
    %361 = vmatpush1.msra.mxu0 0.0
    %362 = vmatprep.subr.mxu0 0.0
    %363 = vmatpush1.msra.mxu0 0.0
    %364 = vmatprep.subr.mxu0 0.0
    %365 = vmatpush1.msra.mxu0 0.0
    %366 = vmatprep.subr.mxu0 0.0
    %367 = vmatpush1.msra.mxu0 0.0
    %368 = vmatprep.subr.mxu0 0.0
    %369 = vmatpush1.msra.mxu0 0.0
    %370 = vmatprep.subr.mxu0 0.0
    %371 = vmatpush1.msra.mxu0 0.0
    %372 = vmatprep.subr.mxu0 0.0
    %373 = vmatpush1.msra.mxu0 0.0
    %374 = vmatprep.subr.mxu0 0.0
    %375 = vmatpush1.msra.mxu0 0.0
    %376 = vmatprep.subr.mxu0 0.0
    %377 = vmatpush1.msra.mxu0 0.0
    %378 = vmatprep.subr.mxu0 0.0
    %379 = vmatpush1.msra.mxu0 0.0
    %380 = vmatprep.mubr.f32.mxu0 0.0
    %381 = vmatmul.mubr.f32.gmra.mrb[0].mxu0 %v302
    %v382 = vpop.f32.mrb[0].mxu0
    %v383 = vadd.f32 0.0, %v382
    %v384 = vpop.f32.mrb[0].mxu0
    %v385 = vadd.f32 0.0, %v384
    %386 = vmatprep.mubr.f32.mxu0 0.0
    %387 = vmatmul.mubr.f32.gmra.mrb[0].mxu0 %v305
    %v388 = vpop.f32.mrb[0].mxu0
    %v389 = vadd.f32 0.0, %v388
    %v390 = vpop.f32.mrb[0].mxu0
    %v391 = vadd.f32 0.0, %v390
    %392 = vmatprep.mubr.f32.mxu0 0.0
    %393 = vmatmul.mubr.f32.gmra.mrb[0].mxu0 %v308
    %v394 = vpop.f32.mrb[0].mxu0
    %v395 = vadd.f32 0.0, %v394
    %v396 = vpop.f32.mrb[0].mxu0
    %v397 = vadd.f32 0.0, %v396
    %398 = vmatprep.mubr.f32.mxu0 0.0
    %399 = vmatmul.mubr.f32.gmra.mrb[0].mxu0 %v311
    %v400 = vpop.f32.mrb[0].mxu0
    %v401 = vadd.f32 0.0, %v400
    %v402 = vpop.f32.mrb[0].mxu0
    %v403 = vadd.f32 0.0, %v402
    %404 = vmatprep.mubr.f32.mxu0 0.0
    %405 = vmatmul.mubr.f32.gmra.mrb[0].mxu0 %v314
    %v406 = vpop.f32.mrb[0].mxu0
    %v407 = vadd.f32 0.0, %v406
    %v408 = vpop.f32.mrb[0].mxu0
    %v409 = vadd.f32 0.0, %v408
    %410 = vdwg.mxu0
    %v411 = vadd.f32 %v256, %v383
    %v412 = vadd.f32 %v258, %v385
    %v413 = vadd.f32 %v262, %v389
    %v414 = vadd.f32 %v264, %v391
    %v415 = vadd.f32 %v268, %v395
    %v416 = vadd.f32 %v270, %v397
    %v417 = vadd.f32 %v274, %v401
    %v418 = vadd.f32 %v276, %v403
    %v419 = vadd.f32 %v280, %v407
    %v420 = vadd.f32 %v282, %v409
    %v421 = vmax.f32 %v411, %v412
    %v422 = vmax.f32 %v413, %v414
    %423 = vst [vmem:[#allocation2] sm:$0xff] %v421
    %424 = vst [vmem:[#allocation2 + $0x8] sm:$0xff] %v422
    %v425 = vmax.f32 %v415, %v416
    %v426 = vmax.f32 %v417, %v418
    %v427 = vmax.f32 %v419, %v420
    %428 = vst [vmem:[#allocation2 + $0xe] sm:$0xfc] %v425
    %429 = vst [vmem:[#allocation2 + $0x16] sm:$0xff] %v426
    %430 = vst [vmem:[#allocation2 + $0x1e] sm:$0x3] %v427
    %v431 = vld [vmem:[#allocation2] ss:$2 sm:$0xff]
    %s432 = scalar_lea.vmem [#allocation2], 16
    %v433 = vld [vmem:[%s432] ss:$2 sm:$0xff]
    %s434 = scalar_lea.vmem [#allocation2], 1
    %v435 = vld [vmem:[%s434] ss:$2 sm:$0xff]
    %s436 = scalar_lea.vmem [#allocation2], 17
    %v437 = vld [vmem:[%s436] ss:$2 sm:$0xff]
    %v438 = vmax.f32 %v431, %v435
    %v439 = vmax.f32 %v433, %v437
    %v440 = vlaneseq
    %v441 = vshrl.u32 %v440, 7
    %v442 = vsub.s32 0, %v441
    %v443 = vrot.slane %v24, %v442
    %v444 = vadd.f32 %v438, %v443
    %v445 = vadd.f32 %v439, %v443
    %v446 = vmax.f32 %v444, 0.0
    %v447 = vmax.f32 %v445, 0.0
    %v448 = vadd.f32 %v446, %v447
    %v449 = vrot.slane %v448, 4
    %v450 = vadd.f32 %v448, %v449
    %v451 = vrot.slane %v450, 2
    %v452 = vadd.f32 %v450, %v451
    %v453 = vrot.slane %v452, 1
    %v454 = vadd.f32 %v452, %v453
    %v455 = vmul.f32 %v446, %v446
    %v456 = vmul.f32 %v447, %v447
    %v457 = vadd.f32 %v455, %v456
    %v458 = vrot.slane %v457, 4
    %v459 = vadd.f32 %v457, %v458
    %v460 = vrot.slane %v459, 2
    %v461 = vadd.f32 %v459, %v460
    %v462 = vrot.slane %v461, 1
    %v463 = vadd.f32 %v461, %v462
    %vm464 = vcmask 1040384
    %v465 = vsel %vm464, %v454, %v463
    %v466 = vlaneseq
    %v467 = vshrl.u32 %v466, 7
    %v468 = vadd.s32 %v467, 8
    %v469 = vadd.s32 %v467, 16
    %v470 = vadd.s32 %v467, 24
    %v471 = vadd.s32 %v467, 32
    %v472 = vadd.s32 %v467, 40
    %v473 = vadd.s32 %v467, 48
    %v474 = vadd.s32 %v467, 56
    %v475 = vadd.s32 %v467, 64
    %v476 = vadd.s32 %v467, 72
    %v477 = vadd.s32 %v467, 80
    %v478 = vadd.s32 %v467, 88
    %v479 = vadd.s32 %v467, 96
    %v480 = vadd.s32 %v467, 104
    %v481 = vadd.s32 %v467, 112
    %v482 = vadd.s32 %v467, 120
    %v483 = vlaneseq
    %v484 = vand.u32 %v483, 127
    %v485 = vand.u32 %v467, 15
    %v486 = vand.u32 %v468, 15
    %v487 = vand.u32 %v469, 15
    %v488 = vand.u32 %v470, 15
    %v489 = vand.u32 %v471, 15
    %v490 = vand.u32 %v472, 15
    %v491 = vand.u32 %v473, 15
    %v492 = vand.u32 %v474, 15
    %v493 = vand.u32 %v475, 15
    %v494 = vand.u32 %v476, 15
    %v495 = vand.u32 %v477, 15
    %v496 = vand.u32 %v478, 15
    %v497 = vand.u32 %v479, 15
    %v498 = vand.u32 %v480, 15
    %v499 = vand.u32 %v481, 15
    %v500 = vand.u32 %v482, 15
    %vm501 = vcmp.eq.s32.totalorder %v485, %v484
    %vm502 = vcmp.eq.s32.totalorder %v486, %v484
    %vm503 = vcmp.eq.s32.totalorder %v487, %v484
    %vm504 = vcmp.eq.s32.totalorder %v488, %v484
    %vm505 = vcmp.eq.s32.totalorder %v489, %v484
    %vm506 = vcmp.eq.s32.totalorder %v490, %v484
    %vm507 = vcmp.eq.s32.totalorder %v491, %v484
    %vm508 = vcmp.eq.s32.totalorder %v492, %v484
    %vm509 = vcmp.eq.s32.totalorder %v493, %v484
    %vm510 = vcmp.eq.s32.totalorder %v494, %v484
    %vm511 = vcmp.eq.s32.totalorder %v495, %v484
    %vm512 = vcmp.eq.s32.totalorder %v496, %v484
    %vm513 = vcmp.eq.s32.totalorder %v497, %v484
    %vm514 = vcmp.eq.s32.totalorder %v498, %v484
    %vm515 = vcmp.eq.s32.totalorder %v499, %v484
    %vm516 = vcmp.eq.s32.totalorder %v500, %v484
    %v517 = vsel %vm501, 1, 0
    %v518 = vsel %vm502, 1, 0
    %v519 = vsel %vm503, 1, 0
    %v520 = vsel %vm504, 1, 0
    %v521 = vsel %vm505, 1, 0
    %v522 = vsel %vm506, 1, 0
    %v523 = vsel %vm507, 1, 0
    %v524 = vsel %vm508, 1, 0
    %v525 = vsel %vm509, 1, 0
    %v526 = vsel %vm510, 1, 0
    %v527 = vsel %vm511, 1, 0
    %v528 = vsel %vm512, 1, 0
    %v529 = vsel %vm513, 1, 0
    %v530 = vsel %vm514, 1, 0
    %v531 = vsel %vm515, 1, 0
    %v532 = vsel %vm516, 1, 0
    %v533 = vcvt.s32.f32 %v517
    %v534 = vcvt.s32.f32 %v518
    %v535 = vcvt.s32.f32 %v519
    %v536 = vcvt.s32.f32 %v520
    %v537 = vcvt.s32.f32 %v521
    %v538 = vcvt.s32.f32 %v522
    %v539 = vcvt.s32.f32 %v523
    %v540 = vcvt.s32.f32 %v524
    %v541 = vcvt.s32.f32 %v525
    %v542 = vcvt.s32.f32 %v526
    %v543 = vcvt.s32.f32 %v527
    %v544 = vcvt.s32.f32 %v528
    %v545 = vcvt.s32.f32 %v529
    %v546 = vcvt.s32.f32 %v530
    %v547 = vcvt.s32.f32 %v531
    %v548 = vcvt.s32.f32 %v532
    %549 = vmatprep.subr.mxu0 0.0
    %v550 = vand.u32 %v533, 4294901760
    %551 = vmatpush1.msra.mxu0 %v550
    %552 = vmatprep.subr.mxu0 0.0
    %v553 = vand.u32 %v534, 4294901760
    %554 = vmatpush1.msra.mxu0 %v553
    %555 = vmatprep.subr.mxu0 0.0
    %v556 = vand.u32 %v535, 4294901760
    %557 = vmatpush1.msra.mxu0 %v556
    %558 = vmatprep.subr.mxu0 0.0
    %v559 = vand.u32 %v536, 4294901760
    %560 = vmatpush1.msra.mxu0 %v559
    %561 = vmatprep.subr.mxu0 0.0
    %v562 = vand.u32 %v537, 4294901760
    %563 = vmatpush1.msra.mxu0 %v562
    %564 = vmatprep.subr.mxu0 0.0
    %v565 = vand.u32 %v538, 4294901760
    %566 = vmatpush1.msra.mxu0 %v565
    %567 = vmatprep.subr.mxu0 0.0
    %v568 = vand.u32 %v539, 4294901760
    %569 = vmatpush1.msra.mxu0 %v568
    %570 = vmatprep.subr.mxu0 0.0
    %v571 = vand.u32 %v540, 4294901760
    %572 = vmatpush1.msra.mxu0 %v571
    %573 = vmatprep.subr.mxu0 0.0
    %v574 = vand.u32 %v541, 4294901760
    %575 = vmatpush1.msra.mxu0 %v574
    %576 = vmatprep.subr.mxu0 0.0
    %v577 = vand.u32 %v542, 4294901760
    %578 = vmatpush1.msra.mxu0 %v577
    %579 = vmatprep.subr.mxu0 0.0
    %v580 = vand.u32 %v543, 4294901760
    %581 = vmatpush1.msra.mxu0 %v580
    %582 = vmatprep.subr.mxu0 0.0
    %v583 = vand.u32 %v544, 4294901760
    %584 = vmatpush1.msra.mxu0 %v583
    %585 = vmatprep.subr.mxu0 0.0
    %v586 = vand.u32 %v545, 4294901760
    %587 = vmatpush1.msra.mxu0 %v586
    %588 = vmatprep.subr.mxu0 0.0
    %v589 = vand.u32 %v546, 4294901760
    %590 = vmatpush1.msra.mxu0 %v589
    %591 = vmatprep.subr.mxu0 0.0
    %v592 = vand.u32 %v547, 4294901760
    %593 = vmatpush1.msra.mxu0 %v592
    %594 = vmatprep.subr.mxu0 0.0
    %v595 = vand.u32 %v548, 4294901760
    %596 = vmatpush1.msra.mxu0 %v595
    %597 = vmatprep.subr.mxu0 0.0
    %598 = vmatpush1.msra.mxu0 0.0
    %599 = vmatprep.subr.mxu0 0.0
    %600 = vmatpush1.msra.mxu0 0.0
    %601 = vmatprep.subr.mxu0 0.0
    %602 = vmatpush1.msra.mxu0 0.0
    %603 = vmatprep.subr.mxu0 0.0
    %604 = vmatpush1.msra.mxu0 0.0
    %605 = vmatprep.subr.mxu0 0.0
    %606 = vmatpush1.msra.mxu0 0.0
    %607 = vmatprep.subr.mxu0 0.0
    %608 = vmatpush1.msra.mxu0 0.0
    %609 = vmatprep.subr.mxu0 0.0
    %610 = vmatpush1.msra.mxu0 0.0
    %611 = vmatprep.subr.mxu0 0.0
    %612 = vmatpush1.msra.mxu0 0.0
    %613 = vmatprep.subr.mxu0 0.0
    %614 = vmatpush1.msra.mxu0 0.0
    %615 = vmatprep.subr.mxu0 0.0
    %616 = vmatpush1.msra.mxu0 0.0
    %617 = vmatprep.subr.mxu0 0.0
    %618 = vmatpush1.msra.mxu0 0.0
    %619 = vmatprep.subr.mxu0 0.0
    %620 = vmatpush1.msra.mxu0 0.0
    %621 = vmatprep.subr.mxu0 0.0
    %622 = vmatpush1.msra.mxu0 0.0
    %623 = vmatprep.subr.mxu0 0.0
    %624 = vmatpush1.msra.mxu0 0.0
    %625 = vmatprep.subr.mxu0 0.0
    %626 = vmatpush1.msra.mxu0 0.0
    %627 = vmatprep.subr.mxu0 0.0
    %628 = vmatpush1.msra.mxu0 0.0
    %629 = vmatprep.mubr.f32.mxu0 0.0
    %v630 = vand.u32 %v465, 4294901760
    %v631 = vsub.f32 %v465, %v630
    %v632 = vand.u32 %v631, 4294901760
    %v633 = vsub.f32 %v631, %v632
    %v634 = vand.u32 %v633, 4294901760
    %635 = vmatmul.mubr.f32.gmra.mrb[0].mxu0 %v634
    %v636 = vpop.f32.mrb[0].mxu0
    %v637 = vadd.f32 0.0, %v636
    %v638 = vpop.f32.mrb[0].mxu0
    %639 = vdwg.mxu0
    %640 = vmatprep.subr.mxu0 0.0
    %v641 = vand.u32 %v533, 4294901760
    %v642 = vsub.f32 %v533, %v641
    %v643 = vand.u32 %v642, 4294901760
    %v644 = vsub.f32 %v642, %v643
    %v645 = vand.u32 %v644, 4294901760
    %646 = vmatpush1.msra.mxu0 %v645
    %647 = vmatprep.subr.mxu0 0.0
    %v648 = vand.u32 %v534, 4294901760
    %v649 = vsub.f32 %v534, %v648
    %v650 = vand.u32 %v649, 4294901760
    %v651 = vsub.f32 %v649, %v650
    %v652 = vand.u32 %v651, 4294901760
    %653 = vmatpush1.msra.mxu0 %v652
    %654 = vmatprep.subr.mxu0 0.0
    %v655 = vand.u32 %v535, 4294901760
    %v656 = vsub.f32 %v535, %v655
    %v657 = vand.u32 %v656, 4294901760
    %v658 = vsub.f32 %v656, %v657
    %v659 = vand.u32 %v658, 4294901760
    %660 = vmatpush1.msra.mxu0 %v659
    %661 = vmatprep.subr.mxu0 0.0
    %v662 = vand.u32 %v536, 4294901760
    %v663 = vsub.f32 %v536, %v662
    %v664 = vand.u32 %v663, 4294901760
    %v665 = vsub.f32 %v663, %v664
    %v666 = vand.u32 %v665, 4294901760
    %667 = vmatpush1.msra.mxu0 %v666
    %668 = vmatprep.subr.mxu0 0.0
    %v669 = vand.u32 %v537, 4294901760
    %v670 = vsub.f32 %v537, %v669
    %v671 = vand.u32 %v670, 4294901760
    %v672 = vsub.f32 %v670, %v671
    %v673 = vand.u32 %v672, 4294901760
    %674 = vmatpush1.msra.mxu0 %v673
    %675 = vmatprep.subr.mxu0 0.0
    %v676 = vand.u32 %v538, 4294901760
    %v677 = vsub.f32 %v538, %v676
    %v678 = vand.u32 %v677, 4294901760
    %v679 = vsub.f32 %v677, %v678
    %v680 = vand.u32 %v679, 4294901760
    %681 = vmatpush1.msra.mxu0 %v680
    %682 = vmatprep.subr.mxu0 0.0
    %v683 = vand.u32 %v539, 4294901760
    %v684 = vsub.f32 %v539, %v683
    %v685 = vand.u32 %v684, 4294901760
    %v686 = vsub.f32 %v684, %v685
    %v687 = vand.u32 %v686, 4294901760
    %688 = vmatpush1.msra.mxu0 %v687
    %689 = vmatprep.subr.mxu0 0.0
    %v690 = vand.u32 %v540, 4294901760
    %v691 = vsub.f32 %v540, %v690
    %v692 = vand.u32 %v691, 4294901760
    %v693 = vsub.f32 %v691, %v692
    %v694 = vand.u32 %v693, 4294901760
    %695 = vmatpush1.msra.mxu0 %v694
    %696 = vmatprep.subr.mxu0 0.0
    %v697 = vand.u32 %v541, 4294901760
    %v698 = vsub.f32 %v541, %v697
    %v699 = vand.u32 %v698, 4294901760
    %v700 = vsub.f32 %v698, %v699
    %v701 = vand.u32 %v700, 4294901760
    %702 = vmatpush1.msra.mxu0 %v701
    %703 = vmatprep.subr.mxu0 0.0
    %v704 = vand.u32 %v542, 4294901760
    %v705 = vsub.f32 %v542, %v704
    %v706 = vand.u32 %v705, 4294901760
    %v707 = vsub.f32 %v705, %v706
    %v708 = vand.u32 %v707, 4294901760
    %709 = vmatpush1.msra.mxu0 %v708
    %710 = vmatprep.subr.mxu0 0.0
    %v711 = vand.u32 %v543, 4294901760
    %v712 = vsub.f32 %v543, %v711
    %v713 = vand.u32 %v712, 4294901760
    %v714 = vsub.f32 %v712, %v713
    %v715 = vand.u32 %v714, 4294901760
    %716 = vmatpush1.msra.mxu0 %v715
    %717 = vmatprep.subr.mxu0 0.0
    %v718 = vand.u32 %v544, 4294901760
    %v719 = vsub.f32 %v544, %v718
    %v720 = vand.u32 %v719, 4294901760
    %v721 = vsub.f32 %v719, %v720
    %v722 = vand.u32 %v721, 4294901760
    %723 = vmatpush1.msra.mxu0 %v722
    %724 = vmatprep.subr.mxu0 0.0
    %v725 = vand.u32 %v545, 4294901760
    %v726 = vsub.f32 %v545, %v725
    %v727 = vand.u32 %v726, 4294901760
    %v728 = vsub.f32 %v726, %v727
    %v729 = vand.u32 %v728, 4294901760
    %730 = vmatpush1.msra.mxu0 %v729
    %731 = vmatprep.subr.mxu0 0.0
    %v732 = vand.u32 %v546, 4294901760
    %v733 = vsub.f32 %v546, %v732
    %v734 = vand.u32 %v733, 4294901760
    %v735 = vsub.f32 %v733, %v734
    %v736 = vand.u32 %v735, 4294901760
    %737 = vmatpush1.msra.mxu0 %v736
    %738 = vmatprep.subr.mxu0 0.0
    %v739 = vand.u32 %v547, 4294901760
    %v740 = vsub.f32 %v547, %v739
    %v741 = vand.u32 %v740, 4294901760
    %v742 = vsub.f32 %v740, %v741
    %v743 = vand.u32 %v742, 4294901760
    %744 = vmatpush1.msra.mxu0 %v743
    %745 = vmatprep.subr.mxu0 0.0
    %v746 = vand.u32 %v548, 4294901760
    %v747 = vsub.f32 %v548, %v746
    %v748 = vand.u32 %v747, 4294901760
    %v749 = vsub.f32 %v747, %v748
    %v750 = vand.u32 %v749, 4294901760
    %751 = vmatpush1.msra.mxu0 %v750
    %752 = vmatprep.subr.mxu0 0.0
    %753 = vmatpush1.msra.mxu0 0.0
    %754 = vmatprep.subr.mxu0 0.0
    %755 = vmatpush1.msra.mxu0 0.0
    %756 = vmatprep.subr.mxu0 0.0
    %757 = vmatpush1.msra.mxu0 0.0
    %758 = vmatprep.subr.mxu0 0.0
    %759 = vmatpush1.msra.mxu0 0.0
    %760 = vmatprep.subr.mxu0 0.0
    %761 = vmatpush1.msra.mxu0 0.0
    %762 = vmatprep.subr.mxu0 0.0
    %763 = vmatpush1.msra.mxu0 0.0
    %764 = vmatprep.subr.mxu0 0.0
    %765 = vmatpush1.msra.mxu0 0.0
    %766 = vmatprep.subr.mxu0 0.0
    %767 = vmatpush1.msra.mxu0 0.0
    %768 = vmatprep.subr.mxu0 0.0
    %769 = vmatpush1.msra.mxu0 0.0
    %770 = vmatprep.subr.mxu0 0.0
    %771 = vmatpush1.msra.mxu0 0.0
    %772 = vmatprep.subr.mxu0 0.0
    %773 = vmatpush1.msra.mxu0 0.0
    %774 = vmatprep.subr.mxu0 0.0
    %775 = vmatpush1.msra.mxu0 0.0
    %776 = vmatprep.subr.mxu0 0.0
    %777 = vmatpush1.msra.mxu0 0.0
    %778 = vmatprep.subr.mxu0 0.0
    %779 = vmatpush1.msra.mxu0 0.0
    %780 = vmatprep.subr.mxu0 0.0
    %781 = vmatpush1.msra.mxu0 0.0
    %782 = vmatprep.subr.mxu0 0.0
    %783 = vmatpush1.msra.mxu0 0.0
    %784 = vmatprep.mubr.f32.mxu0 0.0
    %v785 = vand.u32 %v465, 4294901760
    %786 = vmatmul.mubr.f32.gmra.mrb[0].mxu0 %v785
    %v787 = vpop.f32.mrb[0].mxu0
    %v788 = vadd.f32 %v637, %v787
    %v789 = vpop.f32.mrb[0].mxu0
    %790 = vdwg.mxu0
    %791 = vmatprep.subr.mxu0 0.0
    %v792 = vand.u32 %v533, 4294901760
    %v793 = vsub.f32 %v533, %v792
    %794 = vmatpush1.msra.mxu0 %v793
    %795 = vmatprep.subr.mxu0 0.0
    %v796 = vand.u32 %v534, 4294901760
    %v797 = vsub.f32 %v534, %v796
    %798 = vmatpush1.msra.mxu0 %v797
    %799 = vmatprep.subr.mxu0 0.0
    %v800 = vand.u32 %v535, 4294901760
    %v801 = vsub.f32 %v535, %v800
    %802 = vmatpush1.msra.mxu0 %v801
    %803 = vmatprep.subr.mxu0 0.0
    %v804 = vand.u32 %v536, 4294901760
    %v805 = vsub.f32 %v536, %v804
    %806 = vmatpush1.msra.mxu0 %v805
    %807 = vmatprep.subr.mxu0 0.0
    %v808 = vand.u32 %v537, 4294901760
    %v809 = vsub.f32 %v537, %v808
    %810 = vmatpush1.msra.mxu0 %v809
    %811 = vmatprep.subr.mxu0 0.0
    %v812 = vand.u32 %v538, 4294901760
    %v813 = vsub.f32 %v538, %v812
    %814 = vmatpush1.msra.mxu0 %v813
    %815 = vmatprep.subr.mxu0 0.0
    %v816 = vand.u32 %v539, 4294901760
    %v817 = vsub.f32 %v539, %v816
    %818 = vmatpush1.msra.mxu0 %v817
    %819 = vmatprep.subr.mxu0 0.0
    %v820 = vand.u32 %v540, 4294901760
    %v821 = vsub.f32 %v540, %v820
    %822 = vmatpush1.msra.mxu0 %v821
    %823 = vmatprep.subr.mxu0 0.0
    %v824 = vand.u32 %v541, 4294901760
    %v825 = vsub.f32 %v541, %v824
    %826 = vmatpush1.msra.mxu0 %v825
    %827 = vmatprep.subr.mxu0 0.0
    %v828 = vand.u32 %v542, 4294901760
    %v829 = vsub.f32 %v542, %v828
    %830 = vmatpush1.msra.mxu0 %v829
    %831 = vmatprep.subr.mxu0 0.0
    %v832 = vand.u32 %v543, 4294901760
    %v833 = vsub.f32 %v543, %v832
    %834 = vmatpush1.msra.mxu0 %v833
    %835 = vmatprep.subr.mxu0 0.0
    %v836 = vand.u32 %v544, 4294901760
    %v837 = vsub.f32 %v544, %v836
    %838 = vmatpush1.msra.mxu0 %v837
    %839 = vmatprep.subr.mxu0 0.0
    %v840 = vand.u32 %v545, 4294901760
    %v841 = vsub.f32 %v545, %v840
    %842 = vmatpush1.msra.mxu0 %v841
    %843 = vmatprep.subr.mxu0 0.0
    %v844 = vand.u32 %v546, 4294901760
    %v845 = vsub.f32 %v546, %v844
    %846 = vmatpush1.msra.mxu0 %v845
    %847 = vmatprep.subr.mxu0 0.0
    %v848 = vand.u32 %v547, 4294901760
    %v849 = vsub.f32 %v547, %v848
    %850 = vmatpush1.msra.mxu0 %v849
    %851 = vmatprep.subr.mxu0 0.0
    %v852 = vand.u32 %v548, 4294901760
    %v853 = vsub.f32 %v548, %v852
    %854 = vmatpush1.msra.mxu0 %v853
    %855 = vmatprep.subr.mxu0 0.0
    %856 = vmatpush1.msra.mxu0 0.0
    %857 = vmatprep.subr.mxu0 0.0
    %858 = vmatpush1.msra.mxu0 0.0
    %859 = vmatprep.subr.mxu0 0.0
    %860 = vmatpush1.msra.mxu0 0.0
    %861 = vmatprep.subr.mxu0 0.0
    %862 = vmatpush1.msra.mxu0 0.0
    %863 = vmatprep.subr.mxu0 0.0
    %864 = vmatpush1.msra.mxu0 0.0
    %865 = vmatprep.subr.mxu0 0.0
    %866 = vmatpush1.msra.mxu0 0.0
    %867 = vmatprep.subr.mxu0 0.0
    %868 = vmatpush1.msra.mxu0 0.0
    %869 = vmatprep.subr.mxu0 0.0
    %870 = vmatpush1.msra.mxu0 0.0
    %871 = vmatprep.subr.mxu0 0.0
    %872 = vmatpush1.msra.mxu0 0.0
    %873 = vmatprep.subr.mxu0 0.0
    %874 = vmatpush1.msra.mxu0 0.0
    %875 = vmatprep.subr.mxu0 0.0
    %876 = vmatpush1.msra.mxu0 0.0
    %877 = vmatprep.subr.mxu0 0.0
    %878 = vmatpush1.msra.mxu0 0.0
    %879 = vmatprep.subr.mxu0 0.0
    %880 = vmatpush1.msra.mxu0 0.0
    %881 = vmatprep.subr.mxu0 0.0
    %882 = vmatpush1.msra.mxu0 0.0
    %883 = vmatprep.subr.mxu0 0.0
    %884 = vmatpush1.msra.mxu0 0.0
    %885 = vmatprep.subr.mxu0 0.0
    %886 = vmatpush1.msra.mxu0 0.0
    %887 = vmatprep.mubr.f32.mxu0 0.0
    %v888 = vand.u32 %v465, 4294901760
    %v889 = vsub.f32 %v465, %v888
    %890 = vmatmul.mubr.f32.gmra.mrb[0].mxu0 %v889
    %v891 = vpop.f32.mrb[0].mxu0
    %v892 = vadd.f32 %v788, %v891
    %v893 = vpop.f32.mrb[0].mxu0
    %894 = vdwg.mxu0
    %895 = vmatprep.subr.mxu0 0.0
    %v896 = vand.u32 %v533, 4294901760
    %897 = vmatpush1.msra.mxu0 %v896
    %898 = vmatprep.subr.mxu0 0.0
    %v899 = vand.u32 %v534, 4294901760
    %900 = vmatpush1.msra.mxu0 %v899
    %901 = vmatprep.subr.mxu0 0.0
    %v902 = vand.u32 %v535, 4294901760
    %903 = vmatpush1.msra.mxu0 %v902
    %904 = vmatprep.subr.mxu0 0.0
    %v905 = vand.u32 %v536, 4294901760
    %906 = vmatpush1.msra.mxu0 %v905
    %907 = vmatprep.subr.mxu0 0.0
    %v908 = vand.u32 %v537, 4294901760
    %909 = vmatpush1.msra.mxu0 %v908
    %910 = vmatprep.subr.mxu0 0.0
    %v911 = vand.u32 %v538, 4294901760
    %912 = vmatpush1.msra.mxu0 %v911
    %913 = vmatprep.subr.mxu0 0.0
    %v914 = vand.u32 %v539, 4294901760
    %915 = vmatpush1.msra.mxu0 %v914
    %916 = vmatprep.subr.mxu0 0.0
    %v917 = vand.u32 %v540, 4294901760
    %918 = vmatpush1.msra.mxu0 %v917
    %919 = vmatprep.subr.mxu0 0.0
    %v920 = vand.u32 %v541, 4294901760
    %921 = vmatpush1.msra.mxu0 %v920
    %922 = vmatprep.subr.mxu0 0.0
    %v923 = vand.u32 %v542, 4294901760
    %924 = vmatpush1.msra.mxu0 %v923
    %925 = vmatprep.subr.mxu0 0.0
    %v926 = vand.u32 %v543, 4294901760
    %927 = vmatpush1.msra.mxu0 %v926
    %928 = vmatprep.subr.mxu0 0.0
    %v929 = vand.u32 %v544, 4294901760
    %930 = vmatpush1.msra.mxu0 %v929
    %931 = vmatprep.subr.mxu0 0.0
    %v932 = vand.u32 %v545, 4294901760
    %933 = vmatpush1.msra.mxu0 %v932
    %934 = vmatprep.subr.mxu0 0.0
    %v935 = vand.u32 %v546, 4294901760
    %936 = vmatpush1.msra.mxu0 %v935
    %937 = vmatprep.subr.mxu0 0.0
    %v938 = vand.u32 %v547, 4294901760
    %939 = vmatpush1.msra.mxu0 %v938
    %940 = vmatprep.subr.mxu0 0.0
    %v941 = vand.u32 %v548, 4294901760
    %942 = vmatpush1.msra.mxu0 %v941
    %943 = vmatprep.subr.mxu0 0.0
    %944 = vmatpush1.msra.mxu0 0.0
    %945 = vmatprep.subr.mxu0 0.0
    %946 = vmatpush1.msra.mxu0 0.0
    %947 = vmatprep.subr.mxu0 0.0
    %948 = vmatpush1.msra.mxu0 0.0
    %949 = vmatprep.subr.mxu0 0.0
    %950 = vmatpush1.msra.mxu0 0.0
    %951 = vmatprep.subr.mxu0 0.0
    %952 = vmatpush1.msra.mxu0 0.0
    %953 = vmatprep.subr.mxu0 0.0
    %954 = vmatpush1.msra.mxu0 0.0
    %955 = vmatprep.subr.mxu0 0.0
    %956 = vmatpush1.msra.mxu0 0.0
    %957 = vmatprep.subr.mxu0 0.0
    %958 = vmatpush1.msra.mxu0 0.0
    %959 = vmatprep.subr.mxu0 0.0
    %960 = vmatpush1.msra.mxu0 0.0
    %961 = vmatprep.subr.mxu0 0.0
    %962 = vmatpush1.msra.mxu0 0.0
    %963 = vmatprep.subr.mxu0 0.0
    %964 = vmatpush1.msra.mxu0 0.0
    %965 = vmatprep.subr.mxu0 0.0
    %966 = vmatpush1.msra.mxu0 0.0
    %967 = vmatprep.subr.mxu0 0.0
    %968 = vmatpush1.msra.mxu0 0.0
    %969 = vmatprep.subr.mxu0 0.0
    %970 = vmatpush1.msra.mxu0 0.0
    %971 = vmatprep.subr.mxu0 0.0
    %972 = vmatpush1.msra.mxu0 0.0
    %973 = vmatprep.subr.mxu0 0.0
    %974 = vmatpush1.msra.mxu0 0.0
    %975 = vmatprep.mubr.f32.mxu0 0.0
    %v976 = vand.u32 %v465, 4294901760
    %v977 = vsub.f32 %v465, %v976
    %v978 = vand.u32 %v977, 4294901760
    %979 = vmatmul.mubr.f32.gmra.mrb[0].mxu0 %v978
    %v980 = vpop.f32.mrb[0].mxu0
    %v981 = vadd.f32 %v892, %v980
    %v982 = vpop.f32.mrb[0].mxu0
    %983 = vdwg.mxu0
    %984 = vmatprep.subr.mxu0 0.0
    %v985 = vand.u32 %v533, 4294901760
    %v986 = vsub.f32 %v533, %v985
    %v987 = vand.u32 %v986, 4294901760
    %988 = vmatpush1.msra.mxu0 %v987
    %989 = vmatprep.subr.mxu0 0.0
    %v990 = vand.u32 %v534, 4294901760
    %v991 = vsub.f32 %v534, %v990
    %v992 = vand.u32 %v991, 4294901760
    %993 = vmatpush1.msra.mxu0 %v992
    %994 = vmatprep.subr.mxu0 0.0
    %v995 = vand.u32 %v535, 4294901760
    %v996 = vsub.f32 %v535, %v995
    %v997 = vand.u32 %v996, 4294901760
    %998 = vmatpush1.msra.mxu0 %v997
    %999 = vmatprep.subr.mxu0 0.0
    %v1000 = vand.u32 %v536, 4294901760
    %v1001 = vsub.f32 %v536, %v1000
    %v1002 = vand.u32 %v1001, 4294901760
    %1003 = vmatpush1.msra.mxu0 %v1002
    %1004 = vmatprep.subr.mxu0 0.0
    %v1005 = vand.u32 %v537, 4294901760
    %v1006 = vsub.f32 %v537, %v1005
    %v1007 = vand.u32 %v1006, 4294901760
    %1008 = vmatpush1.msra.mxu0 %v1007
    %1009 = vmatprep.subr.mxu0 0.0
    %v1010 = vand.u32 %v538, 4294901760
    %v1011 = vsub.f32 %v538, %v1010
    %v1012 = vand.u32 %v1011, 4294901760
    %1013 = vmatpush1.msra.mxu0 %v1012
    %1014 = vmatprep.subr.mxu0 0.0
    %v1015 = vand.u32 %v539, 4294901760
    %v1016 = vsub.f32 %v539, %v1015
    %v1017 = vand.u32 %v1016, 4294901760
    %1018 = vmatpush1.msra.mxu0 %v1017
    %1019 = vmatprep.subr.mxu0 0.0
    %v1020 = vand.u32 %v540, 4294901760
    %v1021 = vsub.f32 %v540, %v1020
    %v1022 = vand.u32 %v1021, 4294901760
    %1023 = vmatpush1.msra.mxu0 %v1022
    %1024 = vmatprep.subr.mxu0 0.0
    %v1025 = vand.u32 %v541, 4294901760
    %v1026 = vsub.f32 %v541, %v1025
    %v1027 = vand.u32 %v1026, 4294901760
    %1028 = vmatpush1.msra.mxu0 %v1027
    %1029 = vmatprep.subr.mxu0 0.0
    %v1030 = vand.u32 %v542, 4294901760
    %v1031 = vsub.f32 %v542, %v1030
    %v1032 = vand.u32 %v1031, 4294901760
    %1033 = vmatpush1.msra.mxu0 %v1032
    %1034 = vmatprep.subr.mxu0 0.0
    %v1035 = vand.u32 %v543, 4294901760
    %v1036 = vsub.f32 %v543, %v1035
    %v1037 = vand.u32 %v1036, 4294901760
    %1038 = vmatpush1.msra.mxu0 %v1037
    %1039 = vmatprep.subr.mxu0 0.0
    %v1040 = vand.u32 %v544, 4294901760
    %v1041 = vsub.f32 %v544, %v1040
    %v1042 = vand.u32 %v1041, 4294901760
    %1043 = vmatpush1.msra.mxu0 %v1042
    %1044 = vmatprep.subr.mxu0 0.0
    %v1045 = vand.u32 %v545, 4294901760
    %v1046 = vsub.f32 %v545, %v1045
    %v1047 = vand.u32 %v1046, 4294901760
    %1048 = vmatpush1.msra.mxu0 %v1047
    %1049 = vmatprep.subr.mxu0 0.0
    %v1050 = vand.u32 %v546, 4294901760
    %v1051 = vsub.f32 %v546, %v1050
    %v1052 = vand.u32 %v1051, 4294901760
    %1053 = vmatpush1.msra.mxu0 %v1052
    %1054 = vmatprep.subr.mxu0 0.0
    %v1055 = vand.u32 %v547, 4294901760
    %v1056 = vsub.f32 %v547, %v1055
    %v1057 = vand.u32 %v1056, 4294901760
    %1058 = vmatpush1.msra.mxu0 %v1057
    %1059 = vmatprep.subr.mxu0 0.0
    %v1060 = vand.u32 %v548, 4294901760
    %v1061 = vsub.f32 %v548, %v1060
    %v1062 = vand.u32 %v1061, 4294901760
    %1063 = vmatpush1.msra.mxu0 %v1062
    %1064 = vmatprep.subr.mxu0 0.0
    %1065 = vmatpush1.msra.mxu0 0.0
    %1066 = vmatprep.subr.mxu0 0.0
    %1067 = vmatpush1.msra.mxu0 0.0
    %1068 = vmatprep.subr.mxu0 0.0
    %1069 = vmatpush1.msra.mxu0 0.0
    %1070 = vmatprep.subr.mxu0 0.0
    %1071 = vmatpush1.msra.mxu0 0.0
    %1072 = vmatprep.subr.mxu0 0.0
    %1073 = vmatpush1.msra.mxu0 0.0
    %1074 = vmatprep.subr.mxu0 0.0
    %1075 = vmatpush1.msra.mxu0 0.0
    %1076 = vmatprep.subr.mxu0 0.0
    %1077 = vmatpush1.msra.mxu0 0.0
    %1078 = vmatprep.subr.mxu0 0.0
    %1079 = vmatpush1.msra.mxu0 0.0
    %1080 = vmatprep.subr.mxu0 0.0
    %1081 = vmatpush1.msra.mxu0 0.0
    %1082 = vmatprep.subr.mxu0 0.0
    %1083 = vmatpush1.msra.mxu0 0.0
    %1084 = vmatprep.subr.mxu0 0.0
    %1085 = vmatpush1.msra.mxu0 0.0
    %1086 = vmatprep.subr.mxu0 0.0
    %1087 = vmatpush1.msra.mxu0 0.0
    %1088 = vmatprep.subr.mxu0 0.0
    %1089 = vmatpush1.msra.mxu0 0.0
    %1090 = vmatprep.subr.mxu0 0.0
    %1091 = vmatpush1.msra.mxu0 0.0
    %1092 = vmatprep.subr.mxu0 0.0
    %1093 = vmatpush1.msra.mxu0 0.0
    %1094 = vmatprep.subr.mxu0 0.0
    %1095 = vmatpush1.msra.mxu0 0.0
    %1096 = vmatprep.mubr.f32.mxu0 0.0
    %v1097 = vand.u32 %v465, 4294901760
    %1098 = vmatmul.mubr.f32.gmra.mrb[0].mxu0 %v1097
    %v1099 = vpop.f32.mrb[0].mxu0
    %v1100 = vadd.f32 %v981, %v1099
    %v1101 = vpop.f32.mrb[0].mxu0
    %1102 = vdwg.mxu0
    %1103 = vmatprep.subr.mxu0 0.0
    %v1104 = vand.u32 %v533, 4294901760
    %1105 = vmatpush1.msra.mxu0 %v1104
    %1106 = vmatprep.subr.mxu0 0.0
    %v1107 = vand.u32 %v534, 4294901760
    %1108 = vmatpush1.msra.mxu0 %v1107
    %1109 = vmatprep.subr.mxu0 0.0
    %v1110 = vand.u32 %v535, 4294901760
    %1111 = vmatpush1.msra.mxu0 %v1110
    %1112 = vmatprep.subr.mxu0 0.0
    %v1113 = vand.u32 %v536, 4294901760
    %1114 = vmatpush1.msra.mxu0 %v1113
    %1115 = vmatprep.subr.mxu0 0.0
    %v1116 = vand.u32 %v537, 4294901760
    %1117 = vmatpush1.msra.mxu0 %v1116
    %1118 = vmatprep.subr.mxu0 0.0
    %v1119 = vand.u32 %v538, 4294901760
    %1120 = vmatpush1.msra.mxu0 %v1119
    %1121 = vmatprep.subr.mxu0 0.0
    %v1122 = vand.u32 %v539, 4294901760
    %1123 = vmatpush1.msra.mxu0 %v1122
    %1124 = vmatprep.subr.mxu0 0.0
    %v1125 = vand.u32 %v540, 4294901760
    %1126 = vmatpush1.msra.mxu0 %v1125
    %1127 = vmatprep.subr.mxu0 0.0
    %v1128 = vand.u32 %v541, 4294901760
    %1129 = vmatpush1.msra.mxu0 %v1128
    %1130 = vmatprep.subr.mxu0 0.0
    %v1131 = vand.u32 %v542, 4294901760
    %1132 = vmatpush1.msra.mxu0 %v1131
    %1133 = vmatprep.subr.mxu0 0.0
    %v1134 = vand.u32 %v543, 4294901760
    %1135 = vmatpush1.msra.mxu0 %v1134
    %1136 = vmatprep.subr.mxu0 0.0
    %v1137 = vand.u32 %v544, 4294901760
    %1138 = vmatpush1.msra.mxu0 %v1137
    %1139 = vmatprep.subr.mxu0 0.0
    %v1140 = vand.u32 %v545, 4294901760
    %1141 = vmatpush1.msra.mxu0 %v1140
    %1142 = vmatprep.subr.mxu0 0.0
    %v1143 = vand.u32 %v546, 4294901760
    %1144 = vmatpush1.msra.mxu0 %v1143
    %1145 = vmatprep.subr.mxu0 0.0
    %v1146 = vand.u32 %v547, 4294901760
    %1147 = vmatpush1.msra.mxu0 %v1146
    %1148 = vmatprep.subr.mxu0 0.0
    %v1149 = vand.u32 %v548, 4294901760
    %1150 = vmatpush1.msra.mxu0 %v1149
    %1151 = vmatprep.subr.mxu0 0.0
    %1152 = vmatpush1.msra.mxu0 0.0
    %1153 = vmatprep.subr.mxu0 0.0
    %1154 = vmatpush1.msra.mxu0 0.0
    %1155 = vmatprep.subr.mxu0 0.0
    %1156 = vmatpush1.msra.mxu0 0.0
    %1157 = vmatprep.subr.mxu0 0.0
    %1158 = vmatpush1.msra.mxu0 0.0
    %1159 = vmatprep.subr.mxu0 0.0
    %1160 = vmatpush1.msra.mxu0 0.0
    %1161 = vmatprep.subr.mxu0 0.0
    %1162 = vmatpush1.msra.mxu0 0.0
    %1163 = vmatprep.subr.mxu0 0.0
    %1164 = vmatpush1.msra.mxu0 0.0
    %1165 = vmatprep.subr.mxu0 0.0
    %1166 = vmatpush1.msra.mxu0 0.0
    %1167 = vmatprep.subr.mxu0 0.0
    %1168 = vmatpush1.msra.mxu0 0.0
    %1169 = vmatprep.subr.mxu0 0.0
    %1170 = vmatpush1.msra.mxu0 0.0
    %1171 = vmatprep.subr.mxu0 0.0
    %1172 = vmatpush1.msra.mxu0 0.0
    %1173 = vmatprep.subr.mxu0 0.0
    %1174 = vmatpush1.msra.mxu0 0.0
    %1175 = vmatprep.subr.mxu0 0.0
    %1176 = vmatpush1.msra.mxu0 0.0
    %1177 = vmatprep.subr.mxu0 0.0
    %1178 = vmatpush1.msra.mxu0 0.0
    %1179 = vmatprep.subr.mxu0 0.0
    %1180 = vmatpush1.msra.mxu0 0.0
    %1181 = vmatprep.subr.mxu0 0.0
    %1182 = vmatpush1.msra.mxu0 0.0
    %1183 = vmatprep.mubr.f32.mxu0 0.0
    %v1184 = vand.u32 %v465, 4294901760
    %1185 = vmatmul.mubr.f32.gmra.mrb[0].mxu0 %v1184
    %v1186 = vpop.f32.mrb[0].mxu0
    %v1187 = vadd.f32 %v1100, %v1186
    %v1188 = vpop.f32.mrb[0].mxu0
    %1189 = vdwg.mxu0
    %v1190 = vmul.f32 %v1187, 0.0078125
    %v1191 = vmul.f32 %v1190, %v1190
    %v1193 = vrot.slane %v1191, 7
    %v1195 = vsub.f32 %v1190, %v1193
    %v1196 = vmax.f32 %v1195, 0.0
    %v1197 = vadd.f32 %v1196, 1e-05
    %v1198 = vrsqrt.pop %v1197
    %v1200 = vrot.slane %v1198, 1
    %v1202 = vmul.f32 %v26, %v1200
    %v1203 = vmul.f32 %v1190, %v1202
    %1205 = vrot.lane.b32.xlu0 %v1203, 16
    %v1206 = vpop.permute.xlu0 %1205
    %v1208 = vsub.f32 %v26, %v1206
    %v1210 = vrot.slane %v1208, 7
    %1211 = vrot.lane.b32.xlu0 %v1210, 112
    %v1212 = vpop.permute.xlu0 %1211
    %v1214 = vsel %vm464, %v1202, %v1212
    %v1215 = vand.u32 %v484, 15
    %vm1216 = vcmp.eq.s32.totalorder %v1215, %v467
    %vm1217 = vcmp.eq.s32.totalorder %v1215, %v468
    %v1218 = vsel %vm1216, 1, 0
    %v1219 = vsel %vm1217, 1, 0
    %v1220 = vcvt.s32.f32 %v1218
    %v1221 = vcvt.s32.f32 %v1219
    %vm1222 = vcmask 130048
    %v1224 = vsel %vm1222, %v1214, 0
    %1226 = vmatprep.subr.mxu0 0.0
    %v1227 = vand.u32 %v1220, 4294901760
    %1228 = vmatpush1.msra.mxu0 %v1227
    %1229 = vmatprep.subr.mxu0 0.0
    %v1230 = vand.u32 %v1221, 4294901760
    %1231 = vmatpush1.msra.mxu0 %v1230
    %1232 = vmatprep.subr.mxu0 0.0
    %1233 = vmatpush1.msra.mxu0 0.0
    %1234 = vmatprep.subr.mxu0 0.0
    %1235 = vmatpush1.msra.mxu0 0.0
    %1236 = vmatprep.subr.mxu0 0.0
    %1237 = vmatpush1.msra.mxu0 0.0
    %1238 = vmatprep.subr.mxu0 0.0
    %1239 = vmatpush1.msra.mxu0 0.0
    %1240 = vmatprep.subr.mxu0 0.0
    %1241 = vmatpush1.msra.mxu0 0.0
    %1242 = vmatprep.subr.mxu0 0.0
    %1243 = vmatpush1.msra.mxu0 0.0
    %1244 = vmatprep.subr.mxu0 0.0
    %1245 = vmatpush1.msra.mxu0 0.0
    %1246 = vmatprep.subr.mxu0 0.0
    %1247 = vmatpush1.msra.mxu0 0.0
    %1248 = vmatprep.subr.mxu0 0.0
    %1249 = vmatpush1.msra.mxu0 0.0
    %1250 = vmatprep.subr.mxu0 0.0
    %1251 = vmatpush1.msra.mxu0 0.0
    %1252 = vmatprep.subr.mxu0 0.0
    %1253 = vmatpush1.msra.mxu0 0.0
    %1254 = vmatprep.subr.mxu0 0.0
    %1255 = vmatpush1.msra.mxu0 0.0
    %1256 = vmatprep.subr.mxu0 0.0
    %1257 = vmatpush1.msra.mxu0 0.0
    %1258 = vmatprep.subr.mxu0 0.0
    %1259 = vmatpush1.msra.mxu0 0.0
    %1260 = vmatprep.subr.mxu0 0.0
    %1261 = vmatpush1.msra.mxu0 0.0
    %1262 = vmatprep.subr.mxu0 0.0
    %1263 = vmatpush1.msra.mxu0 0.0
    %1264 = vmatprep.subr.mxu0 0.0
    %1265 = vmatpush1.msra.mxu0 0.0
    %1266 = vmatprep.subr.mxu0 0.0
    %1267 = vmatpush1.msra.mxu0 0.0
    %1268 = vmatprep.subr.mxu0 0.0
    %1269 = vmatpush1.msra.mxu0 0.0
    %1270 = vmatprep.subr.mxu0 0.0
    %1271 = vmatpush1.msra.mxu0 0.0
    %1272 = vmatprep.subr.mxu0 0.0
    %1273 = vmatpush1.msra.mxu0 0.0
    %1274 = vmatprep.subr.mxu0 0.0
    %1275 = vmatpush1.msra.mxu0 0.0
    %1276 = vmatprep.subr.mxu0 0.0
    %1277 = vmatpush1.msra.mxu0 0.0
    %1278 = vmatprep.subr.mxu0 0.0
    %1279 = vmatpush1.msra.mxu0 0.0
    %1280 = vmatprep.subr.mxu0 0.0
    %1281 = vmatpush1.msra.mxu0 0.0
    %1282 = vmatprep.subr.mxu0 0.0
    %1283 = vmatpush1.msra.mxu0 0.0
    %1284 = vmatprep.subr.mxu0 0.0
    %1285 = vmatpush1.msra.mxu0 0.0
    %1286 = vmatprep.subr.mxu0 0.0
    %1287 = vmatpush1.msra.mxu0 0.0
    %1288 = vmatprep.subr.mxu0 0.0
    %1289 = vmatpush1.msra.mxu0 0.0
    %1290 = vmatprep.subr.mxu0 0.0
    %1291 = vmatpush1.msra.mxu0 0.0
    %1292 = vmatprep.mubr.f32.mxu0 0.0
    %v1293 = vand.u32 %v1224, 4294901760
    %v1294 = vsub.f32 %v1224, %v1293
    %v1295 = vand.u32 %v1294, 4294901760
    %v1296 = vsub.f32 %v1294, %v1295
    %v1297 = vand.u32 %v1296, 4294901760
    %1298 = vmatmul.mubr.f32.gmra.mrb[0].mxu0 %v1297
    %v1299 = vpop.f32.mrb[0].mxu0
    %v1300 = vadd.f32 0.0, %v1299
    %v1301 = vpop.f32.mrb[0].mxu0
    %1302 = vdwg.mxu0
    %1303 = vmatprep.subr.mxu0 0.0
    %v1304 = vand.u32 %v1220, 4294901760
    %v1305 = vsub.f32 %v1220, %v1304
    %v1306 = vand.u32 %v1305, 4294901760
    %v1307 = vsub.f32 %v1305, %v1306
    %v1308 = vand.u32 %v1307, 4294901760
    %1309 = vmatpush1.msra.mxu0 %v1308
    %1310 = vmatprep.subr.mxu0 0.0
    %v1311 = vand.u32 %v1221, 4294901760
    %v1312 = vsub.f32 %v1221, %v1311
    %v1313 = vand.u32 %v1312, 4294901760
    %v1314 = vsub.f32 %v1312, %v1313
    %v1315 = vand.u32 %v1314, 4294901760
    %1316 = vmatpush1.msra.mxu0 %v1315
    %1317 = vmatprep.subr.mxu0 0.0
    %1318 = vmatpush1.msra.mxu0 0.0
    %1319 = vmatprep.subr.mxu0 0.0
    %1320 = vmatpush1.msra.mxu0 0.0
    %1321 = vmatprep.subr.mxu0 0.0
    %1322 = vmatpush1.msra.mxu0 0.0
    %1323 = vmatprep.subr.mxu0 0.0
    %1324 = vmatpush1.msra.mxu0 0.0
    %1325 = vmatprep.subr.mxu0 0.0
    %1326 = vmatpush1.msra.mxu0 0.0
    %1327 = vmatprep.subr.mxu0 0.0
    %1328 = vmatpush1.msra.mxu0 0.0
    %1329 = vmatprep.subr.mxu0 0.0
    %1330 = vmatpush1.msra.mxu0 0.0
    %1331 = vmatprep.subr.mxu0 0.0
    %1332 = vmatpush1.msra.mxu0 0.0
    %1333 = vmatprep.subr.mxu0 0.0
    %1334 = vmatpush1.msra.mxu0 0.0
    %1335 = vmatprep.subr.mxu0 0.0
    %1336 = vmatpush1.msra.mxu0 0.0
    %1337 = vmatprep.subr.mxu0 0.0
    %1338 = vmatpush1.msra.mxu0 0.0
    %1339 = vmatprep.subr.mxu0 0.0
    %1340 = vmatpush1.msra.mxu0 0.0
    %1341 = vmatprep.subr.mxu0 0.0
    %1342 = vmatpush1.msra.mxu0 0.0
    %1343 = vmatprep.subr.mxu0 0.0
    %1344 = vmatpush1.msra.mxu0 0.0
    %1345 = vmatprep.subr.mxu0 0.0
    %1346 = vmatpush1.msra.mxu0 0.0
    %1347 = vmatprep.subr.mxu0 0.0
    %1348 = vmatpush1.msra.mxu0 0.0
    %1349 = vmatprep.subr.mxu0 0.0
    %1350 = vmatpush1.msra.mxu0 0.0
    %1351 = vmatprep.subr.mxu0 0.0
    %1352 = vmatpush1.msra.mxu0 0.0
    %1353 = vmatprep.subr.mxu0 0.0
    %1354 = vmatpush1.msra.mxu0 0.0
    %1355 = vmatprep.subr.mxu0 0.0
    %1356 = vmatpush1.msra.mxu0 0.0
    %1357 = vmatprep.subr.mxu0 0.0
    %1358 = vmatpush1.msra.mxu0 0.0
    %1359 = vmatprep.subr.mxu0 0.0
    %1360 = vmatpush1.msra.mxu0 0.0
    %1361 = vmatprep.subr.mxu0 0.0
    %1362 = vmatpush1.msra.mxu0 0.0
    %1363 = vmatprep.subr.mxu0 0.0
    %1364 = vmatpush1.msra.mxu0 0.0
    %1365 = vmatprep.subr.mxu0 0.0
    %1366 = vmatpush1.msra.mxu0 0.0
    %1367 = vmatprep.subr.mxu0 0.0
    %1368 = vmatpush1.msra.mxu0 0.0
    %1369 = vmatprep.subr.mxu0 0.0
    %1370 = vmatpush1.msra.mxu0 0.0
    %1371 = vmatprep.subr.mxu0 0.0
    %1372 = vmatpush1.msra.mxu0 0.0
    %1373 = vmatprep.subr.mxu0 0.0
    %1374 = vmatpush1.msra.mxu0 0.0
    %1375 = vmatprep.subr.mxu0 0.0
    %1376 = vmatpush1.msra.mxu0 0.0
    %1377 = vmatprep.mubr.f32.mxu0 0.0
    %v1378 = vand.u32 %v1224, 4294901760
    %1379 = vmatmul.mubr.f32.gmra.mrb[0].mxu0 %v1378
    %v1380 = vpop.f32.mrb[0].mxu0
    %v1381 = vadd.f32 %v1300, %v1380
    %v1382 = vpop.f32.mrb[0].mxu0
    %1383 = vdwg.mxu0
    %1384 = vmatprep.subr.mxu0 0.0
    %v1385 = vand.u32 %v1220, 4294901760
    %v1386 = vsub.f32 %v1220, %v1385
    %1387 = vmatpush1.msra.mxu0 %v1386
    %1388 = vmatprep.subr.mxu0 0.0
    %v1389 = vand.u32 %v1221, 4294901760
    %v1390 = vsub.f32 %v1221, %v1389
    %1391 = vmatpush1.msra.mxu0 %v1390
    %1392 = vmatprep.subr.mxu0 0.0
    %1393 = vmatpush1.msra.mxu0 0.0
    %1394 = vmatprep.subr.mxu0 0.0
    %1395 = vmatpush1.msra.mxu0 0.0
    %1396 = vmatprep.subr.mxu0 0.0
    %1397 = vmatpush1.msra.mxu0 0.0
    %1398 = vmatprep.subr.mxu0 0.0
    %1399 = vmatpush1.msra.mxu0 0.0
    %1400 = vmatprep.subr.mxu0 0.0
    %1401 = vmatpush1.msra.mxu0 0.0
    %1402 = vmatprep.subr.mxu0 0.0
    %1403 = vmatpush1.msra.mxu0 0.0
    %1404 = vmatprep.subr.mxu0 0.0
    %1405 = vmatpush1.msra.mxu0 0.0
    %1406 = vmatprep.subr.mxu0 0.0
    %1407 = vmatpush1.msra.mxu0 0.0
    %1408 = vmatprep.subr.mxu0 0.0
    %1409 = vmatpush1.msra.mxu0 0.0
    %1410 = vmatprep.subr.mxu0 0.0
    %1411 = vmatpush1.msra.mxu0 0.0
    %1412 = vmatprep.subr.mxu0 0.0
    %1413 = vmatpush1.msra.mxu0 0.0
    %1414 = vmatprep.subr.mxu0 0.0
    %1415 = vmatpush1.msra.mxu0 0.0
    %1416 = vmatprep.subr.mxu0 0.0
    %1417 = vmatpush1.msra.mxu0 0.0
    %1418 = vmatprep.subr.mxu0 0.0
    %1419 = vmatpush1.msra.mxu0 0.0
    %1420 = vmatprep.subr.mxu0 0.0
    %1421 = vmatpush1.msra.mxu0 0.0
    %1422 = vmatprep.subr.mxu0 0.0
    %1423 = vmatpush1.msra.mxu0 0.0
    %1424 = vmatprep.subr.mxu0 0.0
    %1425 = vmatpush1.msra.mxu0 0.0
    %1426 = vmatprep.subr.mxu0 0.0
    %1427 = vmatpush1.msra.mxu0 0.0
    %1428 = vmatprep.subr.mxu0 0.0
    %1429 = vmatpush1.msra.mxu0 0.0
    %1430 = vmatprep.subr.mxu0 0.0
    %1431 = vmatpush1.msra.mxu0 0.0
    %1432 = vmatprep.subr.mxu0 0.0
    %1433 = vmatpush1.msra.mxu0 0.0
    %1434 = vmatprep.subr.mxu0 0.0
    %1435 = vmatpush1.msra.mxu0 0.0
    %1436 = vmatprep.subr.mxu0 0.0
    %1437 = vmatpush1.msra.mxu0 0.0
    %1438 = vmatprep.subr.mxu0 0.0
    %1439 = vmatpush1.msra.mxu0 0.0
    %1440 = vmatprep.subr.mxu0 0.0
    %1441 = vmatpush1.msra.mxu0 0.0
    %1442 = vmatprep.subr.mxu0 0.0
    %1443 = vmatpush1.msra.mxu0 0.0
    %1444 = vmatprep.subr.mxu0 0.0
    %1445 = vmatpush1.msra.mxu0 0.0
    %1446 = vmatprep.subr.mxu0 0.0
    %1447 = vmatpush1.msra.mxu0 0.0
    %1448 = vmatprep.subr.mxu0 0.0
    %1449 = vmatpush1.msra.mxu0 0.0
    %1450 = vmatprep.subr.mxu0 0.0
    %1451 = vmatpush1.msra.mxu0 0.0
    %1452 = vmatprep.mubr.f32.mxu0 0.0
    %v1453 = vand.u32 %v1224, 4294901760
    %v1454 = vsub.f32 %v1224, %v1453
    %1455 = vmatmul.mubr.f32.gmra.mrb[0].mxu0 %v1454
    %v1456 = vpop.f32.mrb[0].mxu0
    %v1457 = vadd.f32 %v1381, %v1456
    %v1458 = vpop.f32.mrb[0].mxu0
    %1459 = vdwg.mxu0
    %1460 = vmatprep.subr.mxu0 0.0
    %v1461 = vand.u32 %v1220, 4294901760
    %1462 = vmatpush1.msra.mxu0 %v1461
    %1463 = vmatprep.subr.mxu0 0.0
    %v1464 = vand.u32 %v1221, 4294901760
    %1465 = vmatpush1.msra.mxu0 %v1464
    %1466 = vmatprep.subr.mxu0 0.0
    %1467 = vmatpush1.msra.mxu0 0.0
    %1468 = vmatprep.subr.mxu0 0.0
    %1469 = vmatpush1.msra.mxu0 0.0
    %1470 = vmatprep.subr.mxu0 0.0
    %1471 = vmatpush1.msra.mxu0 0.0
    %1472 = vmatprep.subr.mxu0 0.0
    %1473 = vmatpush1.msra.mxu0 0.0
    %1474 = vmatprep.subr.mxu0 0.0
    %1475 = vmatpush1.msra.mxu0 0.0
    %1476 = vmatprep.subr.mxu0 0.0
    %1477 = vmatpush1.msra.mxu0 0.0
    %1478 = vmatprep.subr.mxu0 0.0
    %1479 = vmatpush1.msra.mxu0 0.0
    %1480 = vmatprep.subr.mxu0 0.0
    %1481 = vmatpush1.msra.mxu0 0.0
    %1482 = vmatprep.subr.mxu0 0.0
    %1483 = vmatpush1.msra.mxu0 0.0
    %1484 = vmatprep.subr.mxu0 0.0
    %1485 = vmatpush1.msra.mxu0 0.0
    %1486 = vmatprep.subr.mxu0 0.0
    %1487 = vmatpush1.msra.mxu0 0.0
    %1488 = vmatprep.subr.mxu0 0.0
    %1489 = vmatpush1.msra.mxu0 0.0
    %1490 = vmatprep.subr.mxu0 0.0
    %1491 = vmatpush1.msra.mxu0 0.0
    %1492 = vmatprep.subr.mxu0 0.0
    %1493 = vmatpush1.msra.mxu0 0.0
    %1494 = vmatprep.subr.mxu0 0.0
    %1495 = vmatpush1.msra.mxu0 0.0
    %1496 = vmatprep.subr.mxu0 0.0
    %1497 = vmatpush1.msra.mxu0 0.0
    %1498 = vmatprep.subr.mxu0 0.0
    %1499 = vmatpush1.msra.mxu0 0.0
    %1500 = vmatprep.subr.mxu0 0.0
    %1501 = vmatpush1.msra.mxu0 0.0
    %1502 = vmatprep.subr.mxu0 0.0
    %1503 = vmatpush1.msra.mxu0 0.0
    %1504 = vmatprep.subr.mxu0 0.0
    %1505 = vmatpush1.msra.mxu0 0.0
    %1506 = vmatprep.subr.mxu0 0.0
    %1507 = vmatpush1.msra.mxu0 0.0
    %1508 = vmatprep.subr.mxu0 0.0
    %1509 = vmatpush1.msra.mxu0 0.0
    %1510 = vmatprep.subr.mxu0 0.0
    %1511 = vmatpush1.msra.mxu0 0.0
    %1512 = vmatprep.subr.mxu0 0.0
    %1513 = vmatpush1.msra.mxu0 0.0
    %1514 = vmatprep.subr.mxu0 0.0
    %1515 = vmatpush1.msra.mxu0 0.0
    %1516 = vmatprep.subr.mxu0 0.0
    %1517 = vmatpush1.msra.mxu0 0.0
    %1518 = vmatprep.subr.mxu0 0.0
    %1519 = vmatpush1.msra.mxu0 0.0
    %1520 = vmatprep.subr.mxu0 0.0
    %1521 = vmatpush1.msra.mxu0 0.0
    %1522 = vmatprep.subr.mxu0 0.0
    %1523 = vmatpush1.msra.mxu0 0.0
    %1524 = vmatprep.subr.mxu0 0.0
    %1525 = vmatpush1.msra.mxu0 0.0
    %1526 = vmatprep.mubr.f32.mxu0 0.0
    %v1527 = vand.u32 %v1224, 4294901760
    %v1528 = vsub.f32 %v1224, %v1527
    %v1529 = vand.u32 %v1528, 4294901760
    %1530 = vmatmul.mubr.f32.gmra.mrb[0].mxu0 %v1529
    %v1531 = vpop.f32.mrb[0].mxu0
    %v1532 = vadd.f32 %v1457, %v1531
    %v1533 = vpop.f32.mrb[0].mxu0
    %1534 = vdwg.mxu0
    %1535 = vmatprep.subr.mxu0 0.0
    %v1536 = vand.u32 %v1220, 4294901760
    %v1537 = vsub.f32 %v1220, %v1536
    %v1538 = vand.u32 %v1537, 4294901760
    %1539 = vmatpush1.msra.mxu0 %v1538
    %1540 = vmatprep.subr.mxu0 0.0
    %v1541 = vand.u32 %v1221, 4294901760
    %v1542 = vsub.f32 %v1221, %v1541
    %v1543 = vand.u32 %v1542, 4294901760
    %1544 = vmatpush1.msra.mxu0 %v1543
    %1545 = vmatprep.subr.mxu0 0.0
    %1546 = vmatpush1.msra.mxu0 0.0
    %1547 = vmatprep.subr.mxu0 0.0
    %1548 = vmatpush1.msra.mxu0 0.0
    %1549 = vmatprep.subr.mxu0 0.0
    %1550 = vmatpush1.msra.mxu0 0.0
    %1551 = vmatprep.subr.mxu0 0.0
    %1552 = vmatpush1.msra.mxu0 0.0
    %1553 = vmatprep.subr.mxu0 0.0
    %1554 = vmatpush1.msra.mxu0 0.0
    %1555 = vmatprep.subr.mxu0 0.0
    %1556 = vmatpush1.msra.mxu0 0.0
    %1557 = vmatprep.subr.mxu0 0.0
    %1558 = vmatpush1.msra.mxu0 0.0
    %1559 = vmatprep.subr.mxu0 0.0
    %1560 = vmatpush1.msra.mxu0 0.0
    %1561 = vmatprep.subr.mxu0 0.0
    %1562 = vmatpush1.msra.mxu0 0.0
    %1563 = vmatprep.subr.mxu0 0.0
    %1564 = vmatpush1.msra.mxu0 0.0
    %1565 = vmatprep.subr.mxu0 0.0
    %1566 = vmatpush1.msra.mxu0 0.0
    %1567 = vmatprep.subr.mxu0 0.0
    %1568 = vmatpush1.msra.mxu0 0.0
    %1569 = vmatprep.subr.mxu0 0.0
    %1570 = vmatpush1.msra.mxu0 0.0
    %1571 = vmatprep.subr.mxu0 0.0
    %1572 = vmatpush1.msra.mxu0 0.0
    %1573 = vmatprep.subr.mxu0 0.0
    %1574 = vmatpush1.msra.mxu0 0.0
    %1575 = vmatprep.subr.mxu0 0.0
    %1576 = vmatpush1.msra.mxu0 0.0
    %1577 = vmatprep.subr.mxu0 0.0
    %1578 = vmatpush1.msra.mxu0 0.0
    %1579 = vmatprep.subr.mxu0 0.0
    %1580 = vmatpush1.msra.mxu0 0.0
    %1581 = vmatprep.subr.mxu0 0.0
    %1582 = vmatpush1.msra.mxu0 0.0
    %1583 = vmatprep.subr.mxu0 0.0
    %1584 = vmatpush1.msra.mxu0 0.0
    %1585 = vmatprep.subr.mxu0 0.0
    %1586 = vmatpush1.msra.mxu0 0.0
    %1587 = vmatprep.subr.mxu0 0.0
    %1588 = vmatpush1.msra.mxu0 0.0
    %1589 = vmatprep.subr.mxu0 0.0
    %1590 = vmatpush1.msra.mxu0 0.0
    %1591 = vmatprep.subr.mxu0 0.0
    %1592 = vmatpush1.msra.mxu0 0.0
    %1593 = vmatprep.subr.mxu0 0.0
    %1594 = vmatpush1.msra.mxu0 0.0
    %1595 = vmatprep.subr.mxu0 0.0
    %1596 = vmatpush1.msra.mxu0 0.0
    %1597 = vmatprep.subr.mxu0 0.0
    %1598 = vmatpush1.msra.mxu0 0.0
    %1599 = vmatprep.subr.mxu0 0.0
    %1600 = vmatpush1.msra.mxu0 0.0
    %1601 = vmatprep.subr.mxu0 0.0
    %1602 = vmatpush1.msra.mxu0 0.0
    %1603 = vmatprep.subr.mxu0 0.0
    %1604 = vmatpush1.msra.mxu0 0.0
    %1605 = vmatprep.mubr.f32.mxu0 0.0
    %v1606 = vand.u32 %v1224, 4294901760
    %1607 = vmatmul.mubr.f32.gmra.mrb[0].mxu0 %v1606
    %v1608 = vpop.f32.mrb[0].mxu0
    %v1609 = vadd.f32 %v1532, %v1608
    %v1610 = vpop.f32.mrb[0].mxu0
    %1611 = vdwg.mxu0
    %1612 = vmatprep.subr.mxu0 0.0
    %v1613 = vand.u32 %v1220, 4294901760
    %1614 = vmatpush1.msra.mxu0 %v1613
    %1615 = vmatprep.subr.mxu0 0.0
    %v1616 = vand.u32 %v1221, 4294901760
    %1617 = vmatpush1.msra.mxu0 %v1616
    %1618 = vmatprep.subr.mxu0 0.0
    %1619 = vmatpush1.msra.mxu0 0.0
    %1620 = vmatprep.subr.mxu0 0.0
    %1621 = vmatpush1.msra.mxu0 0.0
    %1622 = vmatprep.subr.mxu0 0.0
    %1623 = vmatpush1.msra.mxu0 0.0
    %1624 = vmatprep.subr.mxu0 0.0
    %1625 = vmatpush1.msra.mxu0 0.0
    %1626 = vmatprep.subr.mxu0 0.0
    %1627 = vmatpush1.msra.mxu0 0.0
    %1628 = vmatprep.subr.mxu0 0.0
    %1629 = vmatpush1.msra.mxu0 0.0
    %1630 = vmatprep.subr.mxu0 0.0
    %1631 = vmatpush1.msra.mxu0 0.0
    %1632 = vmatprep.subr.mxu0 0.0
    %1633 = vmatpush1.msra.mxu0 0.0
    %1634 = vmatprep.subr.mxu0 0.0
    %1635 = vmatpush1.msra.mxu0 0.0
    %1636 = vmatprep.subr.mxu0 0.0
    %1637 = vmatpush1.msra.mxu0 0.0
    %1638 = vmatprep.subr.mxu0 0.0
    %1639 = vmatpush1.msra.mxu0 0.0
    %1640 = vmatprep.subr.mxu0 0.0
    %1641 = vmatpush1.msra.mxu0 0.0
    %1642 = vmatprep.subr.mxu0 0.0
    %1643 = vmatpush1.msra.mxu0 0.0
    %1644 = vmatprep.subr.mxu0 0.0
    %1645 = vmatpush1.msra.mxu0 0.0
    %1646 = vmatprep.subr.mxu0 0.0
    %1647 = vmatpush1.msra.mxu0 0.0
    %1648 = vmatprep.subr.mxu0 0.0
    %1649 = vmatpush1.msra.mxu0 0.0
    %1650 = vmatprep.subr.mxu0 0.0
    %1651 = vmatpush1.msra.mxu0 0.0
    %1652 = vmatprep.subr.mxu0 0.0
    %1653 = vmatpush1.msra.mxu0 0.0
    %1654 = vmatprep.subr.mxu0 0.0
    %1655 = vmatpush1.msra.mxu0 0.0
    %1656 = vmatprep.subr.mxu0 0.0
    %1657 = vmatpush1.msra.mxu0 0.0
    %1658 = vmatprep.subr.mxu0 0.0
    %1659 = vmatpush1.msra.mxu0 0.0
    %1660 = vmatprep.subr.mxu0 0.0
    %1661 = vmatpush1.msra.mxu0 0.0
    %1662 = vmatprep.subr.mxu0 0.0
    %1663 = vmatpush1.msra.mxu0 0.0
    %1664 = vmatprep.subr.mxu0 0.0
    %1665 = vmatpush1.msra.mxu0 0.0
    %1666 = vmatprep.subr.mxu0 0.0
    %1667 = vmatpush1.msra.mxu0 0.0
    %1668 = vmatprep.subr.mxu0 0.0
    %1669 = vmatpush1.msra.mxu0 0.0
    %1670 = vmatprep.subr.mxu0 0.0
    %1671 = vmatpush1.msra.mxu0 0.0
    %1672 = vmatprep.subr.mxu0 0.0
    %1673 = vmatpush1.msra.mxu0 0.0
    %1674 = vmatprep.subr.mxu0 0.0
    %1675 = vmatpush1.msra.mxu0 0.0
    %1676 = vmatprep.subr.mxu0 0.0
    %1677 = vmatpush1.msra.mxu0 0.0
    %1678 = vmatprep.mubr.f32.mxu0 0.0
    %v1679 = vand.u32 %v1224, 4294901760
    %1680 = vmatmul.mubr.f32.gmra.mrb[0].mxu0 %v1679
    %v1681 = vpop.f32.mrb[0].mxu0
    %v1682 = vadd.f32 %v1609, %v1681
    %v1683 = vpop.f32.mrb[0].mxu0
    %1684 = vdwg.mxu0
    %v1685 = vlaneseq
    %v1686 = vshrl.u32 %v1685, 7
    %v1687 = vsub.s32 0, %v1686
    %v1688 = vrot.slane %v1682, %v1687
    %v1689 = vmul.f32 %v446, %v1688
    %v1690 = vmul.f32 %v447, %v1688
    %v1691 = vlaneseq
    %v1692 = vshrl.u32 %v1691, 7
    %v1693 = vsub.s32 1, %v1692
    %v1694 = vrot.slane %v1682, %v1693
    %v1695 = vadd.f32 %v1689, %v1694
    %v1696 = vadd.f32 %v1690, %v1694
    %1697 = vst [vmem:[#allocation3] sm:$0xff] 0.0
    %1698 = vst [vmem:[#allocation3 + $0x8] sm:$0xff] 0.0
    %1699 = vst [vmem:[#allocation3 + $0x10] sm:$0xf] 0.0
    %1700 = vst [vmem:[#allocation3 + $0x1] sm:$0xff] %v1695
    %1701 = vst [vmem:[#allocation3 + $0xb] sm:$0xff] %v1696
    %v1702 = vld [vmem:[#allocation3] sm:$0xff]
    %v1703 = vld [vmem:[#allocation3 + $0x8] sm:$0xff]
    %v1704 = vld [vmem:[#allocation3 + $0x10] sm:$0x3]
    %v1705 = vld [vmem:[%s3] sm:$0xff]
    %v1706 = vld [vmem:[%s3 + $0x8] sm:$0xff]
    %v1707 = vld [vmem:[%s3 + $0x10] sm:$0xff]
    %v1708 = vld [vmem:[%s3 + $0x18] sm:$0xff]
    %v1709 = vld [vmem:[%s3 + $0x20] sm:$0xff]
    %v1710 = vld [vmem:[%s3 + $0x28] sm:$0xff]
    %v1711 = vld [vmem:[%s3 + $0x30] sm:$0xff]
    %v1712 = vld [vmem:[%s3 + $0x38] sm:$0xff]
    %v1713 = vld [vmem:[%s3 + $0x40] sm:$0xff]
    %v1714 = vld [vmem:[%s3 + $0x48] sm:$0xff]
    %v1715 = vld [vmem:[%s3 + $0x50] sm:$0xff]
    %v1716 = vld [vmem:[%s3 + $0x58] sm:$0xff]
    %v1717 = vld [vmem:[%s3 + $0x60] sm:$0xff]
    %v1718 = vld [vmem:[%s3 + $0x68] sm:$0xff]
    %v1719 = vld [vmem:[%s3 + $0x70] sm:$0xff]
    %v1720 = vld [vmem:[%s3 + $0x78] sm:$0xff]
    %v1721 = vld [vmem:[%s3 + $0x80] sm:$0xff]
    %v1722 = vld [vmem:[%s3 + $0x88] sm:$0xff]
    %v1723 = vld [vmem:[%s3 + $0x90] sm:$0xff]
    %v1724 = vld [vmem:[%s3 + $0x98] sm:$0xff]
    %v1725 = vld [vmem:[%s3 + $0xa0] sm:$0xff]
    %v1726 = vld [vmem:[%s3 + $0xa8] sm:$0xff]
    %v1727 = vld [vmem:[%s3 + $0xb0] sm:$0xff]
    %v1728 = vld [vmem:[%s3 + $0xb8] sm:$0xff]
    %v1729 = vld [vmem:[%s3 + $0xc0] sm:$0xff]
    %v1730 = vld [vmem:[%s3 + $0xc8] sm:$0xff]
    %v1731 = vld [vmem:[%s3 + $0xd0] sm:$0xff]
    %v1732 = vld [vmem:[%s3 + $0xd8] sm:$0xff]
    %v1733 = vld [vmem:[%s3 + $0xe0] sm:$0xff]
    %v1734 = vld [vmem:[%s3 + $0xe8] sm:$0xff]
    %v1735 = vld [vmem:[%s3 + $0xf0] sm:$0xff]
    %v1736 = vld [vmem:[%s3 + $0xf8] sm:$0xff]
    %v1737 = vld [vmem:[#allocation3 + $0x1] sm:$0xff]
    %v1738 = vld [vmem:[#allocation3 + $0x9] sm:$0xff]
    %v1739 = vld [vmem:[#allocation3 + $0x11] sm:$0x3]
    %v1740 = vld [vmem:[%s3 + $0x100] sm:$0xff]
    %v1741 = vld [vmem:[%s3 + $0x108] sm:$0xff]
    %v1742 = vld [vmem:[%s3 + $0x110] sm:$0xff]
    %v1743 = vld [vmem:[%s3 + $0x118] sm:$0xff]
    %v1744 = vld [vmem:[%s3 + $0x120] sm:$0xff]
    %v1745 = vld [vmem:[%s3 + $0x128] sm:$0xff]
    %v1746 = vld [vmem:[%s3 + $0x130] sm:$0xff]
    %v1747 = vld [vmem:[%s3 + $0x138] sm:$0xff]
    %v1748 = vld [vmem:[%s3 + $0x140] sm:$0xff]
    %v1749 = vld [vmem:[%s3 + $0x148] sm:$0xff]
    %v1750 = vld [vmem:[%s3 + $0x150] sm:$0xff]
    %v1751 = vld [vmem:[%s3 + $0x158] sm:$0xff]
    %v1752 = vld [vmem:[%s3 + $0x160] sm:$0xff]
    %v1753 = vld [vmem:[%s3 + $0x168] sm:$0xff]
    %v1754 = vld [vmem:[%s3 + $0x170] sm:$0xff]
    %v1755 = vld [vmem:[%s3 + $0x178] sm:$0xff]
    %v1756 = vld [vmem:[%s3 + $0x180] sm:$0xff]
    %v1757 = vld [vmem:[%s3 + $0x188] sm:$0xff]
    %v1758 = vld [vmem:[%s3 + $0x190] sm:$0xff]
    %v1759 = vld [vmem:[%s3 + $0x198] sm:$0xff]
    %v1760 = vld [vmem:[%s3 + $0x1a0] sm:$0xff]
    %v1761 = vld [vmem:[%s3 + $0x1a8] sm:$0xff]
    %v1762 = vld [vmem:[%s3 + $0x1b0] sm:$0xff]
    %v1763 = vld [vmem:[%s3 + $0x1b8] sm:$0xff]
    %v1764 = vld [vmem:[%s3 + $0x1c0] sm:$0xff]
    %v1765 = vld [vmem:[%s3 + $0x1c8] sm:$0xff]
    %v1766 = vld [vmem:[%s3 + $0x1d0] sm:$0xff]
    %v1767 = vld [vmem:[%s3 + $0x1d8] sm:$0xff]
    %v1768 = vld [vmem:[%s3 + $0x1e0] sm:$0xff]
    %v1769 = vld [vmem:[%s3 + $0x1e8] sm:$0xff]
    %v1770 = vld [vmem:[%s3 + $0x1f0] sm:$0xff]
    %v1771 = vld [vmem:[%s3 + $0x1f8] sm:$0xff]
    %1772 = vmatprep.subr.mxu0 %v1741
    %1773 = vmatpush1.msra.mxu0 %v1740
    %1774 = vmatprep.subr.mxu0 %v1743
    %1775 = vmatpush1.msra.mxu0 %v1742
    %1776 = vmatprep.subr.mxu0 %v1745
    %1777 = vmatpush1.msra.mxu0 %v1744
    %1778 = vmatprep.subr.mxu0 %v1747
    %1779 = vmatpush1.msra.mxu0 %v1746
    %1780 = vmatprep.subr.mxu0 %v1749
    %1781 = vmatpush1.msra.mxu0 %v1748
    %1782 = vmatprep.subr.mxu0 %v1751
    %1783 = vmatpush1.msra.mxu0 %v1750
    %1784 = vmatprep.subr.mxu0 %v1753
    %1785 = vmatpush1.msra.mxu0 %v1752
    %1786 = vmatprep.subr.mxu0 %v1755
    %1787 = vmatpush1.msra.mxu0 %v1754
    %1788 = vmatprep.subr.mxu0 %v1757
    %1789 = vmatpush1.msra.mxu0 %v1756
    %1790 = vmatprep.subr.mxu0 %v1759
    %1791 = vmatpush1.msra.mxu0 %v1758
    %1792 = vmatprep.subr.mxu0 %v1761
    %1793 = vmatpush1.msra.mxu0 %v1760
    %1794 = vmatprep.subr.mxu0 %v1763
    %1795 = vmatpush1.msra.mxu0 %v1762
    %1796 = vmatprep.subr.mxu0 %v1765
    %1797 = vmatpush1.msra.mxu0 %v1764
    %1798 = vmatprep.subr.mxu0 %v1767
    %1799 = vmatpush1.msra.mxu0 %v1766
    %1800 = vmatprep.subr.mxu0 %v1769
    %1801 = vmatpush1.msra.mxu0 %v1768
    %1802 = vmatprep.subr.mxu0 %v1771
    %1803 = vmatpush1.msra.mxu0 %v1770
    %1804 = vmatprep.subr.mxu0 0.0
    %1805 = vmatpush1.msra.mxu0 0.0
    %1806 = vmatprep.subr.mxu0 0.0
    %1807 = vmatpush1.msra.mxu0 0.0
    %1808 = vmatprep.subr.mxu0 0.0
    %1809 = vmatpush1.msra.mxu0 0.0
    %1810 = vmatprep.subr.mxu0 0.0
    %1811 = vmatpush1.msra.mxu0 0.0
    %1812 = vmatprep.subr.mxu0 0.0
    %1813 = vmatpush1.msra.mxu0 0.0
    %1814 = vmatprep.subr.mxu0 0.0
    %1815 = vmatpush1.msra.mxu0 0.0
    %1816 = vmatprep.subr.mxu0 0.0
    %1817 = vmatpush1.msra.mxu0 0.0
    %1818 = vmatprep.subr.mxu0 0.0
    %1819 = vmatpush1.msra.mxu0 0.0
    %1820 = vmatprep.subr.mxu0 0.0
    %1821 = vmatpush1.msra.mxu0 0.0
    %1822 = vmatprep.subr.mxu0 0.0
    %1823 = vmatpush1.msra.mxu0 0.0
    %1824 = vmatprep.subr.mxu0 0.0
    %1825 = vmatpush1.msra.mxu0 0.0
    %1826 = vmatprep.subr.mxu0 0.0
    %1827 = vmatpush1.msra.mxu0 0.0
    %1828 = vmatprep.subr.mxu0 0.0
    %1829 = vmatpush1.msra.mxu0 0.0
    %1830 = vmatprep.subr.mxu0 0.0
    %1831 = vmatpush1.msra.mxu0 0.0
    %1832 = vmatprep.subr.mxu0 0.0
    %1833 = vmatpush1.msra.mxu0 0.0
    %1834 = vmatprep.subr.mxu0 0.0
    %1835 = vmatpush1.msra.mxu0 0.0
    %1836 = vmatprep.mubr.f32.mxu0 0.0
    %1837 = vmatmul.mubr.f32.gmra.mrb[0].mxu0 %v1737
    %v1838 = vpop.f32.mrb[0].mxu0
    %v1839 = vadd.f32 0.0, %v1838
    %v1840 = vpop.f32.mrb[0].mxu0
    %v1841 = vadd.f32 0.0, %v1840
    %1842 = vmatprep.mubr.f32.mxu0 0.0
    %1843 = vmatmul.mubr.f32.gmra.mrb[0].mxu0 %v1738
    %v1844 = vpop.f32.mrb[0].mxu0
    %v1845 = vadd.f32 0.0, %v1844
    %v1846 = vpop.f32.mrb[0].mxu0
    %v1847 = vadd.f32 0.0, %v1846
    %1848 = vmatprep.mubr.f32.mxu0 0.0
    %1849 = vmatmul.mubr.f32.gmra.mrb[0].mxu0 %v1739
    %v1850 = vpop.f32.mrb[0].mxu0
    %v1851 = vadd.f32 0.0, %v1850
    %v1852 = vpop.f32.mrb[0].mxu0
    %v1853 = vadd.f32 0.0, %v1852
    %1854 = vdwg.mxu0
    %1855 = vmatprep.subr.mxu0 %v1706
    %1856 = vmatpush1.msra.mxu0 %v1705
    %1857 = vmatprep.subr.mxu0 %v1708
    %1858 = vmatpush1.msra.mxu0 %v1707
    %1859 = vmatprep.subr.mxu0 %v1710
    %1860 = vmatpush1.msra.mxu0 %v1709
    %1861 = vmatprep.subr.mxu0 %v1712
    %1862 = vmatpush1.msra.mxu0 %v1711
    %1863 = vmatprep.subr.mxu0 %v1714
    %1864 = vmatpush1.msra.mxu0 %v1713
    %1865 = vmatprep.subr.mxu0 %v1716
    %1866 = vmatpush1.msra.mxu0 %v1715
    %1867 = vmatprep.subr.mxu0 %v1718
    %1868 = vmatpush1.msra.mxu0 %v1717
    %1869 = vmatprep.subr.mxu0 %v1720
    %1870 = vmatpush1.msra.mxu0 %v1719
    %1871 = vmatprep.subr.mxu0 %v1722
    %1872 = vmatpush1.msra.mxu0 %v1721
    %1873 = vmatprep.subr.mxu0 %v1724
    %1874 = vmatpush1.msra.mxu0 %v1723
    %1875 = vmatprep.subr.mxu0 %v1726
    %1876 = vmatpush1.msra.mxu0 %v1725
    %1877 = vmatprep.subr.mxu0 %v1728
    %1878 = vmatpush1.msra.mxu0 %v1727
    %1879 = vmatprep.subr.mxu0 %v1730
    %1880 = vmatpush1.msra.mxu0 %v1729
    %1881 = vmatprep.subr.mxu0 %v1732
    %1882 = vmatpush1.msra.mxu0 %v1731
    %1883 = vmatprep.subr.mxu0 %v1734
    %1884 = vmatpush1.msra.mxu0 %v1733
    %1885 = vmatprep.subr.mxu0 %v1736
    %1886 = vmatpush1.msra.mxu0 %v1735
    %1887 = vmatprep.subr.mxu0 0.0
    %1888 = vmatpush1.msra.mxu0 0.0
    %1889 = vmatprep.subr.mxu0 0.0
    %1890 = vmatpush1.msra.mxu0 0.0
    %1891 = vmatprep.subr.mxu0 0.0
    %1892 = vmatpush1.msra.mxu0 0.0
    %1893 = vmatprep.subr.mxu0 0.0
    %1894 = vmatpush1.msra.mxu0 0.0
    %1895 = vmatprep.subr.mxu0 0.0
    %1896 = vmatpush1.msra.mxu0 0.0
    %1897 = vmatprep.subr.mxu0 0.0
    %1898 = vmatpush1.msra.mxu0 0.0
    %1899 = vmatprep.subr.mxu0 0.0
    %1900 = vmatpush1.msra.mxu0 0.0
    %1901 = vmatprep.subr.mxu0 0.0
    %1902 = vmatpush1.msra.mxu0 0.0
    %1903 = vmatprep.subr.mxu0 0.0
    %1904 = vmatpush1.msra.mxu0 0.0
    %1905 = vmatprep.subr.mxu0 0.0
    %1906 = vmatpush1.msra.mxu0 0.0
    %1907 = vmatprep.subr.mxu0 0.0
    %1908 = vmatpush1.msra.mxu0 0.0
    %1909 = vmatprep.subr.mxu0 0.0
    %1910 = vmatpush1.msra.mxu0 0.0
    %1911 = vmatprep.subr.mxu0 0.0
    %1912 = vmatpush1.msra.mxu0 0.0
    %1913 = vmatprep.subr.mxu0 0.0
    %1914 = vmatpush1.msra.mxu0 0.0
    %1915 = vmatprep.subr.mxu0 0.0
    %1916 = vmatpush1.msra.mxu0 0.0
    %1917 = vmatprep.subr.mxu0 0.0
    %1918 = vmatpush1.msra.mxu0 0.0
    %1919 = vmatprep.mubr.f32.mxu0 0.0
    %1920 = vmatmul.mubr.f32.gmra.mrb[0].mxu0 %v1702
    %v1921 = vpop.f32.mrb[0].mxu0
    %v1922 = vadd.f32 %v1839, %v1921
    %v1923 = vpop.f32.mrb[0].mxu0
    %v1924 = vadd.f32 %v1841, %v1923
    %1925 = vmatprep.mubr.f32.mxu0 0.0
    %1926 = vmatmul.mubr.f32.gmra.mrb[0].mxu0 %v1703
    %v1927 = vpop.f32.mrb[0].mxu0
    %v1928 = vadd.f32 %v1845, %v1927
    %v1929 = vpop.f32.mrb[0].mxu0
    %v1930 = vadd.f32 %v1847, %v1929
    %1931 = vmatprep.mubr.f32.mxu0 0.0
    %1932 = vmatmul.mubr.f32.gmra.mrb[0].mxu0 %v1704
    %v1933 = vpop.f32.mrb[0].mxu0
    %v1934 = vadd.f32 %v1851, %v1933
    %v1935 = vpop.f32.mrb[0].mxu0
    %v1936 = vadd.f32 %v1853, %v1935
    %1937 = vdwg.mxu0
    %v1938 = vld [vmem:[#allocation3 + $0x2] sm:$0xff]
    %v1939 = vld [vmem:[#allocation3 + $0xa] sm:$0xff]
    %v1940 = vld [vmem:[#allocation3 + $0x12] sm:$0x3]
    %v1941 = vld [vmem:[%s3 + $0x200] sm:$0xff]
    %v1942 = vld [vmem:[%s3 + $0x208] sm:$0xff]
    %v1943 = vld [vmem:[%s3 + $0x210] sm:$0xff]
    %v1944 = vld [vmem:[%s3 + $0x218] sm:$0xff]
    %v1945 = vld [vmem:[%s3 + $0x220] sm:$0xff]
    %v1946 = vld [vmem:[%s3 + $0x228] sm:$0xff]
    %v1947 = vld [vmem:[%s3 + $0x230] sm:$0xff]
    %v1948 = vld [vmem:[%s3 + $0x238] sm:$0xff]
    %v1949 = vld [vmem:[%s3 + $0x240] sm:$0xff]
    %v1950 = vld [vmem:[%s3 + $0x248] sm:$0xff]
    %v1951 = vld [vmem:[%s3 + $0x250] sm:$0xff]
    %v1952 = vld [vmem:[%s3 + $0x258] sm:$0xff]
    %v1953 = vld [vmem:[%s3 + $0x260] sm:$0xff]
    %v1954 = vld [vmem:[%s3 + $0x268] sm:$0xff]
    %v1955 = vld [vmem:[%s3 + $0x270] sm:$0xff]
    %v1956 = vld [vmem:[%s3 + $0x278] sm:$0xff]
    %v1957 = vld [vmem:[%s3 + $0x280] sm:$0xff]
    %v1958 = vld [vmem:[%s3 + $0x288] sm:$0xff]
    %v1959 = vld [vmem:[%s3 + $0x290] sm:$0xff]
    %v1960 = vld [vmem:[%s3 + $0x298] sm:$0xff]
    %v1961 = vld [vmem:[%s3 + $0x2a0] sm:$0xff]
    %v1962 = vld [vmem:[%s3 + $0x2a8] sm:$0xff]
    %v1963 = vld [vmem:[%s3 + $0x2b0] sm:$0xff]
    %v1964 = vld [vmem:[%s3 + $0x2b8] sm:$0xff]
    %v1965 = vld [vmem:[%s3 + $0x2c0] sm:$0xff]
    %v1966 = vld [vmem:[%s3 + $0x2c8] sm:$0xff]
    %v1967 = vld [vmem:[%s3 + $0x2d0] sm:$0xff]
    %v1968 = vld [vmem:[%s3 + $0x2d8] sm:$0xff]
    %v1969 = vld [vmem:[%s3 + $0x2e0] sm:$0xff]
    %v1970 = vld [vmem:[%s3 + $0x2e8] sm:$0xff]
    %v1971 = vld [vmem:[%s3 + $0x2f0] sm:$0xff]
    %v1972 = vld [vmem:[%s3 + $0x2f8] sm:$0xff]
    %1973 = vmatprep.subr.mxu0 %v1942
    %1974 = vmatpush1.msra.mxu0 %v1941
    %1975 = vmatprep.subr.mxu0 %v1944
    %1976 = vmatpush1.msra.mxu0 %v1943
    %1977 = vmatprep.subr.mxu0 %v1946
    %1978 = vmatpush1.msra.mxu0 %v1945
    %1979 = vmatprep.subr.mxu0 %v1948
    %1980 = vmatpush1.msra.mxu0 %v1947
    %1981 = vmatprep.subr.mxu0 %v1950
    %1982 = vmatpush1.msra.mxu0 %v1949
    %1983 = vmatprep.subr.mxu0 %v1952
    %1984 = vmatpush1.msra.mxu0 %v1951
    %1985 = vmatprep.subr.mxu0 %v1954
    %1986 = vmatpush1.msra.mxu0 %v1953
    %1987 = vmatprep.subr.mxu0 %v1956
    %1988 = vmatpush1.msra.mxu0 %v1955
    %1989 = vmatprep.subr.mxu0 %v1958
    %1990 = vmatpush1.msra.mxu0 %v1957
    %1991 = vmatprep.subr.mxu0 %v1960
    %1992 = vmatpush1.msra.mxu0 %v1959
    %1993 = vmatprep.subr.mxu0 %v1962
    %1994 = vmatpush1.msra.mxu0 %v1961
    %1995 = vmatprep.subr.mxu0 %v1964
    %1996 = vmatpush1.msra.mxu0 %v1963
    %1997 = vmatprep.subr.mxu0 %v1966
    %1998 = vmatpush1.msra.mxu0 %v1965
    %1999 = vmatprep.subr.mxu0 %v1968
    %2000 = vmatpush1.msra.mxu0 %v1967
    %2001 = vmatprep.subr.mxu0 %v1970
    %2002 = vmatpush1.msra.mxu0 %v1969
    %2003 = vmatprep.subr.mxu0 %v1972
    %2004 = vmatpush1.msra.mxu0 %v1971
    %2005 = vmatprep.subr.mxu0 0.0
    %2006 = vmatpush1.msra.mxu0 0.0
    %2007 = vmatprep.subr.mxu0 0.0
    %2008 = vmatpush1.msra.mxu0 0.0
    %2009 = vmatprep.subr.mxu0 0.0
    %2010 = vmatpush1.msra.mxu0 0.0
    %2011 = vmatprep.subr.mxu0 0.0
    %2012 = vmatpush1.msra.mxu0 0.0
    %2013 = vmatprep.subr.mxu0 0.0
    %2014 = vmatpush1.msra.mxu0 0.0
    %2015 = vmatprep.subr.mxu0 0.0
    %2016 = vmatpush1.msra.mxu0 0.0
    %2017 = vmatprep.subr.mxu0 0.0
    %2018 = vmatpush1.msra.mxu0 0.0
    %2019 = vmatprep.subr.mxu0 0.0
    %2020 = vmatpush1.msra.mxu0 0.0
    %2021 = vmatprep.subr.mxu0 0.0
    %2022 = vmatpush1.msra.mxu0 0.0
    %2023 = vmatprep.subr.mxu0 0.0
    %2024 = vmatpush1.msra.mxu0 0.0
    %2025 = vmatprep.subr.mxu0 0.0
    %2026 = vmatpush1.msra.mxu0 0.0
    %2027 = vmatprep.subr.mxu0 0.0
    %2028 = vmatpush1.msra.mxu0 0.0
    %2029 = vmatprep.subr.mxu0 0.0
    %2030 = vmatpush1.msra.mxu0 0.0
    %2031 = vmatprep.subr.mxu0 0.0
    %2032 = vmatpush1.msra.mxu0 0.0
    %2033 = vmatprep.subr.mxu0 0.0
    %2034 = vmatpush1.msra.mxu0 0.0
    %2035 = vmatprep.subr.mxu0 0.0
    %2036 = vmatpush1.msra.mxu0 0.0
    %2037 = vmatprep.mubr.f32.mxu0 0.0
    %2038 = vmatmul.mubr.f32.gmra.mrb[0].mxu0 %v1938
    %v2039 = vpop.f32.mrb[0].mxu0
    %v2040 = vadd.f32 0.0, %v2039
    %v2041 = vpop.f32.mrb[0].mxu0
    %v2042 = vadd.f32 0.0, %v2041
    %2043 = vmatprep.mubr.f32.mxu0 0.0
    %2044 = vmatmul.mubr.f32.gmra.mrb[0].mxu0 %v1939
    %v2045 = vpop.f32.mrb[0].mxu0
    %v2046 = vadd.f32 0.0, %v2045
    %v2047 = vpop.f32.mrb[0].mxu0
    %v2048 = vadd.f32 0.0, %v2047
    %2049 = vmatprep.mubr.f32.mxu0 0.0
    %2050 = vmatmul.mubr.f32.gmra.mrb[0].mxu0 %v1940
    %v2051 = vpop.f32.mrb[0].mxu0
    %v2052 = vadd.f32 0.0, %v2051
    %v2053 = vpop.f32.mrb[0].mxu0
    %v2054 = vadd.f32 0.0, %v2053
    %2055 = vdwg.mxu0
    %v2056 = vadd.f32 %v1922, %v2040
    %v2057 = vadd.f32 %v1924, %v2042
    %v2058 = vadd.f32 %v1928, %v2046
    %v2059 = vadd.f32 %v1930, %v2048
    %v2060 = vadd.f32 %v1934, %v2052
    %v2061 = vadd.f32 %v1936, %v2054
    %v2062 = vmax.f32 %v2056, %v2057
    %2063 = vst [vmem:[#allocation4] sm:$0xff] %v2062
    %v2064 = vmax.f32 %v2058, %v2059
    %v2065 = vmax.f32 %v2060, %v2061
    %2066 = vst [vmem:[#allocation4 + $0x6] sm:$0xfc] %v2064
    %2067 = vst [vmem:[#allocation4 + $0xe] sm:$0x3] %v2065
    %v2068 = vld [vmem:[#allocation4] ss:$2 sm:$0xff]
    %s2069 = scalar_lea.vmem [#allocation4], 1
    %v2070 = vld [vmem:[%s2069] ss:$2 sm:$0xff]
    %v2071 = vmax.f32 %v2068, %v2070
    %v2072 = vlaneseq
    %v2073 = vshrl.u32 %v2072, 7
    %v2074 = vsub.s32 0, %v2073
    %v2075 = vrot.slane %v25, %v2074
    %v2076 = vadd.f32 %v2071, %v2075
    %v2077 = vmax.f32 %v2076, 0.0
    %v2078 = vrot.slane %v2077, 4
    %v2079 = vadd.f32 %v2077, %v2078
    %v2080 = vrot.slane %v2079, 2
    %v2081 = vadd.f32 %v2079, %v2080
    %v2082 = vrot.slane %v2081, 1
    %v2083 = vadd.f32 %v2081, %v2082
    %v2084 = vmul.f32 %v2077, %v2077
    %v2085 = vrot.slane %v2084, 4
    %v2086 = vadd.f32 %v2084, %v2085
    %v2087 = vrot.slane %v2086, 2
    %v2088 = vadd.f32 %v2086, %v2087
    %v2089 = vrot.slane %v2088, 1
    %v2090 = vadd.f32 %v2088, %v2089
    %v2091 = vsel %vm464, %v2083, %v2090
    %v2092 = vand.u32 %v467, 31
    %v2093 = vand.u32 %v468, 31
    %v2094 = vand.u32 %v469, 31
    %v2095 = vand.u32 %v470, 31
    %v2096 = vand.u32 %v471, 31
    %v2097 = vand.u32 %v472, 31
    %v2098 = vand.u32 %v473, 31
    %v2099 = vand.u32 %v474, 31
    %v2100 = vand.u32 %v475, 31
    %v2101 = vand.u32 %v476, 31
    %v2102 = vand.u32 %v477, 31
    %v2103 = vand.u32 %v478, 31
    %v2104 = vand.u32 %v479, 31
    %v2105 = vand.u32 %v480, 31
    %v2106 = vand.u32 %v481, 31
    %v2107 = vand.u32 %v482, 31
    %vm2108 = vcmp.eq.s32.totalorder %v2092, %v484
    %vm2109 = vcmp.eq.s32.totalorder %v2093, %v484
    %vm2110 = vcmp.eq.s32.totalorder %v2094, %v484
    %vm2111 = vcmp.eq.s32.totalorder %v2095, %v484
    %vm2112 = vcmp.eq.s32.totalorder %v2096, %v484
    %vm2113 = vcmp.eq.s32.totalorder %v2097, %v484
    %vm2114 = vcmp.eq.s32.totalorder %v2098, %v484
    %vm2115 = vcmp.eq.s32.totalorder %v2099, %v484
    %vm2116 = vcmp.eq.s32.totalorder %v2100, %v484
    %vm2117 = vcmp.eq.s32.totalorder %v2101, %v484
    %vm2118 = vcmp.eq.s32.totalorder %v2102, %v484
    %vm2119 = vcmp.eq.s32.totalorder %v2103, %v484
    %vm2120 = vcmp.eq.s32.totalorder %v2104, %v484
    %vm2121 = vcmp.eq.s32.totalorder %v2105, %v484
    %vm2122 = vcmp.eq.s32.totalorder %v2106, %v484
    %vm2123 = vcmp.eq.s32.totalorder %v2107, %v484
    %v2124 = vsel %vm2108, 1, 0
    %v2125 = vsel %vm2109, 1, 0
    %v2126 = vsel %vm2110, 1, 0
    %v2127 = vsel %vm2111, 1, 0
    %v2128 = vsel %vm2112, 1, 0
    %v2129 = vsel %vm2113, 1, 0
    %v2130 = vsel %vm2114, 1, 0
    %v2131 = vsel %vm2115, 1, 0
    %v2132 = vsel %vm2116, 1, 0
    %v2133 = vsel %vm2117, 1, 0
    %v2134 = vsel %vm2118, 1, 0
    %v2135 = vsel %vm2119, 1, 0
    %v2136 = vsel %vm2120, 1, 0
    %v2137 = vsel %vm2121, 1, 0
    %v2138 = vsel %vm2122, 1, 0
    %v2139 = vsel %vm2123, 1, 0
    %v2140 = vcvt.s32.f32 %v2124
    %v2141 = vcvt.s32.f32 %v2125
    %v2142 = vcvt.s32.f32 %v2126
    %v2143 = vcvt.s32.f32 %v2127
    %v2144 = vcvt.s32.f32 %v2128
    %v2145 = vcvt.s32.f32 %v2129
    %v2146 = vcvt.s32.f32 %v2130
    %v2147 = vcvt.s32.f32 %v2131
    %v2148 = vcvt.s32.f32 %v2132
    %v2149 = vcvt.s32.f32 %v2133
    %v2150 = vcvt.s32.f32 %v2134
    %v2151 = vcvt.s32.f32 %v2135
    %v2152 = vcvt.s32.f32 %v2136
    %v2153 = vcvt.s32.f32 %v2137
    %v2154 = vcvt.s32.f32 %v2138
    %v2155 = vcvt.s32.f32 %v2139
    %2156 = vmatprep.subr.mxu0 0.0
    %v2157 = vand.u32 %v2140, 4294901760
    %2158 = vmatpush1.msra.mxu0 %v2157
    %2159 = vmatprep.subr.mxu0 0.0
    %v2160 = vand.u32 %v2141, 4294901760
    %2161 = vmatpush1.msra.mxu0 %v2160
    %2162 = vmatprep.subr.mxu0 0.0
    %v2163 = vand.u32 %v2142, 4294901760
    %2164 = vmatpush1.msra.mxu0 %v2163
    %2165 = vmatprep.subr.mxu0 0.0
    %v2166 = vand.u32 %v2143, 4294901760
    %2167 = vmatpush1.msra.mxu0 %v2166
    %2168 = vmatprep.subr.mxu0 0.0
    %v2169 = vand.u32 %v2144, 4294901760
    %2170 = vmatpush1.msra.mxu0 %v2169
    %2171 = vmatprep.subr.mxu0 0.0
    %v2172 = vand.u32 %v2145, 4294901760
    %2173 = vmatpush1.msra.mxu0 %v2172
    %2174 = vmatprep.subr.mxu0 0.0
    %v2175 = vand.u32 %v2146, 4294901760
    %2176 = vmatpush1.msra.mxu0 %v2175
    %2177 = vmatprep.subr.mxu0 0.0
    %v2178 = vand.u32 %v2147, 4294901760
    %2179 = vmatpush1.msra.mxu0 %v2178
    %2180 = vmatprep.subr.mxu0 0.0
    %v2181 = vand.u32 %v2148, 4294901760
    %2182 = vmatpush1.msra.mxu0 %v2181
    %2183 = vmatprep.subr.mxu0 0.0
    %v2184 = vand.u32 %v2149, 4294901760
    %2185 = vmatpush1.msra.mxu0 %v2184
    %2186 = vmatprep.subr.mxu0 0.0
    %v2187 = vand.u32 %v2150, 4294901760
    %2188 = vmatpush1.msra.mxu0 %v2187
    %2189 = vmatprep.subr.mxu0 0.0
    %v2190 = vand.u32 %v2151, 4294901760
    %2191 = vmatpush1.msra.mxu0 %v2190
    %2192 = vmatprep.subr.mxu0 0.0
    %v2193 = vand.u32 %v2152, 4294901760
    %2194 = vmatpush1.msra.mxu0 %v2193
    %2195 = vmatprep.subr.mxu0 0.0
    %v2196 = vand.u32 %v2153, 4294901760
    %2197 = vmatpush1.msra.mxu0 %v2196
    %2198 = vmatprep.subr.mxu0 0.0
    %v2199 = vand.u32 %v2154, 4294901760
    %2200 = vmatpush1.msra.mxu0 %v2199
    %2201 = vmatprep.subr.mxu0 0.0
    %v2202 = vand.u32 %v2155, 4294901760
    %2203 = vmatpush1.msra.mxu0 %v2202
    %2204 = vmatprep.subr.mxu0 0.0
    %2205 = vmatpush1.msra.mxu0 0.0
    %2206 = vmatprep.subr.mxu0 0.0
    %2207 = vmatpush1.msra.mxu0 0.0
    %2208 = vmatprep.subr.mxu0 0.0
    %2209 = vmatpush1.msra.mxu0 0.0
    %2210 = vmatprep.subr.mxu0 0.0
    %2211 = vmatpush1.msra.mxu0 0.0
    %2212 = vmatprep.subr.mxu0 0.0
    %2213 = vmatpush1.msra.mxu0 0.0
    %2214 = vmatprep.subr.mxu0 0.0
    %2215 = vmatpush1.msra.mxu0 0.0
    %2216 = vmatprep.subr.mxu0 0.0
    %2217 = vmatpush1.msra.mxu0 0.0
    %2218 = vmatprep.subr.mxu0 0.0
    %2219 = vmatpush1.msra.mxu0 0.0
    %2220 = vmatprep.subr.mxu0 0.0
    %2221 = vmatpush1.msra.mxu0 0.0
    %2222 = vmatprep.subr.mxu0 0.0
    %2223 = vmatpush1.msra.mxu0 0.0
    %2224 = vmatprep.subr.mxu0 0.0
    %2225 = vmatpush1.msra.mxu0 0.0
    %2226 = vmatprep.subr.mxu0 0.0
    %2227 = vmatpush1.msra.mxu0 0.0
    %2228 = vmatprep.subr.mxu0 0.0
    %2229 = vmatpush1.msra.mxu0 0.0
    %2230 = vmatprep.subr.mxu0 0.0
    %2231 = vmatpush1.msra.mxu0 0.0
    %2232 = vmatprep.subr.mxu0 0.0
    %2233 = vmatpush1.msra.mxu0 0.0
    %2234 = vmatprep.subr.mxu0 0.0
    %2235 = vmatpush1.msra.mxu0 0.0
    %2236 = vmatprep.mubr.f32.mxu0 0.0
    %v2237 = vand.u32 %v2091, 4294901760
    %v2238 = vsub.f32 %v2091, %v2237
    %v2239 = vand.u32 %v2238, 4294901760
    %v2240 = vsub.f32 %v2238, %v2239
    %v2241 = vand.u32 %v2240, 4294901760
    %2242 = vmatmul.mubr.f32.gmra.mrb[0].mxu0 %v2241
    %v2243 = vpop.f32.mrb[0].mxu0
    %v2244 = vadd.f32 0.0, %v2243
    %v2245 = vpop.f32.mrb[0].mxu0
    %2246 = vdwg.mxu0
    %2247 = vmatprep.subr.mxu0 0.0
    %v2248 = vand.u32 %v2140, 4294901760
    %v2249 = vsub.f32 %v2140, %v2248
    %v2250 = vand.u32 %v2249, 4294901760
    %v2251 = vsub.f32 %v2249, %v2250
    %v2252 = vand.u32 %v2251, 4294901760
    %2253 = vmatpush1.msra.mxu0 %v2252
    %2254 = vmatprep.subr.mxu0 0.0
    %v2255 = vand.u32 %v2141, 4294901760
    %v2256 = vsub.f32 %v2141, %v2255
    %v2257 = vand.u32 %v2256, 4294901760
    %v2258 = vsub.f32 %v2256, %v2257
    %v2259 = vand.u32 %v2258, 4294901760
    %2260 = vmatpush1.msra.mxu0 %v2259
    %2261 = vmatprep.subr.mxu0 0.0
    %v2262 = vand.u32 %v2142, 4294901760
    %v2263 = vsub.f32 %v2142, %v2262
    %v2264 = vand.u32 %v2263, 4294901760
    %v2265 = vsub.f32 %v2263, %v2264
    %v2266 = vand.u32 %v2265, 4294901760
    %2267 = vmatpush1.msra.mxu0 %v2266
    %2268 = vmatprep.subr.mxu0 0.0
    %v2269 = vand.u32 %v2143, 4294901760
    %v2270 = vsub.f32 %v2143, %v2269
    %v2271 = vand.u32 %v2270, 4294901760
    %v2272 = vsub.f32 %v2270, %v2271
    %v2273 = vand.u32 %v2272, 4294901760
    %2274 = vmatpush1.msra.mxu0 %v2273
    %2275 = vmatprep.subr.mxu0 0.0
    %v2276 = vand.u32 %v2144, 4294901760
    %v2277 = vsub.f32 %v2144, %v2276
    %v2278 = vand.u32 %v2277, 4294901760
    %v2279 = vsub.f32 %v2277, %v2278
    %v2280 = vand.u32 %v2279, 4294901760
    %2281 = vmatpush1.msra.mxu0 %v2280
    %2282 = vmatprep.subr.mxu0 0.0
    %v2283 = vand.u32 %v2145, 4294901760
    %v2284 = vsub.f32 %v2145, %v2283
    %v2285 = vand.u32 %v2284, 4294901760
    %v2286 = vsub.f32 %v2284, %v2285
    %v2287 = vand.u32 %v2286, 4294901760
    %2288 = vmatpush1.msra.mxu0 %v2287
    %2289 = vmatprep.subr.mxu0 0.0
    %v2290 = vand.u32 %v2146, 4294901760
    %v2291 = vsub.f32 %v2146, %v2290
    %v2292 = vand.u32 %v2291, 4294901760
    %v2293 = vsub.f32 %v2291, %v2292
    %v2294 = vand.u32 %v2293, 4294901760
    %2295 = vmatpush1.msra.mxu0 %v2294
    %2296 = vmatprep.subr.mxu0 0.0
    %v2297 = vand.u32 %v2147, 4294901760
    %v2298 = vsub.f32 %v2147, %v2297
    %v2299 = vand.u32 %v2298, 4294901760
    %v2300 = vsub.f32 %v2298, %v2299
    %v2301 = vand.u32 %v2300, 4294901760
    %2302 = vmatpush1.msra.mxu0 %v2301
    %2303 = vmatprep.subr.mxu0 0.0
    %v2304 = vand.u32 %v2148, 4294901760
    %v2305 = vsub.f32 %v2148, %v2304
    %v2306 = vand.u32 %v2305, 4294901760
    %v2307 = vsub.f32 %v2305, %v2306
    %v2308 = vand.u32 %v2307, 4294901760
    %2309 = vmatpush1.msra.mxu0 %v2308
    %2310 = vmatprep.subr.mxu0 0.0
    %v2311 = vand.u32 %v2149, 4294901760
    %v2312 = vsub.f32 %v2149, %v2311
    %v2313 = vand.u32 %v2312, 4294901760
    %v2314 = vsub.f32 %v2312, %v2313
    %v2315 = vand.u32 %v2314, 4294901760
    %2316 = vmatpush1.msra.mxu0 %v2315
    %2317 = vmatprep.subr.mxu0 0.0
    %v2318 = vand.u32 %v2150, 4294901760
    %v2319 = vsub.f32 %v2150, %v2318
    %v2320 = vand.u32 %v2319, 4294901760
    %v2321 = vsub.f32 %v2319, %v2320
    %v2322 = vand.u32 %v2321, 4294901760
    %2323 = vmatpush1.msra.mxu0 %v2322
    %2324 = vmatprep.subr.mxu0 0.0
    %v2325 = vand.u32 %v2151, 4294901760
    %v2326 = vsub.f32 %v2151, %v2325
    %v2327 = vand.u32 %v2326, 4294901760
    %v2328 = vsub.f32 %v2326, %v2327
    %v2329 = vand.u32 %v2328, 4294901760
    %2330 = vmatpush1.msra.mxu0 %v2329
    %2331 = vmatprep.subr.mxu0 0.0
    %v2332 = vand.u32 %v2152, 4294901760
    %v2333 = vsub.f32 %v2152, %v2332
    %v2334 = vand.u32 %v2333, 4294901760
    %v2335 = vsub.f32 %v2333, %v2334
    %v2336 = vand.u32 %v2335, 4294901760
    %2337 = vmatpush1.msra.mxu0 %v2336
    %2338 = vmatprep.subr.mxu0 0.0
    %v2339 = vand.u32 %v2153, 4294901760
    %v2340 = vsub.f32 %v2153, %v2339
    %v2341 = vand.u32 %v2340, 4294901760
    %v2342 = vsub.f32 %v2340, %v2341
    %v2343 = vand.u32 %v2342, 4294901760
    %2344 = vmatpush1.msra.mxu0 %v2343
    %2345 = vmatprep.subr.mxu0 0.0
    %v2346 = vand.u32 %v2154, 4294901760
    %v2347 = vsub.f32 %v2154, %v2346
    %v2348 = vand.u32 %v2347, 4294901760
    %v2349 = vsub.f32 %v2347, %v2348
    %v2350 = vand.u32 %v2349, 4294901760
    %2351 = vmatpush1.msra.mxu0 %v2350
    %2352 = vmatprep.subr.mxu0 0.0
    %v2353 = vand.u32 %v2155, 4294901760
    %v2354 = vsub.f32 %v2155, %v2353
    %v2355 = vand.u32 %v2354, 4294901760
    %v2356 = vsub.f32 %v2354, %v2355
    %v2357 = vand.u32 %v2356, 4294901760
    %2358 = vmatpush1.msra.mxu0 %v2357
    %2359 = vmatprep.subr.mxu0 0.0
    %2360 = vmatpush1.msra.mxu0 0.0
    %2361 = vmatprep.subr.mxu0 0.0
    %2362 = vmatpush1.msra.mxu0 0.0
    %2363 = vmatprep.subr.mxu0 0.0
    %2364 = vmatpush1.msra.mxu0 0.0
    %2365 = vmatprep.subr.mxu0 0.0
    %2366 = vmatpush1.msra.mxu0 0.0
    %2367 = vmatprep.subr.mxu0 0.0
    %2368 = vmatpush1.msra.mxu0 0.0
    %2369 = vmatprep.subr.mxu0 0.0
    %2370 = vmatpush1.msra.mxu0 0.0
    %2371 = vmatprep.subr.mxu0 0.0
    %2372 = vmatpush1.msra.mxu0 0.0
    %2373 = vmatprep.subr.mxu0 0.0
    %2374 = vmatpush1.msra.mxu0 0.0
    %2375 = vmatprep.subr.mxu0 0.0
    %2376 = vmatpush1.msra.mxu0 0.0
    %2377 = vmatprep.subr.mxu0 0.0
    %2378 = vmatpush1.msra.mxu0 0.0
    %2379 = vmatprep.subr.mxu0 0.0
    %2380 = vmatpush1.msra.mxu0 0.0
    %2381 = vmatprep.subr.mxu0 0.0
    %2382 = vmatpush1.msra.mxu0 0.0
    %2383 = vmatprep.subr.mxu0 0.0
    %2384 = vmatpush1.msra.mxu0 0.0
    %2385 = vmatprep.subr.mxu0 0.0
    %2386 = vmatpush1.msra.mxu0 0.0
    %2387 = vmatprep.subr.mxu0 0.0
    %2388 = vmatpush1.msra.mxu0 0.0
    %2389 = vmatprep.subr.mxu0 0.0
    %2390 = vmatpush1.msra.mxu0 0.0
    %2391 = vmatprep.mubr.f32.mxu0 0.0
    %v2392 = vand.u32 %v2091, 4294901760
    %2393 = vmatmul.mubr.f32.gmra.mrb[0].mxu0 %v2392
    %v2394 = vpop.f32.mrb[0].mxu0
    %v2395 = vadd.f32 %v2244, %v2394
    %v2396 = vpop.f32.mrb[0].mxu0
    %2397 = vdwg.mxu0
    %2398 = vmatprep.subr.mxu0 0.0
    %v2399 = vand.u32 %v2140, 4294901760
    %v2400 = vsub.f32 %v2140, %v2399
    %2401 = vmatpush1.msra.mxu0 %v2400
    %2402 = vmatprep.subr.mxu0 0.0
    %v2403 = vand.u32 %v2141, 4294901760
    %v2404 = vsub.f32 %v2141, %v2403
    %2405 = vmatpush1.msra.mxu0 %v2404
    %2406 = vmatprep.subr.mxu0 0.0
    %v2407 = vand.u32 %v2142, 4294901760
    %v2408 = vsub.f32 %v2142, %v2407
    %2409 = vmatpush1.msra.mxu0 %v2408
    %2410 = vmatprep.subr.mxu0 0.0
    %v2411 = vand.u32 %v2143, 4294901760
    %v2412 = vsub.f32 %v2143, %v2411
    %2413 = vmatpush1.msra.mxu0 %v2412
    %2414 = vmatprep.subr.mxu0 0.0
    %v2415 = vand.u32 %v2144, 4294901760
    %v2416 = vsub.f32 %v2144, %v2415
    %2417 = vmatpush1.msra.mxu0 %v2416
    %2418 = vmatprep.subr.mxu0 0.0
    %v2419 = vand.u32 %v2145, 4294901760
    %v2420 = vsub.f32 %v2145, %v2419
    %2421 = vmatpush1.msra.mxu0 %v2420
    %2422 = vmatprep.subr.mxu0 0.0
    %v2423 = vand.u32 %v2146, 4294901760
    %v2424 = vsub.f32 %v2146, %v2423
    %2425 = vmatpush1.msra.mxu0 %v2424
    %2426 = vmatprep.subr.mxu0 0.0
    %v2427 = vand.u32 %v2147, 4294901760
    %v2428 = vsub.f32 %v2147, %v2427
    %2429 = vmatpush1.msra.mxu0 %v2428
    %2430 = vmatprep.subr.mxu0 0.0
    %v2431 = vand.u32 %v2148, 4294901760
    %v2432 = vsub.f32 %v2148, %v2431
    %2433 = vmatpush1.msra.mxu0 %v2432
    %2434 = vmatprep.subr.mxu0 0.0
    %v2435 = vand.u32 %v2149, 4294901760
    %v2436 = vsub.f32 %v2149, %v2435
    %2437 = vmatpush1.msra.mxu0 %v2436
    %2438 = vmatprep.subr.mxu0 0.0
    %v2439 = vand.u32 %v2150, 4294901760
    %v2440 = vsub.f32 %v2150, %v2439
    %2441 = vmatpush1.msra.mxu0 %v2440
    %2442 = vmatprep.subr.mxu0 0.0
    %v2443 = vand.u32 %v2151, 4294901760
    %v2444 = vsub.f32 %v2151, %v2443
    %2445 = vmatpush1.msra.mxu0 %v2444
    %2446 = vmatprep.subr.mxu0 0.0
    %v2447 = vand.u32 %v2152, 4294901760
    %v2448 = vsub.f32 %v2152, %v2447
    %2449 = vmatpush1.msra.mxu0 %v2448
    %2450 = vmatprep.subr.mxu0 0.0
    %v2451 = vand.u32 %v2153, 4294901760
    %v2452 = vsub.f32 %v2153, %v2451
    %2453 = vmatpush1.msra.mxu0 %v2452
    %2454 = vmatprep.subr.mxu0 0.0
    %v2455 = vand.u32 %v2154, 4294901760
    %v2456 = vsub.f32 %v2154, %v2455
    %2457 = vmatpush1.msra.mxu0 %v2456
    %2458 = vmatprep.subr.mxu0 0.0
    %v2459 = vand.u32 %v2155, 4294901760
    %v2460 = vsub.f32 %v2155, %v2459
    %2461 = vmatpush1.msra.mxu0 %v2460
    %2462 = vmatprep.subr.mxu0 0.0
    %2463 = vmatpush1.msra.mxu0 0.0
    %2464 = vmatprep.subr.mxu0 0.0
    %2465 = vmatpush1.msra.mxu0 0.0
    %2466 = vmatprep.subr.mxu0 0.0
    %2467 = vmatpush1.msra.mxu0 0.0
    %2468 = vmatprep.subr.mxu0 0.0
    %2469 = vmatpush1.msra.mxu0 0.0
    %2470 = vmatprep.subr.mxu0 0.0
    %2471 = vmatpush1.msra.mxu0 0.0
    %2472 = vmatprep.subr.mxu0 0.0
    %2473 = vmatpush1.msra.mxu0 0.0
    %2474 = vmatprep.subr.mxu0 0.0
    %2475 = vmatpush1.msra.mxu0 0.0
    %2476 = vmatprep.subr.mxu0 0.0
    %2477 = vmatpush1.msra.mxu0 0.0
    %2478 = vmatprep.subr.mxu0 0.0
    %2479 = vmatpush1.msra.mxu0 0.0
    %2480 = vmatprep.subr.mxu0 0.0
    %2481 = vmatpush1.msra.mxu0 0.0
    %2482 = vmatprep.subr.mxu0 0.0
    %2483 = vmatpush1.msra.mxu0 0.0
    %2484 = vmatprep.subr.mxu0 0.0
    %2485 = vmatpush1.msra.mxu0 0.0
    %2486 = vmatprep.subr.mxu0 0.0
    %2487 = vmatpush1.msra.mxu0 0.0
    %2488 = vmatprep.subr.mxu0 0.0
    %2489 = vmatpush1.msra.mxu0 0.0
    %2490 = vmatprep.subr.mxu0 0.0
    %2491 = vmatpush1.msra.mxu0 0.0
    %2492 = vmatprep.subr.mxu0 0.0
    %2493 = vmatpush1.msra.mxu0 0.0
    %2494 = vmatprep.mubr.f32.mxu0 0.0
    %v2495 = vand.u32 %v2091, 4294901760
    %v2496 = vsub.f32 %v2091, %v2495
    %2497 = vmatmul.mubr.f32.gmra.mrb[0].mxu0 %v2496
    %v2498 = vpop.f32.mrb[0].mxu0
    %v2499 = vadd.f32 %v2395, %v2498
    %v2500 = vpop.f32.mrb[0].mxu0
    %2501 = vdwg.mxu0
    %2502 = vmatprep.subr.mxu0 0.0
    %v2503 = vand.u32 %v2140, 4294901760
    %2504 = vmatpush1.msra.mxu0 %v2503
    %2505 = vmatprep.subr.mxu0 0.0
    %v2506 = vand.u32 %v2141, 4294901760
    %2507 = vmatpush1.msra.mxu0 %v2506
    %2508 = vmatprep.subr.mxu0 0.0
    %v2509 = vand.u32 %v2142, 4294901760
    %2510 = vmatpush1.msra.mxu0 %v2509
    %2511 = vmatprep.subr.mxu0 0.0
    %v2512 = vand.u32 %v2143, 4294901760
    %2513 = vmatpush1.msra.mxu0 %v2512
    %2514 = vmatprep.subr.mxu0 0.0
    %v2515 = vand.u32 %v2144, 4294901760
    %2516 = vmatpush1.msra.mxu0 %v2515
    %2517 = vmatprep.subr.mxu0 0.0
    %v2518 = vand.u32 %v2145, 4294901760
    %2519 = vmatpush1.msra.mxu0 %v2518
    %2520 = vmatprep.subr.mxu0 0.0
    %v2521 = vand.u32 %v2146, 4294901760
    %2522 = vmatpush1.msra.mxu0 %v2521
    %2523 = vmatprep.subr.mxu0 0.0
    %v2524 = vand.u32 %v2147, 4294901760
    %2525 = vmatpush1.msra.mxu0 %v2524
    %2526 = vmatprep.subr.mxu0 0.0
    %v2527 = vand.u32 %v2148, 4294901760
    %2528 = vmatpush1.msra.mxu0 %v2527
    %2529 = vmatprep.subr.mxu0 0.0
    %v2530 = vand.u32 %v2149, 4294901760
    %2531 = vmatpush1.msra.mxu0 %v2530
    %2532 = vmatprep.subr.mxu0 0.0
    %v2533 = vand.u32 %v2150, 4294901760
    %2534 = vmatpush1.msra.mxu0 %v2533
    %2535 = vmatprep.subr.mxu0 0.0
    %v2536 = vand.u32 %v2151, 4294901760
    %2537 = vmatpush1.msra.mxu0 %v2536
    %2538 = vmatprep.subr.mxu0 0.0
    %v2539 = vand.u32 %v2152, 4294901760
    %2540 = vmatpush1.msra.mxu0 %v2539
    %2541 = vmatprep.subr.mxu0 0.0
    %v2542 = vand.u32 %v2153, 4294901760
    %2543 = vmatpush1.msra.mxu0 %v2542
    %2544 = vmatprep.subr.mxu0 0.0
    %v2545 = vand.u32 %v2154, 4294901760
    %2546 = vmatpush1.msra.mxu0 %v2545
    %2547 = vmatprep.subr.mxu0 0.0
    %v2548 = vand.u32 %v2155, 4294901760
    %2549 = vmatpush1.msra.mxu0 %v2548
    %2550 = vmatprep.subr.mxu0 0.0
    %2551 = vmatpush1.msra.mxu0 0.0
    %2552 = vmatprep.subr.mxu0 0.0
    %2553 = vmatpush1.msra.mxu0 0.0
    %2554 = vmatprep.subr.mxu0 0.0
    %2555 = vmatpush1.msra.mxu0 0.0
    %2556 = vmatprep.subr.mxu0 0.0
    %2557 = vmatpush1.msra.mxu0 0.0
    %2558 = vmatprep.subr.mxu0 0.0
    %2559 = vmatpush1.msra.mxu0 0.0
    %2560 = vmatprep.subr.mxu0 0.0
    %2561 = vmatpush1.msra.mxu0 0.0
    %2562 = vmatprep.subr.mxu0 0.0
    %2563 = vmatpush1.msra.mxu0 0.0
    %2564 = vmatprep.subr.mxu0 0.0
    %2565 = vmatpush1.msra.mxu0 0.0
    %2566 = vmatprep.subr.mxu0 0.0
    %2567 = vmatpush1.msra.mxu0 0.0
    %2568 = vmatprep.subr.mxu0 0.0
    %2569 = vmatpush1.msra.mxu0 0.0
    %2570 = vmatprep.subr.mxu0 0.0
    %2571 = vmatpush1.msra.mxu0 0.0
    %2572 = vmatprep.subr.mxu0 0.0
    %2573 = vmatpush1.msra.mxu0 0.0
    %2574 = vmatprep.subr.mxu0 0.0
    %2575 = vmatpush1.msra.mxu0 0.0
    %2576 = vmatprep.subr.mxu0 0.0
    %2577 = vmatpush1.msra.mxu0 0.0
    %2578 = vmatprep.subr.mxu0 0.0
    %2579 = vmatpush1.msra.mxu0 0.0
    %2580 = vmatprep.subr.mxu0 0.0
    %2581 = vmatpush1.msra.mxu0 0.0
    %2582 = vmatprep.mubr.f32.mxu0 0.0
    %v2583 = vand.u32 %v2091, 4294901760
    %v2584 = vsub.f32 %v2091, %v2583
    %v2585 = vand.u32 %v2584, 4294901760
    %2586 = vmatmul.mubr.f32.gmra.mrb[0].mxu0 %v2585
    %v2587 = vpop.f32.mrb[0].mxu0
    %v2588 = vadd.f32 %v2499, %v2587
    %v2589 = vpop.f32.mrb[0].mxu0
    %2590 = vdwg.mxu0
    %2591 = vmatprep.subr.mxu0 0.0
    %v2592 = vand.u32 %v2140, 4294901760
    %v2593 = vsub.f32 %v2140, %v2592
    %v2594 = vand.u32 %v2593, 4294901760
    %2595 = vmatpush1.msra.mxu0 %v2594
    %2596 = vmatprep.subr.mxu0 0.0
    %v2597 = vand.u32 %v2141, 4294901760
    %v2598 = vsub.f32 %v2141, %v2597
    %v2599 = vand.u32 %v2598, 4294901760
    %2600 = vmatpush1.msra.mxu0 %v2599
    %2601 = vmatprep.subr.mxu0 0.0
    %v2602 = vand.u32 %v2142, 4294901760
    %v2603 = vsub.f32 %v2142, %v2602
    %v2604 = vand.u32 %v2603, 4294901760
    %2605 = vmatpush1.msra.mxu0 %v2604
    %2606 = vmatprep.subr.mxu0 0.0
    %v2607 = vand.u32 %v2143, 4294901760
    %v2608 = vsub.f32 %v2143, %v2607
    %v2609 = vand.u32 %v2608, 4294901760
    %2610 = vmatpush1.msra.mxu0 %v2609
    %2611 = vmatprep.subr.mxu0 0.0
    %v2612 = vand.u32 %v2144, 4294901760
    %v2613 = vsub.f32 %v2144, %v2612
    %v2614 = vand.u32 %v2613, 4294901760
    %2615 = vmatpush1.msra.mxu0 %v2614
    %2616 = vmatprep.subr.mxu0 0.0
    %v2617 = vand.u32 %v2145, 4294901760
    %v2618 = vsub.f32 %v2145, %v2617
    %v2619 = vand.u32 %v2618, 4294901760
    %2620 = vmatpush1.msra.mxu0 %v2619
    %2621 = vmatprep.subr.mxu0 0.0
    %v2622 = vand.u32 %v2146, 4294901760
    %v2623 = vsub.f32 %v2146, %v2622
    %v2624 = vand.u32 %v2623, 4294901760
    %2625 = vmatpush1.msra.mxu0 %v2624
    %2626 = vmatprep.subr.mxu0 0.0
    %v2627 = vand.u32 %v2147, 4294901760
    %v2628 = vsub.f32 %v2147, %v2627
    %v2629 = vand.u32 %v2628, 4294901760
    %2630 = vmatpush1.msra.mxu0 %v2629
    %2631 = vmatprep.subr.mxu0 0.0
    %v2632 = vand.u32 %v2148, 4294901760
    %v2633 = vsub.f32 %v2148, %v2632
    %v2634 = vand.u32 %v2633, 4294901760
    %2635 = vmatpush1.msra.mxu0 %v2634
    %2636 = vmatprep.subr.mxu0 0.0
    %v2637 = vand.u32 %v2149, 4294901760
    %v2638 = vsub.f32 %v2149, %v2637
    %v2639 = vand.u32 %v2638, 4294901760
    %2640 = vmatpush1.msra.mxu0 %v2639
    %2641 = vmatprep.subr.mxu0 0.0
    %v2642 = vand.u32 %v2150, 4294901760
    %v2643 = vsub.f32 %v2150, %v2642
    %v2644 = vand.u32 %v2643, 4294901760
    %2645 = vmatpush1.msra.mxu0 %v2644
    %2646 = vmatprep.subr.mxu0 0.0
    %v2647 = vand.u32 %v2151, 4294901760
    %v2648 = vsub.f32 %v2151, %v2647
    %v2649 = vand.u32 %v2648, 4294901760
    %2650 = vmatpush1.msra.mxu0 %v2649
    %2651 = vmatprep.subr.mxu0 0.0
    %v2652 = vand.u32 %v2152, 4294901760
    %v2653 = vsub.f32 %v2152, %v2652
    %v2654 = vand.u32 %v2653, 4294901760
    %2655 = vmatpush1.msra.mxu0 %v2654
    %2656 = vmatprep.subr.mxu0 0.0
    %v2657 = vand.u32 %v2153, 4294901760
    %v2658 = vsub.f32 %v2153, %v2657
    %v2659 = vand.u32 %v2658, 4294901760
    %2660 = vmatpush1.msra.mxu0 %v2659
    %2661 = vmatprep.subr.mxu0 0.0
    %v2662 = vand.u32 %v2154, 4294901760
    %v2663 = vsub.f32 %v2154, %v2662
    %v2664 = vand.u32 %v2663, 4294901760
    %2665 = vmatpush1.msra.mxu0 %v2664
    %2666 = vmatprep.subr.mxu0 0.0
    %v2667 = vand.u32 %v2155, 4294901760
    %v2668 = vsub.f32 %v2155, %v2667
    %v2669 = vand.u32 %v2668, 4294901760
    %2670 = vmatpush1.msra.mxu0 %v2669
    %2671 = vmatprep.subr.mxu0 0.0
    %2672 = vmatpush1.msra.mxu0 0.0
    %2673 = vmatprep.subr.mxu0 0.0
    %2674 = vmatpush1.msra.mxu0 0.0
    %2675 = vmatprep.subr.mxu0 0.0
    %2676 = vmatpush1.msra.mxu0 0.0
    %2677 = vmatprep.subr.mxu0 0.0
    %2678 = vmatpush1.msra.mxu0 0.0
    %2679 = vmatprep.subr.mxu0 0.0
    %2680 = vmatpush1.msra.mxu0 0.0
    %2681 = vmatprep.subr.mxu0 0.0
    %2682 = vmatpush1.msra.mxu0 0.0
    %2683 = vmatprep.subr.mxu0 0.0
    %2684 = vmatpush1.msra.mxu0 0.0
    %2685 = vmatprep.subr.mxu0 0.0
    %2686 = vmatpush1.msra.mxu0 0.0
    %2687 = vmatprep.subr.mxu0 0.0
    %2688 = vmatpush1.msra.mxu0 0.0
    %2689 = vmatprep.subr.mxu0 0.0
    %2690 = vmatpush1.msra.mxu0 0.0
    %2691 = vmatprep.subr.mxu0 0.0
    %2692 = vmatpush1.msra.mxu0 0.0
    %2693 = vmatprep.subr.mxu0 0.0
    %2694 = vmatpush1.msra.mxu0 0.0
    %2695 = vmatprep.subr.mxu0 0.0
    %2696 = vmatpush1.msra.mxu0 0.0
    %2697 = vmatprep.subr.mxu0 0.0
    %2698 = vmatpush1.msra.mxu0 0.0
    %2699 = vmatprep.subr.mxu0 0.0
    %2700 = vmatpush1.msra.mxu0 0.0
    %2701 = vmatprep.subr.mxu0 0.0
    %2702 = vmatpush1.msra.mxu0 0.0
    %2703 = vmatprep.mubr.f32.mxu0 0.0
    %v2704 = vand.u32 %v2091, 4294901760
    %2705 = vmatmul.mubr.f32.gmra.mrb[0].mxu0 %v2704
    %v2706 = vpop.f32.mrb[0].mxu0
    %v2707 = vadd.f32 %v2588, %v2706
    %v2708 = vpop.f32.mrb[0].mxu0
    %2709 = vdwg.mxu0
    %2710 = vmatprep.subr.mxu0 0.0
    %v2711 = vand.u32 %v2140, 4294901760
    %2712 = vmatpush1.msra.mxu0 %v2711
    %2713 = vmatprep.subr.mxu0 0.0
    %v2714 = vand.u32 %v2141, 4294901760
    %2715 = vmatpush1.msra.mxu0 %v2714
    %2716 = vmatprep.subr.mxu0 0.0
    %v2717 = vand.u32 %v2142, 4294901760
    %2718 = vmatpush1.msra.mxu0 %v2717
    %2719 = vmatprep.subr.mxu0 0.0
    %v2720 = vand.u32 %v2143, 4294901760
    %2721 = vmatpush1.msra.mxu0 %v2720
    %2722 = vmatprep.subr.mxu0 0.0
    %v2723 = vand.u32 %v2144, 4294901760
    %2724 = vmatpush1.msra.mxu0 %v2723
    %2725 = vmatprep.subr.mxu0 0.0
    %v2726 = vand.u32 %v2145, 4294901760
    %2727 = vmatpush1.msra.mxu0 %v2726
    %2728 = vmatprep.subr.mxu0 0.0
    %v2729 = vand.u32 %v2146, 4294901760
    %2730 = vmatpush1.msra.mxu0 %v2729
    %2731 = vmatprep.subr.mxu0 0.0
    %v2732 = vand.u32 %v2147, 4294901760
    %2733 = vmatpush1.msra.mxu0 %v2732
    %2734 = vmatprep.subr.mxu0 0.0
    %v2735 = vand.u32 %v2148, 4294901760
    %2736 = vmatpush1.msra.mxu0 %v2735
    %2737 = vmatprep.subr.mxu0 0.0
    %v2738 = vand.u32 %v2149, 4294901760
    %2739 = vmatpush1.msra.mxu0 %v2738
    %2740 = vmatprep.subr.mxu0 0.0
    %v2741 = vand.u32 %v2150, 4294901760
    %2742 = vmatpush1.msra.mxu0 %v2741
    %2743 = vmatprep.subr.mxu0 0.0
    %v2744 = vand.u32 %v2151, 4294901760
    %2745 = vmatpush1.msra.mxu0 %v2744
    %2746 = vmatprep.subr.mxu0 0.0
    %v2747 = vand.u32 %v2152, 4294901760
    %2748 = vmatpush1.msra.mxu0 %v2747
    %2749 = vmatprep.subr.mxu0 0.0
    %v2750 = vand.u32 %v2153, 4294901760
    %2751 = vmatpush1.msra.mxu0 %v2750
    %2752 = vmatprep.subr.mxu0 0.0
    %v2753 = vand.u32 %v2154, 4294901760
    %2754 = vmatpush1.msra.mxu0 %v2753
    %2755 = vmatprep.subr.mxu0 0.0
    %v2756 = vand.u32 %v2155, 4294901760
    %2757 = vmatpush1.msra.mxu0 %v2756
    %2758 = vmatprep.subr.mxu0 0.0
    %2759 = vmatpush1.msra.mxu0 0.0
    %2760 = vmatprep.subr.mxu0 0.0
    %2761 = vmatpush1.msra.mxu0 0.0
    %2762 = vmatprep.subr.mxu0 0.0
    %2763 = vmatpush1.msra.mxu0 0.0
    %2764 = vmatprep.subr.mxu0 0.0
    %2765 = vmatpush1.msra.mxu0 0.0
    %2766 = vmatprep.subr.mxu0 0.0
    %2767 = vmatpush1.msra.mxu0 0.0
    %2768 = vmatprep.subr.mxu0 0.0
    %2769 = vmatpush1.msra.mxu0 0.0
    %2770 = vmatprep.subr.mxu0 0.0
    %2771 = vmatpush1.msra.mxu0 0.0
    %2772 = vmatprep.subr.mxu0 0.0
    %2773 = vmatpush1.msra.mxu0 0.0
    %2774 = vmatprep.subr.mxu0 0.0
    %2775 = vmatpush1.msra.mxu0 0.0
    %2776 = vmatprep.subr.mxu0 0.0
    %2777 = vmatpush1.msra.mxu0 0.0
    %2778 = vmatprep.subr.mxu0 0.0
    %2779 = vmatpush1.msra.mxu0 0.0
    %2780 = vmatprep.subr.mxu0 0.0
    %2781 = vmatpush1.msra.mxu0 0.0
    %2782 = vmatprep.subr.mxu0 0.0
    %2783 = vmatpush1.msra.mxu0 0.0
    %2784 = vmatprep.subr.mxu0 0.0
    %2785 = vmatpush1.msra.mxu0 0.0
    %2786 = vmatprep.subr.mxu0 0.0
    %2787 = vmatpush1.msra.mxu0 0.0
    %2788 = vmatprep.subr.mxu0 0.0
    %2789 = vmatpush1.msra.mxu0 0.0
    %2790 = vmatprep.mubr.f32.mxu0 0.0
    %v2791 = vand.u32 %v2091, 4294901760
    %2792 = vmatmul.mubr.f32.gmra.mrb[0].mxu0 %v2791
    %v2793 = vpop.f32.mrb[0].mxu0
    %v2794 = vadd.f32 %v2707, %v2793
    %v2795 = vpop.f32.mrb[0].mxu0
    %2796 = vdwg.mxu0
    %v2797 = vmul.f32 %v2794, 0.03125
    %v2798 = vmul.f32 %v2797, %v2797
    %v2800 = vrot.slane %v2798, 7
    %v2802 = vsub.f32 %v2797, %v2800
    %v2803 = vmax.f32 %v2802, 0.0
    %v2804 = vadd.f32 %v2803, 1e-05
    %v2805 = vrsqrt.pop %v2804
    %v2807 = vrot.slane %v2805, 1
    %2808 = vrot.lane.b32.xlu0 %v2807, 32
    %v2809 = vpop.permute.xlu0 %2808
    %v2811 = vmul.f32 %v26, %v2809
    %2813 = vrot.lane.b32.xlu0 %v2811, 96
    %v2814 = vpop.permute.xlu0 %2813
    %v2816 = vmul.f32 %v2797, %v2814
    %2818 = vrot.lane.b32.xlu0 %v2816, 64
    %v2819 = vpop.permute.xlu0 %2818
    %v2821 = vsub.f32 %v26, %v2819
    %v2823 = vrot.slane %v2821, 7
    %2824 = vrot.lane.b32.xlu0 %v2823, 96
    %v2825 = vpop.permute.xlu0 %2824
    %v2827 = vsel %vm464, %v2811, %v2825
    %v2828 = vand.u32 %v484, 31
    %vm2829 = vcmp.eq.s32.totalorder %v2828, %v467
    %vm2830 = vcmp.eq.s32.totalorder %v2828, %v468
    %vm2831 = vcmp.eq.s32.totalorder %v2828, %v469
    %vm2832 = vcmp.eq.s32.totalorder %v2828, %v470
    %v2833 = vsel %vm2829, 1, 0
    %v2834 = vsel %vm2830, 1, 0
    %v2835 = vsel %vm2831, 1, 0
    %v2836 = vsel %vm2832, 1, 0
    %v2837 = vcvt.s32.f32 %v2833
    %v2838 = vcvt.s32.f32 %v2834
    %v2839 = vcvt.s32.f32 %v2835
    %v2840 = vcvt.s32.f32 %v2836
    %2842 = vrot.lane.b32.xlu0 %v2827, 96
    %v2843 = vpop.permute.xlu0 %2842
    %vm2844 = vcmask 261120
    %v2845 = vsel %vm2844, %v2843, 0
    %2847 = vmatprep.subr.mxu0 0.0
    %v2848 = vand.u32 %v2837, 4294901760
    %2849 = vmatpush1.msra.mxu0 %v2848
    %2850 = vmatprep.subr.mxu0 0.0
    %v2851 = vand.u32 %v2838, 4294901760
    %2852 = vmatpush1.msra.mxu0 %v2851
    %2853 = vmatprep.subr.mxu0 0.0
    %v2854 = vand.u32 %v2839, 4294901760
    %2855 = vmatpush1.msra.mxu0 %v2854
    %2856 = vmatprep.subr.mxu0 0.0
    %v2857 = vand.u32 %v2840, 4294901760
    %2858 = vmatpush1.msra.mxu0 %v2857
    %2859 = vmatprep.subr.mxu0 0.0
    %2860 = vmatpush1.msra.mxu0 0.0
    %2861 = vmatprep.subr.mxu0 0.0
    %2862 = vmatpush1.msra.mxu0 0.0
    %2863 = vmatprep.subr.mxu0 0.0
    %2864 = vmatpush1.msra.mxu0 0.0
    %2865 = vmatprep.subr.mxu0 0.0
    %2866 = vmatpush1.msra.mxu0 0.0
    %2867 = vmatprep.subr.mxu0 0.0
    %2868 = vmatpush1.msra.mxu0 0.0
    %2869 = vmatprep.subr.mxu0 0.0
    %2870 = vmatpush1.msra.mxu0 0.0
    %2871 = vmatprep.subr.mxu0 0.0
    %2872 = vmatpush1.msra.mxu0 0.0
    %2873 = vmatprep.subr.mxu0 0.0
    %2874 = vmatpush1.msra.mxu0 0.0
    %2875 = vmatprep.subr.mxu0 0.0
    %2876 = vmatpush1.msra.mxu0 0.0
    %2877 = vmatprep.subr.mxu0 0.0
    %2878 = vmatpush1.msra.mxu0 0.0
    %2879 = vmatprep.subr.mxu0 0.0
    %2880 = vmatpush1.msra.mxu0 0.0
    %2881 = vmatprep.subr.mxu0 0.0
    %2882 = vmatpush1.msra.mxu0 0.0
    %2883 = vmatprep.subr.mxu0 0.0
    %2884 = vmatpush1.msra.mxu0 0.0
    %2885 = vmatprep.subr.mxu0 0.0
    %2886 = vmatpush1.msra.mxu0 0.0
    %2887 = vmatprep.subr.mxu0 0.0
    %2888 = vmatpush1.msra.mxu0 0.0
    %2889 = vmatprep.subr.mxu0 0.0
    %2890 = vmatpush1.msra.mxu0 0.0
    %2891 = vmatprep.subr.mxu0 0.0
    %2892 = vmatpush1.msra.mxu0 0.0
    %2893 = vmatprep.subr.mxu0 0.0
    %2894 = vmatpush1.msra.mxu0 0.0
    %2895 = vmatprep.subr.mxu0 0.0
    %2896 = vmatpush1.msra.mxu0 0.0
    %2897 = vmatprep.subr.mxu0 0.0
    %2898 = vmatpush1.msra.mxu0 0.0
    %2899 = vmatprep.subr.mxu0 0.0
    %2900 = vmatpush1.msra.mxu0 0.0
    %2901 = vmatprep.subr.mxu0 0.0
    %2902 = vmatpush1.msra.mxu0 0.0
    %2903 = vmatprep.subr.mxu0 0.0
    %2904 = vmatpush1.msra.mxu0 0.0
    %2905 = vmatprep.subr.mxu0 0.0
    %2906 = vmatpush1.msra.mxu0 0.0
    %2907 = vmatprep.subr.mxu0 0.0
    %2908 = vmatpush1.msra.mxu0 0.0
    %2909 = vmatprep.subr.mxu0 0.0
    %2910 = vmatpush1.msra.mxu0 0.0
    %2911 = vmatprep.subr.mxu0 0.0
    %2912 = vmatpush1.msra.mxu0 0.0
    %2913 = vmatprep.subr.mxu0 0.0
    %2914 = vmatpush1.msra.mxu0 0.0
    %2915 = vmatprep.mubr.f32.mxu0 0.0
    %v2916 = vand.u32 %v2845, 4294901760
    %v2917 = vsub.f32 %v2845, %v2916
    %v2918 = vand.u32 %v2917, 4294901760
    %v2919 = vsub.f32 %v2917, %v2918
    %v2920 = vand.u32 %v2919, 4294901760
    %2921 = vmatmul.mubr.f32.gmra.mrb[0].mxu0 %v2920
    %v2922 = vpop.f32.mrb[0].mxu0
    %v2923 = vadd.f32 0.0, %v2922
    %v2924 = vpop.f32.mrb[0].mxu0
    %2925 = vdwg.mxu0
    %2926 = vmatprep.subr.mxu0 0.0
    %v2927 = vand.u32 %v2837, 4294901760
    %v2928 = vsub.f32 %v2837, %v2927
    %v2929 = vand.u32 %v2928, 4294901760
    %v2930 = vsub.f32 %v2928, %v2929
    %v2931 = vand.u32 %v2930, 4294901760
    %2932 = vmatpush1.msra.mxu0 %v2931
    %2933 = vmatprep.subr.mxu0 0.0
    %v2934 = vand.u32 %v2838, 4294901760
    %v2935 = vsub.f32 %v2838, %v2934
    %v2936 = vand.u32 %v2935, 4294901760
    %v2937 = vsub.f32 %v2935, %v2936
    %v2938 = vand.u32 %v2937, 4294901760
    %2939 = vmatpush1.msra.mxu0 %v2938
    %2940 = vmatprep.subr.mxu0 0.0
    %v2941 = vand.u32 %v2839, 4294901760
    %v2942 = vsub.f32 %v2839, %v2941
    %v2943 = vand.u32 %v2942, 4294901760
    %v2944 = vsub.f32 %v2942, %v2943
    %v2945 = vand.u32 %v2944, 4294901760
    %2946 = vmatpush1.msra.mxu0 %v2945
    %2947 = vmatprep.subr.mxu0 0.0
    %v2948 = vand.u32 %v2840, 4294901760
    %v2949 = vsub.f32 %v2840, %v2948
    %v2950 = vand.u32 %v2949, 4294901760
    %v2951 = vsub.f32 %v2949, %v2950
    %v2952 = vand.u32 %v2951, 4294901760
    %2953 = vmatpush1.msra.mxu0 %v2952
    %2954 = vmatprep.subr.mxu0 0.0
    %2955 = vmatpush1.msra.mxu0 0.0
    %2956 = vmatprep.subr.mxu0 0.0
    %2957 = vmatpush1.msra.mxu0 0.0
    %2958 = vmatprep.subr.mxu0 0.0
    %2959 = vmatpush1.msra.mxu0 0.0
    %2960 = vmatprep.subr.mxu0 0.0
    %2961 = vmatpush1.msra.mxu0 0.0
    %2962 = vmatprep.subr.mxu0 0.0
    %2963 = vmatpush1.msra.mxu0 0.0
    %2964 = vmatprep.subr.mxu0 0.0
    %2965 = vmatpush1.msra.mxu0 0.0
    %2966 = vmatprep.subr.mxu0 0.0
    %2967 = vmatpush1.msra.mxu0 0.0
    %2968 = vmatprep.subr.mxu0 0.0
    %2969 = vmatpush1.msra.mxu0 0.0
    %2970 = vmatprep.subr.mxu0 0.0
    %2971 = vmatpush1.msra.mxu0 0.0
    %2972 = vmatprep.subr.mxu0 0.0
    %2973 = vmatpush1.msra.mxu0 0.0
    %2974 = vmatprep.subr.mxu0 0.0
    %2975 = vmatpush1.msra.mxu0 0.0
    %2976 = vmatprep.subr.mxu0 0.0
    %2977 = vmatpush1.msra.mxu0 0.0
    %2978 = vmatprep.subr.mxu0 0.0
    %2979 = vmatpush1.msra.mxu0 0.0
    %2980 = vmatprep.subr.mxu0 0.0
    %2981 = vmatpush1.msra.mxu0 0.0
    %2982 = vmatprep.subr.mxu0 0.0
    %2983 = vmatpush1.msra.mxu0 0.0
    %2984 = vmatprep.subr.mxu0 0.0
    %2985 = vmatpush1.msra.mxu0 0.0
    %2986 = vmatprep.subr.mxu0 0.0
    %2987 = vmatpush1.msra.mxu0 0.0
    %2988 = vmatprep.subr.mxu0 0.0
    %2989 = vmatpush1.msra.mxu0 0.0
    %2990 = vmatprep.subr.mxu0 0.0
    %2991 = vmatpush1.msra.mxu0 0.0
    %2992 = vmatprep.subr.mxu0 0.0
    %2993 = vmatpush1.msra.mxu0 0.0
    %2994 = vmatprep.subr.mxu0 0.0
    %2995 = vmatpush1.msra.mxu0 0.0
    %2996 = vmatprep.subr.mxu0 0.0
    %2997 = vmatpush1.msra.mxu0 0.0
    %2998 = vmatprep.subr.mxu0 0.0
    %2999 = vmatpush1.msra.mxu0 0.0
    %3000 = vmatprep.subr.mxu0 0.0
    %3001 = vmatpush1.msra.mxu0 0.0
    %3002 = vmatprep.subr.mxu0 0.0
    %3003 = vmatpush1.msra.mxu0 0.0
    %3004 = vmatprep.subr.mxu0 0.0
    %3005 = vmatpush1.msra.mxu0 0.0
    %3006 = vmatprep.subr.mxu0 0.0
    %3007 = vmatpush1.msra.mxu0 0.0
    %3008 = vmatprep.subr.mxu0 0.0
    %3009 = vmatpush1.msra.mxu0 0.0
    %3010 = vmatprep.mubr.f32.mxu0 0.0
    %v3011 = vand.u32 %v2845, 4294901760
    %3012 = vmatmul.mubr.f32.gmra.mrb[0].mxu0 %v3011
    %v3013 = vpop.f32.mrb[0].mxu0
    %v3014 = vadd.f32 %v2923, %v3013
    %v3015 = vpop.f32.mrb[0].mxu0
    %3016 = vdwg.mxu0
    %3017 = vmatprep.subr.mxu0 0.0
    %v3018 = vand.u32 %v2837, 4294901760
    %v3019 = vsub.f32 %v2837, %v3018
    %3020 = vmatpush1.msra.mxu0 %v3019
    %3021 = vmatprep.subr.mxu0 0.0
    %v3022 = vand.u32 %v2838, 4294901760
    %v3023 = vsub.f32 %v2838, %v3022
    %3024 = vmatpush1.msra.mxu0 %v3023
    %3025 = vmatprep.subr.mxu0 0.0
    %v3026 = vand.u32 %v2839, 4294901760
    %v3027 = vsub.f32 %v2839, %v3026
    %3028 = vmatpush1.msra.mxu0 %v3027
    %3029 = vmatprep.subr.mxu0 0.0
    %v3030 = vand.u32 %v2840, 4294901760
    %v3031 = vsub.f32 %v2840, %v3030
    %3032 = vmatpush1.msra.mxu0 %v3031
    %3033 = vmatprep.subr.mxu0 0.0
    %3034 = vmatpush1.msra.mxu0 0.0
    %3035 = vmatprep.subr.mxu0 0.0
    %3036 = vmatpush1.msra.mxu0 0.0
    %3037 = vmatprep.subr.mxu0 0.0
    %3038 = vmatpush1.msra.mxu0 0.0
    %3039 = vmatprep.subr.mxu0 0.0
    %3040 = vmatpush1.msra.mxu0 0.0
    %3041 = vmatprep.subr.mxu0 0.0
    %3042 = vmatpush1.msra.mxu0 0.0
    %3043 = vmatprep.subr.mxu0 0.0
    %3044 = vmatpush1.msra.mxu0 0.0
    %3045 = vmatprep.subr.mxu0 0.0
    %3046 = vmatpush1.msra.mxu0 0.0
    %3047 = vmatprep.subr.mxu0 0.0
    %3048 = vmatpush1.msra.mxu0 0.0
    %3049 = vmatprep.subr.mxu0 0.0
    %3050 = vmatpush1.msra.mxu0 0.0
    %3051 = vmatprep.subr.mxu0 0.0
    %3052 = vmatpush1.msra.mxu0 0.0
    %3053 = vmatprep.subr.mxu0 0.0
    %3054 = vmatpush1.msra.mxu0 0.0
    %3055 = vmatprep.subr.mxu0 0.0
    %3056 = vmatpush1.msra.mxu0 0.0
    %3057 = vmatprep.subr.mxu0 0.0
    %3058 = vmatpush1.msra.mxu0 0.0
    %3059 = vmatprep.subr.mxu0 0.0
    %3060 = vmatpush1.msra.mxu0 0.0
    %3061 = vmatprep.subr.mxu0 0.0
    %3062 = vmatpush1.msra.mxu0 0.0
    %3063 = vmatprep.subr.mxu0 0.0
    %3064 = vmatpush1.msra.mxu0 0.0
    %3065 = vmatprep.subr.mxu0 0.0
    %3066 = vmatpush1.msra.mxu0 0.0
    %3067 = vmatprep.subr.mxu0 0.0
    %3068 = vmatpush1.msra.mxu0 0.0
    %3069 = vmatprep.subr.mxu0 0.0
    %3070 = vmatpush1.msra.mxu0 0.0
    %3071 = vmatprep.subr.mxu0 0.0
    %3072 = vmatpush1.msra.mxu0 0.0
    %3073 = vmatprep.subr.mxu0 0.0
    %3074 = vmatpush1.msra.mxu0 0.0
    %3075 = vmatprep.subr.mxu0 0.0
    %3076 = vmatpush1.msra.mxu0 0.0
    %3077 = vmatprep.subr.mxu0 0.0
    %3078 = vmatpush1.msra.mxu0 0.0
    %3079 = vmatprep.subr.mxu0 0.0
    %3080 = vmatpush1.msra.mxu0 0.0
    %3081 = vmatprep.subr.mxu0 0.0
    %3082 = vmatpush1.msra.mxu0 0.0
    %3083 = vmatprep.subr.mxu0 0.0
    %3084 = vmatpush1.msra.mxu0 0.0
    %3085 = vmatprep.subr.mxu0 0.0
    %3086 = vmatpush1.msra.mxu0 0.0
    %3087 = vmatprep.subr.mxu0 0.0
    %3088 = vmatpush1.msra.mxu0 0.0
    %3089 = vmatprep.mubr.f32.mxu0 0.0
    %v3090 = vand.u32 %v2845, 4294901760
    %v3091 = vsub.f32 %v2845, %v3090
    %3092 = vmatmul.mubr.f32.gmra.mrb[0].mxu0 %v3091
    %v3093 = vpop.f32.mrb[0].mxu0
    %v3094 = vadd.f32 %v3014, %v3093
    %v3095 = vpop.f32.mrb[0].mxu0
    %3096 = vdwg.mxu0
    %3097 = vmatprep.subr.mxu0 0.0
    %v3098 = vand.u32 %v2837, 4294901760
    %3099 = vmatpush1.msra.mxu0 %v3098
    %3100 = vmatprep.subr.mxu0 0.0
    %v3101 = vand.u32 %v2838, 4294901760
    %3102 = vmatpush1.msra.mxu0 %v3101
    %3103 = vmatprep.subr.mxu0 0.0
    %v3104 = vand.u32 %v2839, 4294901760
    %3105 = vmatpush1.msra.mxu0 %v3104
    %3106 = vmatprep.subr.mxu0 0.0
    %v3107 = vand.u32 %v2840, 4294901760
    %3108 = vmatpush1.msra.mxu0 %v3107
    %3109 = vmatprep.subr.mxu0 0.0
    %3110 = vmatpush1.msra.mxu0 0.0
    %3111 = vmatprep.subr.mxu0 0.0
    %3112 = vmatpush1.msra.mxu0 0.0
    %3113 = vmatprep.subr.mxu0 0.0
    %3114 = vmatpush1.msra.mxu0 0.0
    %3115 = vmatprep.subr.mxu0 0.0
    %3116 = vmatpush1.msra.mxu0 0.0
    %3117 = vmatprep.subr.mxu0 0.0
    %3118 = vmatpush1.msra.mxu0 0.0
    %3119 = vmatprep.subr.mxu0 0.0
    %3120 = vmatpush1.msra.mxu0 0.0
    %3121 = vmatprep.subr.mxu0 0.0
    %3122 = vmatpush1.msra.mxu0 0.0
    %3123 = vmatprep.subr.mxu0 0.0
    %3124 = vmatpush1.msra.mxu0 0.0
    %3125 = vmatprep.subr.mxu0 0.0
    %3126 = vmatpush1.msra.mxu0 0.0
    %3127 = vmatprep.subr.mxu0 0.0
    %3128 = vmatpush1.msra.mxu0 0.0
    %3129 = vmatprep.subr.mxu0 0.0
    %3130 = vmatpush1.msra.mxu0 0.0
    %3131 = vmatprep.subr.mxu0 0.0
    %3132 = vmatpush1.msra.mxu0 0.0
    %3133 = vmatprep.subr.mxu0 0.0
    %3134 = vmatpush1.msra.mxu0 0.0
    %3135 = vmatprep.subr.mxu0 0.0
    %3136 = vmatpush1.msra.mxu0 0.0
    %3137 = vmatprep.subr.mxu0 0.0
    %3138 = vmatpush1.msra.mxu0 0.0
    %3139 = vmatprep.subr.mxu0 0.0
    %3140 = vmatpush1.msra.mxu0 0.0
    %3141 = vmatprep.subr.mxu0 0.0
    %3142 = vmatpush1.msra.mxu0 0.0
    %3143 = vmatprep.subr.mxu0 0.0
    %3144 = vmatpush1.msra.mxu0 0.0
    %3145 = vmatprep.subr.mxu0 0.0
    %3146 = vmatpush1.msra.mxu0 0.0
    %3147 = vmatprep.subr.mxu0 0.0
    %3148 = vmatpush1.msra.mxu0 0.0
    %3149 = vmatprep.subr.mxu0 0.0
    %3150 = vmatpush1.msra.mxu0 0.0
    %3151 = vmatprep.subr.mxu0 0.0
    %3152 = vmatpush1.msra.mxu0 0.0
    %3153 = vmatprep.subr.mxu0 0.0
    %3154 = vmatpush1.msra.mxu0 0.0
    %3155 = vmatprep.subr.mxu0 0.0
    %3156 = vmatpush1.msra.mxu0 0.0
    %3157 = vmatprep.subr.mxu0 0.0
    %3158 = vmatpush1.msra.mxu0 0.0
    %3159 = vmatprep.subr.mxu0 0.0
    %3160 = vmatpush1.msra.mxu0 0.0
    %3161 = vmatprep.subr.mxu0 0.0
    %3162 = vmatpush1.msra.mxu0 0.0
    %3163 = vmatprep.subr.mxu0 0.0
    %3164 = vmatpush1.msra.mxu0 0.0
    %3165 = vmatprep.mubr.f32.mxu0 0.0
    %v3166 = vand.u32 %v2845, 4294901760
    %v3167 = vsub.f32 %v2845, %v3166
    %v3168 = vand.u32 %v3167, 4294901760
    %3169 = vmatmul.mubr.f32.gmra.mrb[0].mxu0 %v3168
    %v3170 = vpop.f32.mrb[0].mxu0
    %v3171 = vadd.f32 %v3094, %v3170
    %v3172 = vpop.f32.mrb[0].mxu0
    %3173 = vdwg.mxu0
    %3174 = vmatprep.subr.mxu0 0.0
    %v3175 = vand.u32 %v2837, 4294901760
    %v3176 = vsub.f32 %v2837, %v3175
    %v3177 = vand.u32 %v3176, 4294901760
    %3178 = vmatpush1.msra.mxu0 %v3177
    %3179 = vmatprep.subr.mxu0 0.0
    %v3180 = vand.u32 %v2838, 4294901760
    %v3181 = vsub.f32 %v2838, %v3180
    %v3182 = vand.u32 %v3181, 4294901760
    %3183 = vmatpush1.msra.mxu0 %v3182
    %3184 = vmatprep.subr.mxu0 0.0
    %v3185 = vand.u32 %v2839, 4294901760
    %v3186 = vsub.f32 %v2839, %v3185
    %v3187 = vand.u32 %v3186, 4294901760
    %3188 = vmatpush1.msra.mxu0 %v3187
    %3189 = vmatprep.subr.mxu0 0.0
    %v3190 = vand.u32 %v2840, 4294901760
    %v3191 = vsub.f32 %v2840, %v3190
    %v3192 = vand.u32 %v3191, 4294901760
    %3193 = vmatpush1.msra.mxu0 %v3192
    %3194 = vmatprep.subr.mxu0 0.0
    %3195 = vmatpush1.msra.mxu0 0.0
    %3196 = vmatprep.subr.mxu0 0.0
    %3197 = vmatpush1.msra.mxu0 0.0
    %3198 = vmatprep.subr.mxu0 0.0
    %3199 = vmatpush1.msra.mxu0 0.0
    %3200 = vmatprep.subr.mxu0 0.0
    %3201 = vmatpush1.msra.mxu0 0.0
    %3202 = vmatprep.subr.mxu0 0.0
    %3203 = vmatpush1.msra.mxu0 0.0
    %3204 = vmatprep.subr.mxu0 0.0
    %3205 = vmatpush1.msra.mxu0 0.0
    %3206 = vmatprep.subr.mxu0 0.0
    %3207 = vmatpush1.msra.mxu0 0.0
    %3208 = vmatprep.subr.mxu0 0.0
    %3209 = vmatpush1.msra.mxu0 0.0
    %3210 = vmatprep.subr.mxu0 0.0
    %3211 = vmatpush1.msra.mxu0 0.0
    %3212 = vmatprep.subr.mxu0 0.0
    %3213 = vmatpush1.msra.mxu0 0.0
    %3214 = vmatprep.subr.mxu0 0.0
    %3215 = vmatpush1.msra.mxu0 0.0
    %3216 = vmatprep.subr.mxu0 0.0
    %3217 = vmatpush1.msra.mxu0 0.0
    %3218 = vmatprep.subr.mxu0 0.0
    %3219 = vmatpush1.msra.mxu0 0.0
    %3220 = vmatprep.subr.mxu0 0.0
    %3221 = vmatpush1.msra.mxu0 0.0
    %3222 = vmatprep.subr.mxu0 0.0
    %3223 = vmatpush1.msra.mxu0 0.0
    %3224 = vmatprep.subr.mxu0 0.0
    %3225 = vmatpush1.msra.mxu0 0.0
    %3226 = vmatprep.subr.mxu0 0.0
    %3227 = vmatpush1.msra.mxu0 0.0
    %3228 = vmatprep.subr.mxu0 0.0
    %3229 = vmatpush1.msra.mxu0 0.0
    %3230 = vmatprep.subr.mxu0 0.0
    %3231 = vmatpush1.msra.mxu0 0.0
    %3232 = vmatprep.subr.mxu0 0.0
    %3233 = vmatpush1.msra.mxu0 0.0
    %3234 = vmatprep.subr.mxu0 0.0
    %3235 = vmatpush1.msra.mxu0 0.0
    %3236 = vmatprep.subr.mxu0 0.0
    %3237 = vmatpush1.msra.mxu0 0.0
    %3238 = vmatprep.subr.mxu0 0.0
    %3239 = vmatpush1.msra.mxu0 0.0
    %3240 = vmatprep.subr.mxu0 0.0
    %3241 = vmatpush1.msra.mxu0 0.0
    %3242 = vmatprep.subr.mxu0 0.0
    %3243 = vmatpush1.msra.mxu0 0.0
    %3244 = vmatprep.subr.mxu0 0.0
    %3245 = vmatpush1.msra.mxu0 0.0
    %3246 = vmatprep.subr.mxu0 0.0
    %3247 = vmatpush1.msra.mxu0 0.0
    %3248 = vmatprep.subr.mxu0 0.0
    %3249 = vmatpush1.msra.mxu0 0.0
    %3250 = vmatprep.mubr.f32.mxu0 0.0
    %v3251 = vand.u32 %v2845, 4294901760
    %3252 = vmatmul.mubr.f32.gmra.mrb[0].mxu0 %v3251
    %v3253 = vpop.f32.mrb[0].mxu0
    %v3254 = vadd.f32 %v3171, %v3253
    %v3255 = vpop.f32.mrb[0].mxu0
    %3256 = vdwg.mxu0
    %3257 = vmatprep.subr.mxu0 0.0
    %v3258 = vand.u32 %v2837, 4294901760
    %3259 = vmatpush1.msra.mxu0 %v3258
    %3260 = vmatprep.subr.mxu0 0.0
    %v3261 = vand.u32 %v2838, 4294901760
    %3262 = vmatpush1.msra.mxu0 %v3261
    %3263 = vmatprep.subr.mxu0 0.0
    %v3264 = vand.u32 %v2839, 4294901760
    %3265 = vmatpush1.msra.mxu0 %v3264
    %3266 = vmatprep.subr.mxu0 0.0
    %v3267 = vand.u32 %v2840, 4294901760
    %3268 = vmatpush1.msra.mxu0 %v3267
    %3269 = vmatprep.subr.mxu0 0.0
    %3270 = vmatpush1.msra.mxu0 0.0
    %3271 = vmatprep.subr.mxu0 0.0
    %3272 = vmatpush1.msra.mxu0 0.0
    %3273 = vmatprep.subr.mxu0 0.0
    %3274 = vmatpush1.msra.mxu0 0.0
    %3275 = vmatprep.subr.mxu0 0.0
    %3276 = vmatpush1.msra.mxu0 0.0
    %3277 = vmatprep.subr.mxu0 0.0
    %3278 = vmatpush1.msra.mxu0 0.0
    %3279 = vmatprep.subr.mxu0 0.0
    %3280 = vmatpush1.msra.mxu0 0.0
    %3281 = vmatprep.subr.mxu0 0.0
    %3282 = vmatpush1.msra.mxu0 0.0
    %3283 = vmatprep.subr.mxu0 0.0
    %3284 = vmatpush1.msra.mxu0 0.0
    %3285 = vmatprep.subr.mxu0 0.0
    %3286 = vmatpush1.msra.mxu0 0.0
    %3287 = vmatprep.subr.mxu0 0.0
    %3288 = vmatpush1.msra.mxu0 0.0
    %3289 = vmatprep.subr.mxu0 0.0
    %3290 = vmatpush1.msra.mxu0 0.0
    %3291 = vmatprep.subr.mxu0 0.0
    %3292 = vmatpush1.msra.mxu0 0.0
    %3293 = vmatprep.subr.mxu0 0.0
    %3294 = vmatpush1.msra.mxu0 0.0
    %3295 = vmatprep.subr.mxu0 0.0
    %3296 = vmatpush1.msra.mxu0 0.0
    %3297 = vmatprep.subr.mxu0 0.0
    %3298 = vmatpush1.msra.mxu0 0.0
    %3299 = vmatprep.subr.mxu0 0.0
    %3300 = vmatpush1.msra.mxu0 0.0
    %3301 = vmatprep.subr.mxu0 0.0
    %3302 = vmatpush1.msra.mxu0 0.0
    %3303 = vmatprep.subr.mxu0 0.0
    %3304 = vmatpush1.msra.mxu0 0.0
    %3305 = vmatprep.subr.mxu0 0.0
    %3306 = vmatpush1.msra.mxu0 0.0
    %3307 = vmatprep.subr.mxu0 0.0
    %3308 = vmatpush1.msra.mxu0 0.0
    %3309 = vmatprep.subr.mxu0 0.0
    %3310 = vmatpush1.msra.mxu0 0.0
    %3311 = vmatprep.subr.mxu0 0.0
    %3312 = vmatpush1.msra.mxu0 0.0
    %3313 = vmatprep.subr.mxu0 0.0
    %3314 = vmatpush1.msra.mxu0 0.0
    %3315 = vmatprep.subr.mxu0 0.0
    %3316 = vmatpush1.msra.mxu0 0.0
    %3317 = vmatprep.subr.mxu0 0.0
    %3318 = vmatpush1.msra.mxu0 0.0
    %3319 = vmatprep.subr.mxu0 0.0
    %3320 = vmatpush1.msra.mxu0 0.0
    %3321 = vmatprep.subr.mxu0 0.0
    %3322 = vmatpush1.msra.mxu0 0.0
    %3323 = vmatprep.subr.mxu0 0.0
    %3324 = vmatpush1.msra.mxu0 0.0
    %3325 = vmatprep.mubr.f32.mxu0 0.0
    %v3326 = vand.u32 %v2845, 4294901760
    %3327 = vmatmul.mubr.f32.gmra.mrb[0].mxu0 %v3326
    %v3328 = vpop.f32.mrb[0].mxu0
    %v3329 = vadd.f32 %v3254, %v3328
    %v3330 = vpop.f32.mrb[0].mxu0
    %3331 = vdwg.mxu0
    %v3332 = vlaneseq
    %v3333 = vshrl.u32 %v3332, 7
    %v3334 = vsub.s32 0, %v3333
    %v3335 = vrot.slane %v3329, %v3334
    %v3336 = vmul.f32 %v2077, %v3335
    %v3337 = vlaneseq
    %v3338 = vshrl.u32 %v3337, 7
    %v3339 = vsub.s32 1, %v3338
    %v3340 = vrot.slane %v3329, %v3339
    %v3341 = vadd.f32 %v3336, %v3340
    %3342 = vst [vmem:[#allocation5] sm:$0xff] %v3341
    %v3343 = vld [vmem:[#allocation5] ss:$4 sm:$0x3]
    %v3344 = vld [vmem:[%s4] sm:$0xff]
    %v3345 = vld [vmem:[%s4 + $0x8] sm:$0xff]
    %v3346 = vld [vmem:[%s4 + $0x10] sm:$0xff]
    %v3347 = vld [vmem:[%s4 + $0x18] sm:$0xff]
    %v3348 = vld [vmem:[%s4 + $0x20] sm:$0xff]
    %v3349 = vld [vmem:[%s4 + $0x28] sm:$0xff]
    %v3350 = vld [vmem:[%s4 + $0x30] sm:$0xff]
    %v3351 = vld [vmem:[%s4 + $0x38] sm:$0xff]
    %v3352 = vld [vmem:[%s4 + $0x40] sm:$0xff]
    %v3353 = vld [vmem:[%s4 + $0x48] sm:$0xff]
    %v3354 = vld [vmem:[%s4 + $0x50] sm:$0xff]
    %v3355 = vld [vmem:[%s4 + $0x58] sm:$0xff]
    %v3356 = vld [vmem:[%s4 + $0x60] sm:$0xff]
    %v3357 = vld [vmem:[%s4 + $0x68] sm:$0xff]
    %v3358 = vld [vmem:[%s4 + $0x70] sm:$0xff]
    %v3359 = vld [vmem:[%s4 + $0x78] sm:$0xff]
    %s3360 = scalar_lea.vmem [#allocation5], 1
    %v3361 = vld [vmem:[%s3360] ss:$4 sm:$0x3]
    %v3362 = vld [vmem:[%s4 + $0x80] sm:$0xff]
    %v3363 = vld [vmem:[%s4 + $0x88] sm:$0xff]
    %v3364 = vld [vmem:[%s4 + $0x90] sm:$0xff]
    %v3365 = vld [vmem:[%s4 + $0x98] sm:$0xff]
    %v3366 = vld [vmem:[%s4 + $0xa0] sm:$0xff]
    %v3367 = vld [vmem:[%s4 + $0xa8] sm:$0xff]
    %v3368 = vld [vmem:[%s4 + $0xb0] sm:$0xff]
    %v3369 = vld [vmem:[%s4 + $0xb8] sm:$0xff]
    %v3370 = vld [vmem:[%s4 + $0xc0] sm:$0xff]
    %v3371 = vld [vmem:[%s4 + $0xc8] sm:$0xff]
    %v3372 = vld [vmem:[%s4 + $0xd0] sm:$0xff]
    %v3373 = vld [vmem:[%s4 + $0xd8] sm:$0xff]
    %v3374 = vld [vmem:[%s4 + $0xe0] sm:$0xff]
    %v3375 = vld [vmem:[%s4 + $0xe8] sm:$0xff]
    %v3376 = vld [vmem:[%s4 + $0xf0] sm:$0xff]
    %v3377 = vld [vmem:[%s4 + $0xf8] sm:$0xff]
    %3378 = vmatprep.subr.mxu0 0.0
    %3379 = vmatpush1.msra.mxu0 %v3362
    %3380 = vmatprep.subr.mxu0 0.0
    %3381 = vmatpush1.msra.mxu0 %v3363
    %3382 = vmatprep.subr.mxu0 0.0
    %3383 = vmatpush1.msra.mxu0 %v3364
    %3384 = vmatprep.subr.mxu0 0.0
    %3385 = vmatpush1.msra.mxu0 %v3365
    %3386 = vmatprep.subr.mxu0 0.0
    %3387 = vmatpush1.msra.mxu0 %v3366
    %3388 = vmatprep.subr.mxu0 0.0
    %3389 = vmatpush1.msra.mxu0 %v3367
    %3390 = vmatprep.subr.mxu0 0.0
    %3391 = vmatpush1.msra.mxu0 %v3368
    %3392 = vmatprep.subr.mxu0 0.0
    %3393 = vmatpush1.msra.mxu0 %v3369
    %3394 = vmatprep.subr.mxu0 0.0
    %3395 = vmatpush1.msra.mxu0 %v3370
    %3396 = vmatprep.subr.mxu0 0.0
    %3397 = vmatpush1.msra.mxu0 %v3371
    %3398 = vmatprep.subr.mxu0 0.0
    %3399 = vmatpush1.msra.mxu0 %v3372
    %3400 = vmatprep.subr.mxu0 0.0
    %3401 = vmatpush1.msra.mxu0 %v3373
    %3402 = vmatprep.subr.mxu0 0.0
    %3403 = vmatpush1.msra.mxu0 %v3374
    %3404 = vmatprep.subr.mxu0 0.0
    %3405 = vmatpush1.msra.mxu0 %v3375
    %3406 = vmatprep.subr.mxu0 0.0
    %3407 = vmatpush1.msra.mxu0 %v3376
    %3408 = vmatprep.subr.mxu0 0.0
    %3409 = vmatpush1.msra.mxu0 %v3377
    %3410 = vmatprep.subr.mxu0 0.0
    %3411 = vmatpush1.msra.mxu0 0.0
    %3412 = vmatprep.subr.mxu0 0.0
    %3413 = vmatpush1.msra.mxu0 0.0
    %3414 = vmatprep.subr.mxu0 0.0
    %3415 = vmatpush1.msra.mxu0 0.0
    %3416 = vmatprep.subr.mxu0 0.0
    %3417 = vmatpush1.msra.mxu0 0.0
    %3418 = vmatprep.subr.mxu0 0.0
    %3419 = vmatpush1.msra.mxu0 0.0
    %3420 = vmatprep.subr.mxu0 0.0
    %3421 = vmatpush1.msra.mxu0 0.0
    %3422 = vmatprep.subr.mxu0 0.0
    %3423 = vmatpush1.msra.mxu0 0.0
    %3424 = vmatprep.subr.mxu0 0.0
    %3425 = vmatpush1.msra.mxu0 0.0
    %3426 = vmatprep.subr.mxu0 0.0
    %3427 = vmatpush1.msra.mxu0 0.0
    %3428 = vmatprep.subr.mxu0 0.0
    %3429 = vmatpush1.msra.mxu0 0.0
    %3430 = vmatprep.subr.mxu0 0.0
    %3431 = vmatpush1.msra.mxu0 0.0
    %3432 = vmatprep.subr.mxu0 0.0
    %3433 = vmatpush1.msra.mxu0 0.0
    %3434 = vmatprep.subr.mxu0 0.0
    %3435 = vmatpush1.msra.mxu0 0.0
    %3436 = vmatprep.subr.mxu0 0.0
    %3437 = vmatpush1.msra.mxu0 0.0
    %3438 = vmatprep.subr.mxu0 0.0
    %3439 = vmatpush1.msra.mxu0 0.0
    %3440 = vmatprep.subr.mxu0 0.0
    %3441 = vmatpush1.msra.mxu0 0.0
    %3442 = vmatprep.mubr.f32.mxu0 0.0
    %3443 = vmatmul.mubr.f32.gmra.mrb[0].mxu0 %v3361
    %v3444 = vpop.f32.mrb[0].mxu0
    %v3445 = vadd.f32 0.0, %v3444
    %v3446 = vpop.f32.mrb[0].mxu0
    %3447 = vdwg.mxu0
    %3448 = vmatprep.subr.mxu0 0.0
    %3449 = vmatpush1.msra.mxu0 %v3344
    %3450 = vmatprep.subr.mxu0 0.0
    %3451 = vmatpush1.msra.mxu0 %v3345
    %3452 = vmatprep.subr.mxu0 0.0
    %3453 = vmatpush1.msra.mxu0 %v3346
    %3454 = vmatprep.subr.mxu0 0.0
    %3455 = vmatpush1.msra.mxu0 %v3347
    %3456 = vmatprep.subr.mxu0 0.0
    %3457 = vmatpush1.msra.mxu0 %v3348
    %3458 = vmatprep.subr.mxu0 0.0
    %3459 = vmatpush1.msra.mxu0 %v3349
    %3460 = vmatprep.subr.mxu0 0.0
    %3461 = vmatpush1.msra.mxu0 %v3350
    %3462 = vmatprep.subr.mxu0 0.0
    %3463 = vmatpush1.msra.mxu0 %v3351
    %3464 = vmatprep.subr.mxu0 0.0
    %3465 = vmatpush1.msra.mxu0 %v3352
    %3466 = vmatprep.subr.mxu0 0.0
    %3467 = vmatpush1.msra.mxu0 %v3353
    %3468 = vmatprep.subr.mxu0 0.0
    %3469 = vmatpush1.msra.mxu0 %v3354
    %3470 = vmatprep.subr.mxu0 0.0
    %3471 = vmatpush1.msra.mxu0 %v3355
    %3472 = vmatprep.subr.mxu0 0.0
    %3473 = vmatpush1.msra.mxu0 %v3356
    %3474 = vmatprep.subr.mxu0 0.0
    %3475 = vmatpush1.msra.mxu0 %v3357
    %3476 = vmatprep.subr.mxu0 0.0
    %3477 = vmatpush1.msra.mxu0 %v3358
    %3478 = vmatprep.subr.mxu0 0.0
    %3479 = vmatpush1.msra.mxu0 %v3359
    %3480 = vmatprep.subr.mxu0 0.0
    %3481 = vmatpush1.msra.mxu0 0.0
    %3482 = vmatprep.subr.mxu0 0.0
    %3483 = vmatpush1.msra.mxu0 0.0
    %3484 = vmatprep.subr.mxu0 0.0
    %3485 = vmatpush1.msra.mxu0 0.0
    %3486 = vmatprep.subr.mxu0 0.0
    %3487 = vmatpush1.msra.mxu0 0.0
    %3488 = vmatprep.subr.mxu0 0.0
    %3489 = vmatpush1.msra.mxu0 0.0
    %3490 = vmatprep.subr.mxu0 0.0
    %3491 = vmatpush1.msra.mxu0 0.0
    %3492 = vmatprep.subr.mxu0 0.0
    %3493 = vmatpush1.msra.mxu0 0.0
    %3494 = vmatprep.subr.mxu0 0.0
    %3495 = vmatpush1.msra.mxu0 0.0
    %3496 = vmatprep.subr.mxu0 0.0
    %3497 = vmatpush1.msra.mxu0 0.0
    %3498 = vmatprep.subr.mxu0 0.0
    %3499 = vmatpush1.msra.mxu0 0.0
    %3500 = vmatprep.subr.mxu0 0.0
    %3501 = vmatpush1.msra.mxu0 0.0
    %3502 = vmatprep.subr.mxu0 0.0
    %3503 = vmatpush1.msra.mxu0 0.0
    %3504 = vmatprep.subr.mxu0 0.0
    %3505 = vmatpush1.msra.mxu0 0.0
    %3506 = vmatprep.subr.mxu0 0.0
    %3507 = vmatpush1.msra.mxu0 0.0
    %3508 = vmatprep.subr.mxu0 0.0
    %3509 = vmatpush1.msra.mxu0 0.0
    %3510 = vmatprep.subr.mxu0 0.0
    %3511 = vmatpush1.msra.mxu0 0.0
    %3512 = vmatprep.mubr.f32.mxu0 0.0
    %3513 = vmatmul.mubr.f32.gmra.mrb[0].mxu0 %v3343
    %v3514 = vpop.f32.mrb[0].mxu0
    %v3515 = vadd.f32 %v3445, %v3514
    %v3516 = vpop.f32.mrb[0].mxu0
    %3517 = vdwg.mxu0
    %s3518 = scalar_lea.vmem [#allocation5], 2
    %v3519 = vld [vmem:[%s3518] ss:$4 sm:$0x3]
    %v3520 = vld [vmem:[%s4 + $0x100] sm:$0xff]
    %v3521 = vld [vmem:[%s4 + $0x108] sm:$0xff]
    %v3522 = vld [vmem:[%s4 + $0x110] sm:$0xff]
    %v3523 = vld [vmem:[%s4 + $0x118] sm:$0xff]
    %v3524 = vld [vmem:[%s4 + $0x120] sm:$0xff]
    %v3525 = vld [vmem:[%s4 + $0x128] sm:$0xff]
    %v3526 = vld [vmem:[%s4 + $0x130] sm:$0xff]
    %v3527 = vld [vmem:[%s4 + $0x138] sm:$0xff]
    %v3528 = vld [vmem:[%s4 + $0x140] sm:$0xff]
    %v3529 = vld [vmem:[%s4 + $0x148] sm:$0xff]
    %v3530 = vld [vmem:[%s4 + $0x150] sm:$0xff]
    %v3531 = vld [vmem:[%s4 + $0x158] sm:$0xff]
    %v3532 = vld [vmem:[%s4 + $0x160] sm:$0xff]
    %v3533 = vld [vmem:[%s4 + $0x168] sm:$0xff]
    %v3534 = vld [vmem:[%s4 + $0x170] sm:$0xff]
    %v3535 = vld [vmem:[%s4 + $0x178] sm:$0xff]
    %3536 = vmatprep.subr.mxu0 0.0
    %3537 = vmatpush1.msra.mxu0 %v3520
    %3538 = vmatprep.subr.mxu0 0.0
    %3539 = vmatpush1.msra.mxu0 %v3521
    %3540 = vmatprep.subr.mxu0 0.0
    %3541 = vmatpush1.msra.mxu0 %v3522
    %3542 = vmatprep.subr.mxu0 0.0
    %3543 = vmatpush1.msra.mxu0 %v3523
    %3544 = vmatprep.subr.mxu0 0.0
    %3545 = vmatpush1.msra.mxu0 %v3524
    %3546 = vmatprep.subr.mxu0 0.0
    %3547 = vmatpush1.msra.mxu0 %v3525
    %3548 = vmatprep.subr.mxu0 0.0
    %3549 = vmatpush1.msra.mxu0 %v3526
    %3550 = vmatprep.subr.mxu0 0.0
    %3551 = vmatpush1.msra.mxu0 %v3527
    %3552 = vmatprep.subr.mxu0 0.0
    %3553 = vmatpush1.msra.mxu0 %v3528
    %3554 = vmatprep.subr.mxu0 0.0
    %3555 = vmatpush1.msra.mxu0 %v3529
    %3556 = vmatprep.subr.mxu0 0.0
    %3557 = vmatpush1.msra.mxu0 %v3530
    %3558 = vmatprep.subr.mxu0 0.0
    %3559 = vmatpush1.msra.mxu0 %v3531
    %3560 = vmatprep.subr.mxu0 0.0
    %3561 = vmatpush1.msra.mxu0 %v3532
    %3562 = vmatprep.subr.mxu0 0.0
    %3563 = vmatpush1.msra.mxu0 %v3533
    %3564 = vmatprep.subr.mxu0 0.0
    %3565 = vmatpush1.msra.mxu0 %v3534
    %3566 = vmatprep.subr.mxu0 0.0
    %3567 = vmatpush1.msra.mxu0 %v3535
    %3568 = vmatprep.subr.mxu0 0.0
    %3569 = vmatpush1.msra.mxu0 0.0
    %3570 = vmatprep.subr.mxu0 0.0
    %3571 = vmatpush1.msra.mxu0 0.0
    %3572 = vmatprep.subr.mxu0 0.0
    %3573 = vmatpush1.msra.mxu0 0.0
    %3574 = vmatprep.subr.mxu0 0.0
    %3575 = vmatpush1.msra.mxu0 0.0
    %3576 = vmatprep.subr.mxu0 0.0
    %3577 = vmatpush1.msra.mxu0 0.0
    %3578 = vmatprep.subr.mxu0 0.0
    %3579 = vmatpush1.msra.mxu0 0.0
    %3580 = vmatprep.subr.mxu0 0.0
    %3581 = vmatpush1.msra.mxu0 0.0
    %3582 = vmatprep.subr.mxu0 0.0
    %3583 = vmatpush1.msra.mxu0 0.0
    %3584 = vmatprep.subr.mxu0 0.0
    %3585 = vmatpush1.msra.mxu0 0.0
    %3586 = vmatprep.subr.mxu0 0.0
    %3587 = vmatpush1.msra.mxu0 0.0
    %3588 = vmatprep.subr.mxu0 0.0
    %3589 = vmatpush1.msra.mxu0 0.0
    %3590 = vmatprep.subr.mxu0 0.0
    %3591 = vmatpush1.msra.mxu0 0.0
    %3592 = vmatprep.subr.mxu0 0.0
    %3593 = vmatpush1.msra.mxu0 0.0
    %3594 = vmatprep.subr.mxu0 0.0
    %3595 = vmatpush1.msra.mxu0 0.0
    %3596 = vmatprep.subr.mxu0 0.0
    %3597 = vmatpush1.msra.mxu0 0.0
    %3598 = vmatprep.subr.mxu0 0.0
    %3599 = vmatpush1.msra.mxu0 0.0
    %3600 = vmatprep.mubr.f32.mxu0 0.0
    %3601 = vmatmul.mubr.f32.gmra.mrb[0].mxu0 %v3519
    %v3602 = vpop.f32.mrb[0].mxu0
    %v3603 = vadd.f32 0.0, %v3602
    %v3604 = vpop.f32.mrb[0].mxu0
    %3605 = vdwg.mxu0
    %v3606 = vadd.f32 %v3515, %v3603
    %s3607 = scalar_lea.vmem [#allocation5], 3
    %v3608 = vld [vmem:[%s3607] ss:$4 sm:$0x3]
    %v3609 = vld [vmem:[%s4 + $0x180] sm:$0xff]
    %v3610 = vld [vmem:[%s4 + $0x188] sm:$0xff]
    %v3611 = vld [vmem:[%s4 + $0x190] sm:$0xff]
    %v3612 = vld [vmem:[%s4 + $0x198] sm:$0xff]
    %v3613 = vld [vmem:[%s4 + $0x1a0] sm:$0xff]
    %v3614 = vld [vmem:[%s4 + $0x1a8] sm:$0xff]
    %v3615 = vld [vmem:[%s4 + $0x1b0] sm:$0xff]
    %v3616 = vld [vmem:[%s4 + $0x1b8] sm:$0xff]
    %v3617 = vld [vmem:[%s4 + $0x1c0] sm:$0xff]
    %v3618 = vld [vmem:[%s4 + $0x1c8] sm:$0xff]
    %v3619 = vld [vmem:[%s4 + $0x1d0] sm:$0xff]
    %v3620 = vld [vmem:[%s4 + $0x1d8] sm:$0xff]
    %v3621 = vld [vmem:[%s4 + $0x1e0] sm:$0xff]
    %v3622 = vld [vmem:[%s4 + $0x1e8] sm:$0xff]
    %v3623 = vld [vmem:[%s4 + $0x1f0] sm:$0xff]
    %v3624 = vld [vmem:[%s4 + $0x1f8] sm:$0xff]
    %3625 = vmatprep.subr.mxu0 0.0
    %3626 = vmatpush1.msra.mxu0 %v3609
    %3627 = vmatprep.subr.mxu0 0.0
    %3628 = vmatpush1.msra.mxu0 %v3610
    %3629 = vmatprep.subr.mxu0 0.0
    %3630 = vmatpush1.msra.mxu0 %v3611
    %3631 = vmatprep.subr.mxu0 0.0
    %3632 = vmatpush1.msra.mxu0 %v3612
    %3633 = vmatprep.subr.mxu0 0.0
    %3634 = vmatpush1.msra.mxu0 %v3613
    %3635 = vmatprep.subr.mxu0 0.0
    %3636 = vmatpush1.msra.mxu0 %v3614
    %3637 = vmatprep.subr.mxu0 0.0
    %3638 = vmatpush1.msra.mxu0 %v3615
    %3639 = vmatprep.subr.mxu0 0.0
    %3640 = vmatpush1.msra.mxu0 %v3616
    %3641 = vmatprep.subr.mxu0 0.0
    %3642 = vmatpush1.msra.mxu0 %v3617
    %3643 = vmatprep.subr.mxu0 0.0
    %3644 = vmatpush1.msra.mxu0 %v3618
    %3645 = vmatprep.subr.mxu0 0.0
    %3646 = vmatpush1.msra.mxu0 %v3619
    %3647 = vmatprep.subr.mxu0 0.0
    %3648 = vmatpush1.msra.mxu0 %v3620
    %3649 = vmatprep.subr.mxu0 0.0
    %3650 = vmatpush1.msra.mxu0 %v3621
    %3651 = vmatprep.subr.mxu0 0.0
    %3652 = vmatpush1.msra.mxu0 %v3622
    %3653 = vmatprep.subr.mxu0 0.0
    %3654 = vmatpush1.msra.mxu0 %v3623
    %3655 = vmatprep.subr.mxu0 0.0
    %3656 = vmatpush1.msra.mxu0 %v3624
    %3657 = vmatprep.subr.mxu0 0.0
    %3658 = vmatpush1.msra.mxu0 0.0
    %3659 = vmatprep.subr.mxu0 0.0
    %3660 = vmatpush1.msra.mxu0 0.0
    %3661 = vmatprep.subr.mxu0 0.0
    %3662 = vmatpush1.msra.mxu0 0.0
    %3663 = vmatprep.subr.mxu0 0.0
    %3664 = vmatpush1.msra.mxu0 0.0
    %3665 = vmatprep.subr.mxu0 0.0
    %3666 = vmatpush1.msra.mxu0 0.0
    %3667 = vmatprep.subr.mxu0 0.0
    %3668 = vmatpush1.msra.mxu0 0.0
    %3669 = vmatprep.subr.mxu0 0.0
    %3670 = vmatpush1.msra.mxu0 0.0
    %3671 = vmatprep.subr.mxu0 0.0
    %3672 = vmatpush1.msra.mxu0 0.0
    %3673 = vmatprep.subr.mxu0 0.0
    %3674 = vmatpush1.msra.mxu0 0.0
    %3675 = vmatprep.subr.mxu0 0.0
    %3676 = vmatpush1.msra.mxu0 0.0
    %3677 = vmatprep.subr.mxu0 0.0
    %3678 = vmatpush1.msra.mxu0 0.0
    %3679 = vmatprep.subr.mxu0 0.0
    %3680 = vmatpush1.msra.mxu0 0.0
    %3681 = vmatprep.subr.mxu0 0.0
    %3682 = vmatpush1.msra.mxu0 0.0
    %3683 = vmatprep.subr.mxu0 0.0
    %3684 = vmatpush1.msra.mxu0 0.0
    %3685 = vmatprep.subr.mxu0 0.0
    %3686 = vmatpush1.msra.mxu0 0.0
    %3687 = vmatprep.subr.mxu0 0.0
    %3688 = vmatpush1.msra.mxu0 0.0
    %3689 = vmatprep.mubr.f32.mxu0 0.0
    %3690 = vmatmul.mubr.f32.gmra.mrb[0].mxu0 %v3608
    %v3691 = vpop.f32.mrb[0].mxu0
    %v3692 = vadd.f32 0.0, %v3691
    %v3693 = vpop.f32.mrb[0].mxu0
    %3694 = vdwg.mxu0
    %v3695 = vadd.f32 %v3606, %v3692
    %v3696 = vlaneseq
    %v3697 = vshrl.u32 %v3696, 7
    %v3698 = vsub.s32 0, %v3697
    %v3699 = vrot.slane %v27, %v3698
    %v3700 = vadd.f32 %v3695, %v3699
    %v3701 = vld [vmem:[%s1] sm:$0x3]
    %v3702 = vld [vmem:[%s4 + $0x200] sm:$0xff]
    %3704 = vrot.lane.b32.xlu0 %v3699, 96
    %v3705 = vpop.permute.xlu0 %3704
    %vm3707 = vcmask 64512
    %v3709 = vsel %vm3707, %v3701, 0
    %3711 = vmatprep.subr.mxu0 0.0
    %3712 = vmatpush1.msra.mxu0 %v3702
    %3713 = vmatprep.subr.mxu0 0.0
    %3714 = vmatpush1.msra.mxu0 0.0
    %3715 = vmatprep.subr.mxu0 0.0
    %3716 = vmatpush1.msra.mxu0 0.0
    %3717 = vmatprep.subr.mxu0 0.0
    %3718 = vmatpush1.msra.mxu0 0.0
    %3719 = vmatprep.subr.mxu0 0.0
    %3720 = vmatpush1.msra.mxu0 0.0
    %3721 = vmatprep.subr.mxu0 0.0
    %3722 = vmatpush1.msra.mxu0 0.0
    %3723 = vmatprep.subr.mxu0 0.0
    %3724 = vmatpush1.msra.mxu0 0.0
    %3725 = vmatprep.subr.mxu0 0.0
    %3726 = vmatpush1.msra.mxu0 0.0
    %3727 = vmatprep.subr.mxu0 0.0
    %3728 = vmatpush1.msra.mxu0 0.0
    %3729 = vmatprep.subr.mxu0 0.0
    %3730 = vmatpush1.msra.mxu0 0.0
    %3731 = vmatprep.subr.mxu0 0.0
    %3732 = vmatpush1.msra.mxu0 0.0
    %3733 = vmatprep.subr.mxu0 0.0
    %3734 = vmatpush1.msra.mxu0 0.0
    %3735 = vmatprep.subr.mxu0 0.0
    %3736 = vmatpush1.msra.mxu0 0.0
    %3737 = vmatprep.subr.mxu0 0.0
    %3738 = vmatpush1.msra.mxu0 0.0
    %3739 = vmatprep.subr.mxu0 0.0
    %3740 = vmatpush1.msra.mxu0 0.0
    %3741 = vmatprep.subr.mxu0 0.0
    %3742 = vmatpush1.msra.mxu0 0.0
    %3743 = vmatprep.subr.mxu0 0.0
    %3744 = vmatpush1.msra.mxu0 0.0
    %3745 = vmatprep.subr.mxu0 0.0
    %3746 = vmatpush1.msra.mxu0 0.0
    %3747 = vmatprep.subr.mxu0 0.0
    %3748 = vmatpush1.msra.mxu0 0.0
    %3749 = vmatprep.subr.mxu0 0.0
    %3750 = vmatpush1.msra.mxu0 0.0
    %3751 = vmatprep.subr.mxu0 0.0
    %3752 = vmatpush1.msra.mxu0 0.0
    %3753 = vmatprep.subr.mxu0 0.0
    %3754 = vmatpush1.msra.mxu0 0.0
    %3755 = vmatprep.subr.mxu0 0.0
    %3756 = vmatpush1.msra.mxu0 0.0
    %3757 = vmatprep.subr.mxu0 0.0
    %3758 = vmatpush1.msra.mxu0 0.0
    %3759 = vmatprep.subr.mxu0 0.0
    %3760 = vmatpush1.msra.mxu0 0.0
    %3761 = vmatprep.subr.mxu0 0.0
    %3762 = vmatpush1.msra.mxu0 0.0
    %3763 = vmatprep.subr.mxu0 0.0
    %3764 = vmatpush1.msra.mxu0 0.0
    %3765 = vmatprep.subr.mxu0 0.0
    %3766 = vmatpush1.msra.mxu0 0.0
    %3767 = vmatprep.subr.mxu0 0.0
    %3768 = vmatpush1.msra.mxu0 0.0
    %3769 = vmatprep.subr.mxu0 0.0
    %3770 = vmatpush1.msra.mxu0 0.0
    %3771 = vmatprep.subr.mxu0 0.0
    %3772 = vmatpush1.msra.mxu0 0.0
    %3773 = vmatprep.subr.mxu0 0.0
    %3774 = vmatpush1.msra.mxu0 0.0
    %3775 = vmatprep.mubr.f32.mxu0 0.0
    %3776 = vmatmul.mubr.f32.gmra.mrb[0].mxu0 %v3709
    %v3777 = vpop.f32.mrb[0].mxu0
    %v3778 = vadd.f32 %v3705, %v3777
    %v3779 = vpop.f32.mrb[0].mxu0
    %3780 = vdwg.mxu0
    %v3781 = vmax.f32 %v3778, 0.0
    %3783 = vrot.lane.b32.xlu0 %v3700, 32
    %v3784 = vpop.permute.xlu0 %3783
    %3786 = vrot.lane.b32.xlu0 %v3701, 56
    %v3787 = vpop.permute.xlu0 %3786
    %v3789 = vsel %vm2844, %v3781, %v3784
    %vm3790 = vcmask 523264
    %v3791 = vsel %vm3790, %v3789, %v3787
    %v3792 = vld [vmem:[%s4 + $0x268] sm:$0xff]
    %v3793 = vld [vmem:[%s4 + $0x270] sm:$0xff]
    %v3794 = vld [vmem:[%s4 + $0x278] sm:$0xff]
    %v3795 = vld [vmem:[%s4 + $0x280] sm:$0xff]
    %v3796 = vld [vmem:[%s4 + $0x288] sm:$0xff]
    %v3797 = vld [vmem:[%s4 + $0x290] sm:$0xff]
    %v3798 = vld [vmem:[%s4 + $0x298] sm:$0xff]
    %v3799 = vld [vmem:[%s4 + $0x2a0] sm:$0xff]
    %v3800 = vld [vmem:[%s4 + $0x2a8] sm:$0xf]
    %3801 = vrot.lane.b32.xlu0 %v3699, 64
    %v3802 = vpop.permute.xlu0 %3801
    %vm3804 = vcmask 556032
    %v3806 = vsel %vm3804, %v3791, 0
    %vm3808 = vcmask 1043456
    %v3810 = vsel %vm3808, %v3800, 0
    %3812 = vmatprep.subr.mxu0 0.0
    %3813 = vmatpush1.msra.mxu0 %v3792
    %3814 = vmatprep.subr.mxu0 0.0
    %3815 = vmatpush1.msra.mxu0 %v3793
    %3816 = vmatprep.subr.mxu0 0.0
    %3817 = vmatpush1.msra.mxu0 %v3794
    %3818 = vmatprep.subr.mxu0 0.0
    %3819 = vmatpush1.msra.mxu0 %v3795
    %3820 = vmatprep.subr.mxu0 0.0
    %3821 = vmatpush1.msra.mxu0 %v3796
    %3822 = vmatprep.subr.mxu0 0.0
    %3823 = vmatpush1.msra.mxu0 %v3797
    %3824 = vmatprep.subr.mxu0 0.0
    %3825 = vmatpush1.msra.mxu0 %v3798
    %3826 = vmatprep.subr.mxu0 0.0
    %3827 = vmatpush1.msra.mxu0 %v3799
    %3828 = vmatprep.subr.mxu0 0.0
    %3829 = vmatpush1.msra.mxu0 %v3810
    %3830 = vmatprep.subr.mxu0 0.0
    %3831 = vmatpush1.msra.mxu0 0.0
    %3832 = vmatprep.subr.mxu0 0.0
    %3833 = vmatpush1.msra.mxu0 0.0
    %3834 = vmatprep.subr.mxu0 0.0
    %3835 = vmatpush1.msra.mxu0 0.0
    %3836 = vmatprep.subr.mxu0 0.0
    %3837 = vmatpush1.msra.mxu0 0.0
    %3838 = vmatprep.subr.mxu0 0.0
    %3839 = vmatpush1.msra.mxu0 0.0
    %3840 = vmatprep.subr.mxu0 0.0
    %3841 = vmatpush1.msra.mxu0 0.0
    %3842 = vmatprep.subr.mxu0 0.0
    %3843 = vmatpush1.msra.mxu0 0.0
    %3844 = vmatprep.subr.mxu0 0.0
    %3845 = vmatpush1.msra.mxu0 0.0
    %3846 = vmatprep.subr.mxu0 0.0
    %3847 = vmatpush1.msra.mxu0 0.0
    %3848 = vmatprep.subr.mxu0 0.0
    %3849 = vmatpush1.msra.mxu0 0.0
    %3850 = vmatprep.subr.mxu0 0.0
    %3851 = vmatpush1.msra.mxu0 0.0
    %3852 = vmatprep.subr.mxu0 0.0
    %3853 = vmatpush1.msra.mxu0 0.0
    %3854 = vmatprep.subr.mxu0 0.0
    %3855 = vmatpush1.msra.mxu0 0.0
    %3856 = vmatprep.subr.mxu0 0.0
    %3857 = vmatpush1.msra.mxu0 0.0
    %3858 = vmatprep.subr.mxu0 0.0
    %3859 = vmatpush1.msra.mxu0 0.0
    %3860 = vmatprep.subr.mxu0 0.0
    %3861 = vmatpush1.msra.mxu0 0.0
    %3862 = vmatprep.subr.mxu0 0.0
    %3863 = vmatpush1.msra.mxu0 0.0
    %3864 = vmatprep.subr.mxu0 0.0
    %3865 = vmatpush1.msra.mxu0 0.0
    %3866 = vmatprep.subr.mxu0 0.0
    %3867 = vmatpush1.msra.mxu0 0.0
    %3868 = vmatprep.subr.mxu0 0.0
    %3869 = vmatpush1.msra.mxu0 0.0
    %3870 = vmatprep.subr.mxu0 0.0
    %3871 = vmatpush1.msra.mxu0 0.0
    %3872 = vmatprep.subr.mxu0 0.0
    %3873 = vmatpush1.msra.mxu0 0.0
    %3874 = vmatprep.subr.mxu0 0.0
    %3875 = vmatpush1.msra.mxu0 0.0
    %3876 = vmatprep.mubr.f32.mxu0 0.0
    %3877 = vmatmul.mubr.f32.gmra.mrb[0].mxu0 %v3806
    %v3878 = vpop.f32.mrb[0].mxu0
    %v3879 = vadd.f32 %v3802, %v3878
    %v3880 = vpop.f32.mrb[0].mxu0
    %3881 = vdwg.mxu0
    %v3882 = vmax.f32 %v3879, 0.0
    %v3883 = vld [vmem:[%s4 + $0x208] sm:$0xff]
    %v3884 = vld [vmem:[%s4 + $0x210] sm:$0xff]
    %v3885 = vld [vmem:[%s4 + $0x218] sm:$0xff]
    %v3886 = vld [vmem:[%s4 + $0x220] sm:$0xff]
    %3887 = vrot.lane.b32.xlu0 %v3699, 32
    %v3888 = vpop.permute.xlu0 %3887
    %v3891 = vsel %vm2844, %v3882, 0
    %3893 = vmatprep.subr.mxu0 0.0
    %3894 = vmatpush1.msra.mxu0 %v3883
    %3895 = vmatprep.subr.mxu0 0.0
    %3896 = vmatpush1.msra.mxu0 %v3884
    %3897 = vmatprep.subr.mxu0 0.0
    %3898 = vmatpush1.msra.mxu0 %v3885
    %3899 = vmatprep.subr.mxu0 0.0
    %3900 = vmatpush1.msra.mxu0 %v3886
    %3901 = vmatprep.subr.mxu0 0.0
    %3902 = vmatpush1.msra.mxu0 0.0
    %3903 = vmatprep.subr.mxu0 0.0
    %3904 = vmatpush1.msra.mxu0 0.0
    %3905 = vmatprep.subr.mxu0 0.0
    %3906 = vmatpush1.msra.mxu0 0.0
    %3907 = vmatprep.subr.mxu0 0.0
    %3908 = vmatpush1.msra.mxu0 0.0
    %3909 = vmatprep.subr.mxu0 0.0
    %3910 = vmatpush1.msra.mxu0 0.0
    %3911 = vmatprep.subr.mxu0 0.0
    %3912 = vmatpush1.msra.mxu0 0.0
    %3913 = vmatprep.subr.mxu0 0.0
    %3914 = vmatpush1.msra.mxu0 0.0
    %3915 = vmatprep.subr.mxu0 0.0
    %3916 = vmatpush1.msra.mxu0 0.0
    %3917 = vmatprep.subr.mxu0 0.0
    %3918 = vmatpush1.msra.mxu0 0.0
    %3919 = vmatprep.subr.mxu0 0.0
    %3920 = vmatpush1.msra.mxu0 0.0
    %3921 = vmatprep.subr.mxu0 0.0
    %3922 = vmatpush1.msra.mxu0 0.0
    %3923 = vmatprep.subr.mxu0 0.0
    %3924 = vmatpush1.msra.mxu0 0.0
    %3925 = vmatprep.subr.mxu0 0.0
    %3926 = vmatpush1.msra.mxu0 0.0
    %3927 = vmatprep.subr.mxu0 0.0
    %3928 = vmatpush1.msra.mxu0 0.0
    %3929 = vmatprep.subr.mxu0 0.0
    %3930 = vmatpush1.msra.mxu0 0.0
    %3931 = vmatprep.subr.mxu0 0.0
    %3932 = vmatpush1.msra.mxu0 0.0
    %3933 = vmatprep.subr.mxu0 0.0
    %3934 = vmatpush1.msra.mxu0 0.0
    %3935 = vmatprep.subr.mxu0 0.0
    %3936 = vmatpush1.msra.mxu0 0.0
    %3937 = vmatprep.subr.mxu0 0.0
    %3938 = vmatpush1.msra.mxu0 0.0
    %3939 = vmatprep.subr.mxu0 0.0
    %3940 = vmatpush1.msra.mxu0 0.0
    %3941 = vmatprep.subr.mxu0 0.0
    %3942 = vmatpush1.msra.mxu0 0.0
    %3943 = vmatprep.subr.mxu0 0.0
    %3944 = vmatpush1.msra.mxu0 0.0
    %3945 = vmatprep.subr.mxu0 0.0
    %3946 = vmatpush1.msra.mxu0 0.0
    %3947 = vmatprep.subr.mxu0 0.0
    %3948 = vmatpush1.msra.mxu0 0.0
    %3949 = vmatprep.subr.mxu0 0.0
    %3950 = vmatpush1.msra.mxu0 0.0
    %3951 = vmatprep.subr.mxu0 0.0
    %3952 = vmatpush1.msra.mxu0 0.0
    %3953 = vmatprep.subr.mxu0 0.0
    %3954 = vmatpush1.msra.mxu0 0.0
    %3955 = vmatprep.subr.mxu0 0.0
    %3956 = vmatpush1.msra.mxu0 0.0
    %3957 = vmatprep.mubr.f32.mxu0 0.0
    %3958 = vmatmul.mubr.f32.gmra.mrb[0].mxu0 %v3891
    %v3959 = vpop.f32.mrb[0].mxu0
    %v3960 = vadd.f32 %v3888, %v3959
    %v3961 = vpop.f32.mrb[0].mxu0
    %3962 = vdwg.mxu0
    %v3963 = vmax.f32 %v3960, 0.0
    %v3964 = vld [vmem:[%s4 + $0x228] sm:$0xff]
    %v3965 = vld [vmem:[%s4 + $0x230] sm:$0xff]
    %v3966 = vld [vmem:[%s4 + $0x238] sm:$0xff]
    %v3967 = vld [vmem:[%s4 + $0x240] sm:$0xff]
    %v3968 = vlaneseq
    %v3969 = vshrl.u32 %v3968, 7
    %v3970 = vsub.s32 0, %v3969
    %v3971 = vrot.slane %v28, %v3970
    %v3973 = vsel %vm2844, %v3963, 0
    %3975 = vmatprep.subr.mxu0 0.0
    %3976 = vmatpush1.msra.mxu0 %v3964
    %3977 = vmatprep.subr.mxu0 0.0
    %3978 = vmatpush1.msra.mxu0 %v3965
    %3979 = vmatprep.subr.mxu0 0.0
    %3980 = vmatpush1.msra.mxu0 %v3966
    %3981 = vmatprep.subr.mxu0 0.0
    %3982 = vmatpush1.msra.mxu0 %v3967
    %3983 = vmatprep.subr.mxu0 0.0
    %3984 = vmatpush1.msra.mxu0 0.0
    %3985 = vmatprep.subr.mxu0 0.0
    %3986 = vmatpush1.msra.mxu0 0.0
    %3987 = vmatprep.subr.mxu0 0.0
    %3988 = vmatpush1.msra.mxu0 0.0
    %3989 = vmatprep.subr.mxu0 0.0
    %3990 = vmatpush1.msra.mxu0 0.0
    %3991 = vmatprep.subr.mxu0 0.0
    %3992 = vmatpush1.msra.mxu0 0.0
    %3993 = vmatprep.subr.mxu0 0.0
    %3994 = vmatpush1.msra.mxu0 0.0
    %3995 = vmatprep.subr.mxu0 0.0
    %3996 = vmatpush1.msra.mxu0 0.0
    %3997 = vmatprep.subr.mxu0 0.0
    %3998 = vmatpush1.msra.mxu0 0.0
    %3999 = vmatprep.subr.mxu0 0.0
    %4000 = vmatpush1.msra.mxu0 0.0
    %4001 = vmatprep.subr.mxu0 0.0
    %4002 = vmatpush1.msra.mxu0 0.0
    %4003 = vmatprep.subr.mxu0 0.0
    %4004 = vmatpush1.msra.mxu0 0.0
    %4005 = vmatprep.subr.mxu0 0.0
    %4006 = vmatpush1.msra.mxu0 0.0
    %4007 = vmatprep.subr.mxu0 0.0
    %4008 = vmatpush1.msra.mxu0 0.0
    %4009 = vmatprep.subr.mxu0 0.0
    %4010 = vmatpush1.msra.mxu0 0.0
    %4011 = vmatprep.subr.mxu0 0.0
    %4012 = vmatpush1.msra.mxu0 0.0
    %4013 = vmatprep.subr.mxu0 0.0
    %4014 = vmatpush1.msra.mxu0 0.0
    %4015 = vmatprep.subr.mxu0 0.0
    %4016 = vmatpush1.msra.mxu0 0.0
    %4017 = vmatprep.subr.mxu0 0.0
    %4018 = vmatpush1.msra.mxu0 0.0
    %4019 = vmatprep.subr.mxu0 0.0
    %4020 = vmatpush1.msra.mxu0 0.0
    %4021 = vmatprep.subr.mxu0 0.0
    %4022 = vmatpush1.msra.mxu0 0.0
    %4023 = vmatprep.subr.mxu0 0.0
    %4024 = vmatpush1.msra.mxu0 0.0
    %4025 = vmatprep.subr.mxu0 0.0
    %4026 = vmatpush1.msra.mxu0 0.0
    %4027 = vmatprep.subr.mxu0 0.0
    %4028 = vmatpush1.msra.mxu0 0.0
    %4029 = vmatprep.subr.mxu0 0.0
    %4030 = vmatpush1.msra.mxu0 0.0
    %4031 = vmatprep.subr.mxu0 0.0
    %4032 = vmatpush1.msra.mxu0 0.0
    %4033 = vmatprep.subr.mxu0 0.0
    %4034 = vmatpush1.msra.mxu0 0.0
    %4035 = vmatprep.subr.mxu0 0.0
    %4036 = vmatpush1.msra.mxu0 0.0
    %4037 = vmatprep.subr.mxu0 0.0
    %4038 = vmatpush1.msra.mxu0 0.0
    %4039 = vmatprep.mubr.f32.mxu0 0.0
    %4040 = vmatmul.mubr.f32.gmra.mrb[0].mxu0 %v3973
    %v4041 = vpop.f32.mrb[0].mxu0
    %v4042 = vadd.f32 %v3971, %v4041
    %v4043 = vpop.f32.mrb[0].mxu0
    %4044 = vdwg.mxu0
    %v4045 = vmax.f32 %v4042, 0.0
    %v4046 = vld [vmem:[%s4 + $0x248] sm:$0xff]
    %v4047 = vld [vmem:[%s4 + $0x250] sm:$0xff]
    %v4048 = vld [vmem:[%s4 + $0x258] sm:$0xff]
    %v4049 = vld [vmem:[%s4 + $0x260] sm:$0xff]
    %4051 = vrot.lane.b32.xlu0 %v3971, 96
    %v4052 = vpop.permute.xlu0 %4051
    %v4055 = vsel %vm2844, %v4045, 0
    %4057 = vmatprep.subr.mxu0 0.0
    %4058 = vmatpush1.msra.mxu0 %v4046
    %4059 = vmatprep.subr.mxu0 0.0
    %4060 = vmatpush1.msra.mxu0 %v4047
    %4061 = vmatprep.subr.mxu0 0.0
    %4062 = vmatpush1.msra.mxu0 %v4048
    %4063 = vmatprep.subr.mxu0 0.0
    %4064 = vmatpush1.msra.mxu0 %v4049
    %4065 = vmatprep.subr.mxu0 0.0
    %4066 = vmatpush1.msra.mxu0 0.0
    %4067 = vmatprep.subr.mxu0 0.0
    %4068 = vmatpush1.msra.mxu0 0.0
    %4069 = vmatprep.subr.mxu0 0.0
    %4070 = vmatpush1.msra.mxu0 0.0
    %4071 = vmatprep.subr.mxu0 0.0
    %4072 = vmatpush1.msra.mxu0 0.0
    %4073 = vmatprep.subr.mxu0 0.0
    %4074 = vmatpush1.msra.mxu0 0.0
    %4075 = vmatprep.subr.mxu0 0.0
    %4076 = vmatpush1.msra.mxu0 0.0
    %4077 = vmatprep.subr.mxu0 0.0
    %4078 = vmatpush1.msra.mxu0 0.0
    %4079 = vmatprep.subr.mxu0 0.0
    %4080 = vmatpush1.msra.mxu0 0.0
    %4081 = vmatprep.subr.mxu0 0.0
    %4082 = vmatpush1.msra.mxu0 0.0
    %4083 = vmatprep.subr.mxu0 0.0
    %4084 = vmatpush1.msra.mxu0 0.0
    %4085 = vmatprep.subr.mxu0 0.0
    %4086 = vmatpush1.msra.mxu0 0.0
    %4087 = vmatprep.subr.mxu0 0.0
    %4088 = vmatpush1.msra.mxu0 0.0
    %4089 = vmatprep.subr.mxu0 0.0
    %4090 = vmatpush1.msra.mxu0 0.0
    %4091 = vmatprep.subr.mxu0 0.0
    %4092 = vmatpush1.msra.mxu0 0.0
    %4093 = vmatprep.subr.mxu0 0.0
    %4094 = vmatpush1.msra.mxu0 0.0
    %4095 = vmatprep.subr.mxu0 0.0
    %4096 = vmatpush1.msra.mxu0 0.0
    %4097 = vmatprep.subr.mxu0 0.0
    %4098 = vmatpush1.msra.mxu0 0.0
    %4099 = vmatprep.subr.mxu0 0.0
    %4100 = vmatpush1.msra.mxu0 0.0
    %4101 = vmatprep.subr.mxu0 0.0
    %4102 = vmatpush1.msra.mxu0 0.0
    %4103 = vmatprep.subr.mxu0 0.0
    %4104 = vmatpush1.msra.mxu0 0.0
    %4105 = vmatprep.subr.mxu0 0.0
    %4106 = vmatpush1.msra.mxu0 0.0
    %4107 = vmatprep.subr.mxu0 0.0
    %4108 = vmatpush1.msra.mxu0 0.0
    %4109 = vmatprep.subr.mxu0 0.0
    %4110 = vmatpush1.msra.mxu0 0.0
    %4111 = vmatprep.subr.mxu0 0.0
    %4112 = vmatpush1.msra.mxu0 0.0
    %4113 = vmatprep.subr.mxu0 0.0
    %4114 = vmatpush1.msra.mxu0 0.0
    %4115 = vmatprep.subr.mxu0 0.0
    %4116 = vmatpush1.msra.mxu0 0.0
    %4117 = vmatprep.subr.mxu0 0.0
    %4118 = vmatpush1.msra.mxu0 0.0
    %4119 = vmatprep.subr.mxu0 0.0
    %4120 = vmatpush1.msra.mxu0 0.0
    %4121 = vmatprep.mubr.f32.mxu0 0.0
    %4122 = vmatmul.mubr.f32.gmra.mrb[0].mxu0 %v4055
    %v4123 = vpop.f32.mrb[0].mxu0
    %v4124 = vadd.f32 %v4052, %v4123
    %v4125 = vpop.f32.mrb[0].mxu0
    %4126 = vdwg.mxu0
    %vm4127 = vcmask 17408
    %4128 = vst.msk [vmem:[#allocation6] sm:$0x3] %vm4127, %v4124
    // Predicated region
    $region26: #{vec_q_network_forward.1} parent=1 // pred_check
      _
    $region27: #{vec_q_network_forward.1} parent=1 // pred_check_branch
      %4130 = sbr.rel (0) target = $region29
    $region28: #{vec_q_network_forward.1} parent=1 // pred_region
      %s4132 = ssub.s32 32, 32
      %4133 = vsyncadd [#allocation7], %s4132
      %s4135 = sshll.u32 [#allocation6], 4
      %s4136 = int_to_ptr.vmem [resolvable:$true] %s4135
      %4138 = dma.vmem_to_hbm [thread:$0]  %s4136, 32, %s6, [#allocation7]
    $region29: #{vec_q_network_forward.1} parent=1 // pred_fallthru
      _
    // Predicated region
    $region30: #{vec_q_network_forward.1} parent=1 // pred_check
      _
    $region31: #{vec_q_network_forward.1} parent=1 // pred_check_branch
      %4140 = sbr.rel (0) target = $region33
    $region32: #{vec_q_network_forward.1} parent=1 // pred_region
      %4141 = dma.done [#allocation7], 32
    $region33: #{vec_q_network_forward.1} parent=1 // pred_fallthru
      _
    %4142 = vsyncpa [#allocation7], 1

</llo_original>
